<compile_context>
chip_gen: v7x
topology: tpu7x:2x2x1
jax: 0.10.0
libtpu: 0.0.40
codegen_flags: <defaults>
</compile_context>

<pallas_src>
import functools

import jax
import jax.numpy as jnp
from jax.experimental import pallas as pl
from jax.experimental.pallas import tpu as pltpu

MATMUL_DTYPE = jnp.bfloat16   # MXU operand dtype (fp32 accumulation everywhere)


# --------------------------------------------------------------------------- #
# In-kernel helpers
# --------------------------------------------------------------------------- #
def _layernorm_f32(v, w, b, eps=1e-5):
    """LayerNorm computed in fp32 (matches the fp16-safe LayerNorm subclass)."""
    v32 = v.astype(jnp.float32)
    mu = jnp.mean(v32, axis=-1, keepdims=True)
    var = jnp.mean(jnp.square(v32 - mu), axis=-1, keepdims=True)
    return (v32 - mu) * jax.lax.rsqrt(var + eps) * w + b


def _seq_to_head_major(x):   # (S, H, Dh) -> (H, S, Dh)
    if hasattr(pltpu, "einshape"):
        return pltpu.einshape("mhd->hmd", x)
    return jnp.transpose(x, (1, 0, 2))


def _head_to_seq_major(x):   # (H, S, Dh) -> (S, H, Dh)
    if hasattr(pltpu, "einshape"):
        return pltpu.einshape("hmd->mhd", x)
    return jnp.transpose(x, (1, 0, 2))


# --------------------------------------------------------------------------- #
# Fused kernel: one grid step = one (Bt, S, D) batch tile x one layer
# --------------------------------------------------------------------------- #
def transformer_kernel(x_ref,
                       ln1w_ref, ln1b_ref,
                       in_wT_ref, in_b_ref,
                       out_wT_ref, out_b_ref,
                       ln2w_ref, ln2b_ref,
                       fc_wT_ref, fc_b_ref,
                       pj_wT_ref, pj_b_ref,
                       o_ref, *, n_head):
    layer = pl.program_id(1)

    # Load the residual stream from HBM only at the first layer of this batch
    # tile; afterwards it lives in the (VMEM-resident) output block.
    @pl.when(layer == 0)
    def _():
        o_ref[...] = x_ref[...]

    Bt, S, D = o_ref.shape
    H = n_head
    Dh = D // H
    R = Bt * S
    cdt = in_wT_ref.dtype                       # matmul operand dtype (bf16)

    x = o_ref[...].astype(jnp.float32).reshape(R, D)   # (R, D) fp32 rows

    # ----------------- attention branch: x + attn(ln_1(x)) ------------------
    h = _layernorm_f32(x, ln1w_ref[...], ln1b_ref[...])                 # (R, D)
    qkv = jnp.dot(h.astype(cdt), in_wT_ref[...],
                  preferred_element_type=jnp.float32) + in_b_ref[...]   # (R, 3D)
    # 1/sqrt(Dh) is already folded into the q columns of in_proj_wT / in_proj_b.

    ctx_rows = []
    for b in range(Bt):                         # static unroll over batch tile
        qkv_b = qkv[b * S:(b + 1) * S, :]                               # (S, 3D)
        q = _seq_to_head_major(qkv_b[:, 0 * D:1 * D].reshape(S, H, Dh))  # (H,S,Dh)
        k = _seq_to_head_major(qkv_b[:, 1 * D:2 * D].reshape(S, H, Dh))
        v = _seq_to_head_major(qkv_b[:, 2 * D:3 * D].reshape(S, H, Dh))

        s = jnp.einsum('hqd,hkd->hqk', q.astype(cdt), k.astype(cdt),
                       preferred_element_type=jnp.float32)               # (H,S,S)
        m = jnp.max(s, axis=-1, keepdims=True)
        e = jnp.exp(s - m)                                                # fp32
        p = e * pl.reciprocal(jnp.sum(e, axis=-1, keepdims=True), approx=True)
        c = jnp.einsum('hqk,hkd->hqd', p.astype(cdt), v.astype(cdt),
                       preferred_element_type=jnp.float32)                # (H,S,Dh)
        ctx_rows.append(_head_to_seq_major(c).reshape(S, D))

    ctx = ctx_rows[0] if Bt == 1 else jnp.concatenate(ctx_rows, axis=0)   # (R, D)

    attn = jnp.dot(ctx.astype(cdt), out_wT_ref[...],
                   preferred_element_type=jnp.float32) + out_b_ref[...]
    x = x + attn                                                          # fp32

    # ----------------- MLP branch: x + c_proj(gelu(c_fc(ln_2(x)))) ----------
    h = _layernorm_f32(x, ln2w_ref[...], ln2b_ref[...])
    fc = jnp.dot(h.astype(cdt), fc_wT_ref[...],
                 preferred_element_type=jnp.float32) + fc_b_ref[...]      # (R, 4D)
    fc = fc * jax.nn.sigmoid(1.702 * fc)                                  # QuickGELU
    pj = jnp.dot(fc.astype(cdt), pj_wT_ref[...],
                 preferred_element_type=jnp.float32) + pj_b_ref[...]

    o_ref[...] = (x + pj).reshape(Bt, S, D).astype(o_ref.dtype)


# --------------------------------------------------------------------------- #
# pallas_call wrapper
# --------------------------------------------------------------------------- #
_PARAM_ORDER = ('ln1_w', 'ln1_b', 'in_proj_wT', 'in_proj_b',
                'out_proj_wT', 'out_proj_b', 'ln2_w', 'ln2_b',
                'fc_wT', 'fc_b', 'proj_wT', 'proj_b')


def _pick_batch_tile(B, S, target_rows=256, max_rows=1024, max_tile=8):
    """Largest divisor of B (<= max_tile) whose row count fits; prefer >= target."""
    best = 1
    for d in range(1, B + 1):
        if B % d:
            continue
        if d > max_tile or d * S > max_rows:
            break
        best = d
        if d * S >= target_rows:
            break
    return best


def _vmem_limit_bytes(D, S, Bt, n_head):
    """Explicit scoped-VMEM budget: weights (double-buffered across the layer
    axis) + activation blocks + fp32 temporaries, with headroom."""
    R = Bt * S
    weights = 12 * D * D * 2 * 2            # bf16 matmul weights x 2 buffers
    biases = 13 * D * 4 * 2 * 2             # fp32 biases / LN params x 2 buffers
    acts = Bt * S * D * 4 * 2 * 2           # fp32 activation in + out blocks
    temps = (3 * D + 4 * D + 2 * D) * R * 4  # qkv, fc, residual/ln fp32 rows
    scores = n_head * S * S * 4 * 3         # per-element scores / exp / probs
    total = int((weights + biases + acts + temps + scores) * 1.3) + (8 << 20)
    return max(32 << 20, min(total, 120 << 20))


def _weight_spec(arr):
    nd = arr.ndim
    return pl.BlockSpec((None,) + tuple(arr.shape[1:]),
                        lambda b, l, _nd=nd: (l,) + (0,) * (_nd - 1))


def transformer_forward(x_sbd, stacked_params, n_head, *, batch_tile=None):
    """x_sbd: (seq, batch, width) — same convention as the PyTorch module."""
    S, B, D = x_sbd.shape
    L = stacked_params['ln1_w'].shape[0]
    Bt = batch_tile if batch_tile is not None else _pick_batch_tile(B, S)
    assert B % Bt == 0, (B, Bt)

    x = jnp.transpose(x_sbd, (1, 0, 2))          # -> (B, S, D)
    weights = [stacked_params[name] for name in _PARAM_ORDER]

    act_spec = pl.BlockSpec((Bt, S, D), lambda b, l: (b, 0, 0))

    out = pl.pallas_call(
        functools.partial(transformer_kernel, n_head=n_head),
        out_shape=jax.ShapeDtypeStruct((B, S, D), x.dtype),
        grid=(B // Bt, L),
        in_specs=[act_spec] + [_weight_spec(w) for w in weights],
        out_specs=act_spec,
        # Residual stream is written in place (no extra HBM buffer).
        input_output_aliases={0: 0},
        compiler_params=pltpu.CompilerParams(
            dimension_semantics=("parallel", "arbitrary"),
            vmem_limit_bytes=_vmem_limit_bytes(D, S, Bt, n_head)),
    )(x, *weights)

    return jnp.transpose(out, (1, 0, 2))         # -> (S, B, D)


# --------------------------------------------------------------------------- #
# Parameters (PyTorch layout) + kernel-side preparation
# --------------------------------------------------------------------------- #
def init_raw_params(key, width, layers):
    """fp32 parameters in PyTorch layout (y = x @ W.T + b convention)."""
    D = width
    params = []
    for i in range(layers):
        ks = jax.random.split(jax.random.fold_in(key, i), 8)
        params.append({
            'ln1_w': jnp.ones((D,), jnp.float32),
            'ln1_b': jnp.zeros((D,), jnp.float32),
            'ln2_w': jnp.ones((D,), jnp.float32),
            'ln2_b': jnp.zeros((D,), jnp.float32),
            'in_proj_w': 0.02 * jax.random.normal(ks[0], (3 * D, D), jnp.float32),
            'in_proj_b': 0.02 * jax.random.normal(ks[1], (3 * D,), jnp.float32),
            'out_proj_w': 0.02 * jax.random.normal(ks[2], (D, D), jnp.float32),
            'out_proj_b': 0.02 * jax.random.normal(ks[3], (D,), jnp.float32),
            'fc_w': 0.02 * jax.random.normal(ks[4], (4 * D, D), jnp.float32),
            'fc_b': 0.02 * jax.random.normal(ks[5], (4 * D,), jnp.float32),
            'proj_w': 0.02 * jax.random.normal(ks[6], (D, 4 * D), jnp.float32),
            'proj_b': 0.02 * jax.random.normal(ks[7], (D,), jnp.float32),
        })
    return params


def prepare_layer_params(rp, n_head, matmul_dtype=MATMUL_DTYPE):
    """Pre-transpose weights, fold the q scale into in_proj, cast weights to bf16."""
    D = rp['ln1_w'].shape[-1]
    Dh = D // n_head
    scale = float(Dh) ** -0.5
    q_scale = jnp.concatenate([jnp.full((D,), scale, jnp.float32),
                               jnp.ones((2 * D,), jnp.float32)])
    in_w = rp['in_proj_w'] * q_scale[:, None]        # (3D, D)
    in_b = rp['in_proj_b'] * q_scale                 # (3D,)
    return {
        'ln1_w': rp['ln1_w'].reshape(1, D),
        'ln1_b': rp['ln1_b'].reshape(1, D),
        'ln2_w': rp['ln2_w'].reshape(1, D),
        'ln2_b': rp['ln2_b'].reshape(1, D),
        'in_proj_wT': in_w.T.astype(matmul_dtype),            # (D, 3D)
        'in_proj_b': in_b.reshape(1, 3 * D),                   # fp32
        'out_proj_wT': rp['out_proj_w'].T.astype(matmul_dtype),
        'out_proj_b': rp['out_proj_b'].reshape(1, D),
        'fc_wT': rp['fc_w'].T.astype(matmul_dtype),            # (D, 4D)
        'fc_b': rp['fc_b'].reshape(1, 4 * D),
        'proj_wT': rp['proj_w'].T.astype(matmul_dtype),        # (4D, D)
        'proj_b': rp['proj_b'].reshape(1, D),
    }


def stack_layer_params(per_layer):
    """Stack per-layer dicts into (L, ...) arrays for the layer-fused kernel."""
    return {name: jnp.stack([p[name] for p in per_layer], axis=0)
            for name in _PARAM_ORDER}


# --------------------------------------------------------------------------- #
# Pure-JAX fp32 reference (mirrors the PyTorch module)
# --------------------------------------------------------------------------- #
def _layernorm_ref(x, w, b, eps=1e-5):
    mu = jnp.mean(x, axis=-1, keepdims=True)
    var = jnp.mean(jnp.square(x - mu), axis=-1, keepdims=True)
    return (x - mu) * jax.lax.rsqrt(var + eps) * w + b


def resblock_ref(x, rp, n_head):
    B, S, D = x.shape
    Dh = D // n_head
    h = _layernorm_ref(x, rp['ln1_w'], rp['ln1_b'])
    qkv = jnp.einsum('bsd,ed->bse', h, rp['in_proj_w']) + rp['in_proj_b']
    q, k, v = jnp.split(qkv, 3, axis=-1)
    q = q * (float(Dh) ** -0.5)
    q = q.reshape(B, S, n_head, Dh).transpose(0, 2, 1, 3)
    k = k.reshape(B, S, n_head, Dh).transpose(0, 2, 1, 3)
    v = v.reshape(B, S, n_head, Dh).transpose(0, 2, 1, 3)
    s = jnp.einsum('bhqd,bhkd->bhqk', q, k)
    p = jax.nn.softmax(s, axis=-1)
    ctx = jnp.einsum('bhqk,bhkd->bhqd', p, v)
    ctx = ctx.transpose(0, 2, 1, 3).reshape(B, S, D)
    attn = jnp.einsum('bsd,ed->bse', ctx, rp['out_proj_w']) + rp['out_proj_b']
    x = x + attn
    h = _layernorm_ref(x, rp['ln2_w'], rp['ln2_b'])
    fc = jnp.einsum('bsd,ed->bse', h, rp['fc_w']) + rp['fc_b']
    fc = fc * jax.nn.sigmoid(1.702 * fc)
    pj = jnp.einsum('bse,de->bsd', fc, rp['proj_w']) + rp['proj_b']
    return x + pj


def transformer_ref(x_sbd, raw_params, n_head):
    x = jnp.transpose(x_sbd, (1, 0, 2))
    for rp in raw_params:
        x = resblock_ref(x, rp, n_head)
    return jnp.transpose(x, (1, 0, 2))


# --------------------------------------------------------------------------- #
if __name__ == "__main__":
    width, layers, heads = 32, 2, 4
    seq, batch = 8, 2

    key = jax.random.PRNGKey(0)
    k_x, k_p = jax.random.split(key)
    x = jax.random.normal(k_x, (seq, batch, width), jnp.float32)

    raw_params = init_raw_params(k_p, width, layers)
    per_layer = [prepare_layer_params(rp, heads) for rp in raw_params]
    stacked = stack_layer_params(per_layer)

    fwd = jax.jit(functools.partial(transformer_forward, n_head=heads))
    out = jax.block_until_ready(fwd(x, stacked))
    assert out.shape == (seq, batch, width), out.shape

    ref = transformer_ref(x, raw_params, heads)
    max_err = float(jnp.max(jnp.abs(out - ref)))
    assert max_err < 1e-2, f"max abs error vs fp32 reference: {max_err}"
    print("KERNEL_OK")
</pallas_src>

<mosaic_0001>
module attributes {stable_mosaic.version = 11 : i64} {
  func.func @transformer_kernel(%arg0: i32, %arg1: i32, %arg2: memref<2x8x32xf32, #tpu.memory_space<vmem>>, %arg3: memref<1x1x32xf32, #tpu.memory_space<vmem>>, %arg4: memref<1x1x32xf32, #tpu.memory_space<vmem>>, %arg5: memref<1x32x96xbf16, #tpu.memory_space<vmem>>, %arg6: memref<1x1x96xf32, #tpu.memory_space<vmem>>, %arg7: memref<1x32x32xbf16, #tpu.memory_space<vmem>>, %arg8: memref<1x1x32xf32, #tpu.memory_space<vmem>>, %arg9: memref<1x1x32xf32, #tpu.memory_space<vmem>>, %arg10: memref<1x1x32xf32, #tpu.memory_space<vmem>>, %arg11: memref<1x32x128xbf16, #tpu.memory_space<vmem>>, %arg12: memref<1x1x128xf32, #tpu.memory_space<vmem>>, %arg13: memref<1x128x32xbf16, #tpu.memory_space<vmem>>, %arg14: memref<1x1x32xf32, #tpu.memory_space<vmem>>, %arg15: memref<2x8x32xf32, #tpu.memory_space<vmem>>) attributes {dimension_semantics = [#tpu.dimension_semantics<parallel>, #tpu.dimension_semantics<arbitrary>], iteration_bounds = array<i64: 1, 2>, scalar_prefetch = 0 : i64, scratch_operands = 0 : i64, tpu.core_type = #tpu.core_type<tc>, window_params = [{transform_indices = @transform_0, window_bounds = array<i64: 2, 8, 32>}, {transform_indices = @transform_1, window_bounds = array<i64: 1, 1, 32>}, {transform_indices = @transform_2, window_bounds = array<i64: 1, 1, 32>}, {transform_indices = @transform_3, window_bounds = array<i64: 1, 32, 96>}, {transform_indices = @transform_4, window_bounds = array<i64: 1, 1, 96>}, {transform_indices = @transform_5, window_bounds = array<i64: 1, 32, 32>}, {transform_indices = @transform_6, window_bounds = array<i64: 1, 1, 32>}, {transform_indices = @transform_7, window_bounds = array<i64: 1, 1, 32>}, {transform_indices = @transform_8, window_bounds = array<i64: 1, 1, 32>}, {transform_indices = @transform_9, window_bounds = array<i64: 1, 32, 128>}, {transform_indices = @transform_10, window_bounds = array<i64: 1, 1, 128>}, {transform_indices = @transform_11, window_bounds = array<i64: 1, 128, 32>}, {transform_indices = @transform_12, window_bounds = array<i64: 1, 1, 32>}, {transform_indices = @transform_13, window_bounds = array<i64: 2, 8, 32>}]} {
    %c0_i32 = arith.constant 0 : i32
    %0 = arith.cmpi eq, %arg1, %c0_i32 : i32
    %1 = arith.extui %0 : i1 to i32
    %c0_i32_0 = arith.constant 0 : i32
    %2 = arith.cmpi ne, %1, %c0_i32_0 : i32
    scf.if %2 {
      %c0_65 = arith.constant 0 : index
      %c0_66 = arith.constant 0 : index
      %c0_67 = arith.constant 0 : index
      %158 = vector.load %arg2[%c0_65, %c0_66, %c0_67] : memref<2x8x32xf32, #tpu.memory_space<vmem>>, vector<2x8x32xf32>
      %c0_68 = arith.constant 0 : index
      %c0_69 = arith.constant 0 : index
      %c0_70 = arith.constant 0 : index
      %159 = vector.load %arg15[%c0_68, %c0_69, %c0_70] : memref<2x8x32xf32, #tpu.memory_space<vmem>>, vector<2x8x32xf32>
      tpu.vector_store %arg15[%c0_68, %c0_69, %c0_70], %158 {strides = array<i32>} : memref<2x8x32xf32, #tpu.memory_space<vmem>>, vector<2x8x32xf32>,
    } else {
    }
    %c0 = arith.constant 0 : index
    %c0_1 = arith.constant 0 : index
    %c0_2 = arith.constant 0 : index
    %3 = vector.load %arg15[%c0, %c0_1, %c0_2] : memref<2x8x32xf32, #tpu.memory_space<vmem>>, vector<2x8x32xf32>
    %4 = vector.shape_cast %3 : vector<2x8x32xf32> to vector<16x32xf32>
    %c0_3 = arith.constant 0 : index
    %c0_4 = arith.constant 0 : index
    %c0_5 = arith.constant 0 : index
    %5 = vector.load %arg3[%c0_3, %c0_4, %c0_5] : memref<1x1x32xf32, #tpu.memory_space<vmem>>, vector<1x1x32xf32>
    %6 = vector.shape_cast %5 : vector<1x1x32xf32> to vector<1x32xf32>
    %c0_6 = arith.constant 0 : index
    %c0_7 = arith.constant 0 : index
    %c0_8 = arith.constant 0 : index
    %7 = vector.load %arg4[%c0_6, %c0_7, %c0_8] : memref<1x1x32xf32, #tpu.memory_space<vmem>>, vector<1x1x32xf32>
    %8 = vector.shape_cast %7 : vector<1x1x32xf32> to vector<1x32xf32>
    %cst = arith.constant dense<0.000000e+00> : vector<16xf32>
    %9 = vector.multi_reduction <add>, %4, %cst [1] : vector<16x32xf32> to vector<16xf32>
    %10 = vector.shape_cast %9 : vector<16xf32> to vector<16x1xf32>
    %cst_9 = arith.constant 3.200000e+01 : f32
    %11 = vector.broadcast %cst_9 : f32 to vector<16x1xf32>
    %12 = arith.divf %10, %11 : vector<16x1xf32>
    %13 = vector.broadcast %12 : vector<16x1xf32> to vector<16x32xf32>
    %14 = arith.subf %4, %13 : vector<16x32xf32>
    %15 = arith.mulf %14, %14 : vector<16x32xf32>
    %cst_10 = arith.constant dense<0.000000e+00> : vector<16xf32>
    %16 = vector.multi_reduction <add>, %15, %cst_10 [1] : vector<16x32xf32> to vector<16xf32>
    %17 = vector.shape_cast %16 : vector<16xf32> to vector<16x1xf32>
    %cst_11 = arith.constant 3.200000e+01 : f32
    %18 = vector.broadcast %cst_11 : f32 to vector<16x1xf32>
    %19 = arith.divf %17, %18 : vector<16x1xf32>
    %20 = vector.broadcast %12 : vector<16x1xf32> to vector<16x32xf32>
    %21 = arith.subf %4, %20 : vector<16x32xf32>
    %cst_12 = arith.constant 9.99999974E-6 : f32
    %22 = vector.broadcast %cst_12 : f32 to vector<16x1xf32>
    %23 = arith.addf %19, %22 : vector<16x1xf32>
    %24 = math.rsqrt %23 : vector<16x1xf32>
    %25 = vector.broadcast %24 : vector<16x1xf32> to vector<16x32xf32>
    %26 = arith.mulf %21, %25 : vector<16x32xf32>
    %27 = vector.broadcast %6 : vector<1x32xf32> to vector<16x32xf32>
    %28 = arith.mulf %26, %27 : vector<16x32xf32>
    %29 = vector.broadcast %8 : vector<1x32xf32> to vector<16x32xf32>
    %30 = arith.addf %28, %29 : vector<16x32xf32>
    %31 = arith.truncf %30 : vector<16x32xf32> to vector<16x32xbf16>
    %c0_13 = arith.constant 0 : index
    %c0_14 = arith.constant 0 : index
    %c0_15 = arith.constant 0 : index
    %32 = vector.load %arg5[%c0_13, %c0_14, %c0_15] : memref<1x32x96xbf16, #tpu.memory_space<vmem>>, vector<1x32x96xbf16>
    %33 = vector.shape_cast %32 : vector<1x32x96xbf16> to vector<32x96xbf16>
    %cst_16 = arith.constant dense<0.000000e+00> : vector<16x96xf32>
    %34 = tpu.matmul %31, %33, %cst_16 {dimension_numbers = #tpu.dot_dimension_numbers<[1], [0], [0], [1], [0, 0, 1, 1], [], []>} : vector<16x32xbf16>, vector<32x96xbf16>, vector<16x96xf32> -> vector<16x96xf32>
    %c0_17 = arith.constant 0 : index
    %c0_18 = arith.constant 0 : index
    %c0_19 = arith.constant 0 : index
    %35 = vector.load %arg6[%c0_17, %c0_18, %c0_19] : memref<1x1x96xf32, #tpu.memory_space<vmem>>, vector<1x1x96xf32>
    %36 = vector.shape_cast %35 : vector<1x1x96xf32> to vector<1x96xf32>
    %37 = vector.broadcast %36 : vector<1x96xf32> to vector<16x96xf32>
    %38 = arith.addf %34, %37 : vector<16x96xf32>
    %39 = vector.extract_strided_slice %38 {offsets = [0, 0], sizes = [8, 96], strides = [1, 1]} : vector<16x96xf32> to vector<8x96xf32>
    %40 = vector.extract_strided_slice %39 {offsets = [0, 0], sizes = [8, 32], strides = [1, 1]} : vector<8x96xf32> to vector<8x32xf32>
    %41 = vector.shape_cast %40 : vector<8x32xf32> to vector<8x4x8xf32>
    %42 = tpu.transpose %41, [1, 0, 2] : vector<8x4x8xf32> -> vector<4x8x8xf32>
    %43 = vector.extract_strided_slice %39 {offsets = [0, 32], sizes = [8, 32], strides = [1, 1]} : vector<8x96xf32> to vector<8x32xf32>
    %44 = vector.shape_cast %43 : vector<8x32xf32> to vector<8x4x8xf32>
    %45 = tpu.transpose %44, [1, 0, 2] : vector<8x4x8xf32> -> vector<4x8x8xf32>
    %46 = vector.extract_strided_slice %39 {offsets = [0, 64], sizes = [8, 32], strides = [1, 1]} : vector<8x96xf32> to vector<8x32xf32>
    %47 = vector.shape_cast %46 : vector<8x32xf32> to vector<8x4x8xf32>
    %48 = tpu.transpose %47, [1, 0, 2] : vector<8x4x8xf32> -> vector<4x8x8xf32>
    %49 = arith.truncf %42 : vector<4x8x8xf32> to vector<4x8x8xbf16>
    %50 = arith.truncf %45 : vector<4x8x8xf32> to vector<4x8x8xbf16>
    "tpu.trace_start"() <{level = 10 : i32, message = "hqd,hkd->hqk"}> : () -> ()
    %cst_20 = arith.constant dense<0.000000e+00> : vector<4x8x8xf32>
    %51 = tpu.matmul %49, %50, %cst_20 {dimension_numbers = #tpu.dot_dimension_numbers<[2], [2], [1], [1], [0, 0, 0, 1, 1, 1], [0], [0]>} : vector<4x8x8xbf16>, vector<4x8x8xbf16>, vector<4x8x8xf32> -> vector<4x8x8xf32>
    "tpu.trace_stop"() : () -> ()
    %cst_21 = arith.constant dense<0xFF800000> : vector<4x8xf32>
    %52 = vector.multi_reduction <maximumf>, %51, %cst_21 [2] : vector<4x8x8xf32> to vector<4x8xf32>
    %53 = vector.shape_cast %52 : vector<4x8xf32> to vector<4x8x1xf32>
    %54 = vector.broadcast %53 : vector<4x8x1xf32> to vector<4x8x8xf32>
    %55 = arith.subf %51, %54 : vector<4x8x8xf32>
    %56 = math.exp %55 : vector<4x8x8xf32>
    %cst_22 = arith.constant dense<0.000000e+00> : vector<4x8xf32>
    %57 = vector.multi_reduction <add>, %56, %cst_22 [2] : vector<4x8x8xf32> to vector<4x8xf32>
    %58 = vector.shape_cast %57 : vector<4x8xf32> to vector<4x8x1xf32>
    %59 = tpu.reciprocal %58 {approx = true} : vector<4x8x1xf32> -> vector<4x8x1xf32>
    %60 = vector.broadcast %59 : vector<4x8x1xf32> to vector<4x8x8xf32>
    %61 = arith.mulf %56, %60 : vector<4x8x8xf32>
    %62 = arith.truncf %61 : vector<4x8x8xf32> to vector<4x8x8xbf16>
    %63 = arith.truncf %48 : vector<4x8x8xf32> to vector<4x8x8xbf16>
    "tpu.trace_start"() <{level = 10 : i32, message = "hqk,hkd->hqd"}> : () -> ()
    %cst_23 = arith.constant dense<0.000000e+00> : vector<4x8x8xf32>
    %64 = tpu.matmul %62, %63, %cst_23 {dimension_numbers = #tpu.dot_dimension_numbers<[2], [1], [1], [2], [0, 0, 0, 1, 1, 2], [0], [0]>} : vector<4x8x8xbf16>, vector<4x8x8xbf16>, vector<4x8x8xf32> -> vector<4x8x8xf32>
    "tpu.trace_stop"() : () -> ()
    %65 = tpu.transpose %64, [1, 0, 2] : vector<4x8x8xf32> -> vector<8x4x8xf32>
    %66 = vector.shape_cast %65 : vector<8x4x8xf32> to vector<8x32xf32>
    %67 = vector.extract_strided_slice %38 {offsets = [8, 0], sizes = [8, 96], strides = [1, 1]} : vector<16x96xf32> to vector<8x96xf32>
    %68 = vector.extract_strided_slice %67 {offsets = [0, 0], sizes = [8, 32], strides = [1, 1]} : vector<8x96xf32> to vector<8x32xf32>
    %69 = vector.shape_cast %68 : vector<8x32xf32> to vector<8x4x8xf32>
    %70 = tpu.transpose %69, [1, 0, 2] : vector<8x4x8xf32> -> vector<4x8x8xf32>
    %71 = vector.extract_strided_slice %67 {offsets = [0, 32], sizes = [8, 32], strides = [1, 1]} : vector<8x96xf32> to vector<8x32xf32>
    %72 = vector.shape_cast %71 : vector<8x32xf32> to vector<8x4x8xf32>
    %73 = tpu.transpose %72, [1, 0, 2] : vector<8x4x8xf32> -> vector<4x8x8xf32>
    %74 = vector.extract_strided_slice %67 {offsets = [0, 64], sizes = [8, 32], strides = [1, 1]} : vector<8x96xf32> to vector<8x32xf32>
    %75 = vector.shape_cast %74 : vector<8x32xf32> to vector<8x4x8xf32>
    %76 = tpu.transpose %75, [1, 0, 2] : vector<8x4x8xf32> -> vector<4x8x8xf32>
    %77 = arith.truncf %70 : vector<4x8x8xf32> to vector<4x8x8xbf16>
    %78 = arith.truncf %73 : vector<4x8x8xf32> to vector<4x8x8xbf16>
    "tpu.trace_start"() <{level = 10 : i32, message = "hqd,hkd->hqk"}> : () -> ()
    %cst_24 = arith.constant dense<0.000000e+00> : vector<4x8x8xf32>
    %79 = tpu.matmul %77, %78, %cst_24 {dimension_numbers = #tpu.dot_dimension_numbers<[2], [2], [1], [1], [0, 0, 0, 1, 1, 1], [0], [0]>} : vector<4x8x8xbf16>, vector<4x8x8xbf16>, vector<4x8x8xf32> -> vector<4x8x8xf32>
    "tpu.trace_stop"() : () -> ()
    %cst_25 = arith.constant dense<0xFF800000> : vector<4x8xf32>
    %80 = vector.multi_reduction <maximumf>, %79, %cst_25 [2] : vector<4x8x8xf32> to vector<4x8xf32>
    %81 = vector.shape_cast %80 : vector<4x8xf32> to vector<4x8x1xf32>
    %82 = vector.broadcast %81 : vector<4x8x1xf32> to vector<4x8x8xf32>
    %83 = arith.subf %79, %82 : vector<4x8x8xf32>
    %84 = math.exp %83 : vector<4x8x8xf32>
    %cst_26 = arith.constant dense<0.000000e+00> : vector<4x8xf32>
    %85 = vector.multi_reduction <add>, %84, %cst_26 [2] : vector<4x8x8xf32> to vector<4x8xf32>
    %86 = vector.shape_cast %85 : vector<4x8xf32> to vector<4x8x1xf32>
    %87 = tpu.reciprocal %86 {approx = true} : vector<4x8x1xf32> -> vector<4x8x1xf32>
    %88 = vector.broadcast %87 : vector<4x8x1xf32> to vector<4x8x8xf32>
    %89 = arith.mulf %84, %88 : vector<4x8x8xf32>
    %90 = arith.truncf %89 : vector<4x8x8xf32> to vector<4x8x8xbf16>
    %91 = arith.truncf %76 : vector<4x8x8xf32> to vector<4x8x8xbf16>
    "tpu.trace_start"() <{level = 10 : i32, message = "hqk,hkd->hqd"}> : () -> ()
    %cst_27 = arith.constant dense<0.000000e+00> : vector<4x8x8xf32>
    %92 = tpu.matmul %90, %91, %cst_27 {dimension_numbers = #tpu.dot_dimension_numbers<[2], [1], [1], [2], [0, 0, 0, 1, 1, 2], [0], [0]>} : vector<4x8x8xbf16>, vector<4x8x8xbf16>, vector<4x8x8xf32> -> vector<4x8x8xf32>
    "tpu.trace_stop"() : () -> ()
    %93 = tpu.transpose %92, [1, 0, 2] : vector<4x8x8xf32> -> vector<8x4x8xf32>
    %94 = vector.shape_cast %93 : vector<8x4x8xf32> to vector<8x32xf32>
    %95 = tpu.concatenate %66, %94 in 0 : vector<8x32xf32>, vector<8x32xf32> -> vector<16x32xf32>
    %96 = arith.truncf %95 : vector<16x32xf32> to vector<16x32xbf16>
    %c0_28 = arith.constant 0 : index
    %c0_29 = arith.constant 0 : index
    %c0_30 = arith.constant 0 : index
    %97 = vector.load %arg7[%c0_28, %c0_29, %c0_30] : memref<1x32x32xbf16, #tpu.memory_space<vmem>>, vector<1x32x32xbf16>
    %98 = vector.shape_cast %97 : vector<1x32x32xbf16> to vector<32x32xbf16>
    %cst_31 = arith.constant dense<0.000000e+00> : vector<16x32xf32>
    %99 = tpu.matmul %96, %98, %cst_31 {dimension_numbers = #tpu.dot_dimension_numbers<[1], [0], [0], [1], [0, 0, 1, 1], [], []>} : vector<16x32xbf16>, vector<32x32xbf16>, vector<16x32xf32> -> vector<16x32xf32>
    %c0_32 = arith.constant 0 : index
    %c0_33 = arith.constant 0 : index
    %c0_34 = arith.constant 0 : index
    %100 = vector.load %arg8[%c0_32, %c0_33, %c0_34] : memref<1x1x32xf32, #tpu.memory_space<vmem>>, vector<1x1x32xf32>
    %101 = vector.shape_cast %100 : vector<1x1x32xf32> to vector<1x32xf32>
    %102 = vector.broadcast %101 : vector<1x32xf32> to vector<16x32xf32>
    %103 = arith.addf %99, %102 : vector<16x32xf32>
    %104 = arith.addf %4, %103 : vector<16x32xf32>
    %c0_35 = arith.constant 0 : index
    %c0_36 = arith.constant 0 : index
    %c0_37 = arith.constant 0 : index
    %105 = vector.load %arg9[%c0_35, %c0_36, %c0_37] : memref<1x1x32xf32, #tpu.memory_space<vmem>>, vector<1x1x32xf32>
    %106 = vector.shape_cast %105 : vector<1x1x32xf32> to vector<1x32xf32>
    %c0_38 = arith.constant 0 : index
    %c0_39 = arith.constant 0 : index
    %c0_40 = arith.constant 0 : index
    %107 = vector.load %arg10[%c0_38, %c0_39, %c0_40] : memref<1x1x32xf32, #tpu.memory_space<vmem>>, vector<1x1x32xf32>
    %108 = vector.shape_cast %107 : vector<1x1x32xf32> to vector<1x32xf32>
    %cst_41 = arith.constant dense<0.000000e+00> : vector<16xf32>
    %109 = vector.multi_reduction <add>, %104, %cst_41 [1] : vector<16x32xf32> to vector<16xf32>
    %110 = vector.shape_cast %109 : vector<16xf32> to vector<16x1xf32>
    %cst_42 = arith.constant 3.200000e+01 : f32
    %111 = vector.broadcast %cst_42 : f32 to vector<16x1xf32>
    %112 = arith.divf %110, %111 : vector<16x1xf32>
    %113 = vector.broadcast %112 : vector<16x1xf32> to vector<16x32xf32>
    %114 = arith.subf %104, %113 : vector<16x32xf32>
    %115 = arith.mulf %114, %114 : vector<16x32xf32>
    %cst_43 = arith.constant dense<0.000000e+00> : vector<16xf32>
    %116 = vector.multi_reduction <add>, %115, %cst_43 [1] : vector<16x32xf32> to vector<16xf32>
    %117 = vector.shape_cast %116 : vector<16xf32> to vector<16x1xf32>
    %cst_44 = arith.constant 3.200000e+01 : f32
    %118 = vector.broadcast %cst_44 : f32 to vector<16x1xf32>
    %119 = arith.divf %117, %118 : vector<16x1xf32>
    %120 = vector.broadcast %112 : vector<16x1xf32> to vector<16x32xf32>
    %121 = arith.subf %104, %120 : vector<16x32xf32>
    %cst_45 = arith.constant 9.99999974E-6 : f32
    %122 = vector.broadcast %cst_45 : f32 to vector<16x1xf32>
    %123 = arith.addf %119, %122 : vector<16x1xf32>
    %124 = math.rsqrt %123 : vector<16x1xf32>
    %125 = vector.broadcast %124 : vector<16x1xf32> to vector<16x32xf32>
    %126 = arith.mulf %121, %125 : vector<16x32xf32>
    %127 = vector.broadcast %106 : vector<1x32xf32> to vector<16x32xf32>
    %128 = arith.mulf %126, %127 : vector<16x32xf32>
    %129 = vector.broadcast %108 : vector<1x32xf32> to vector<16x32xf32>
    %130 = arith.addf %128, %129 : vector<16x32xf32>
    %131 = arith.truncf %130 : vector<16x32xf32> to vector<16x32xbf16>
    %c0_46 = arith.constant 0 : index
    %c0_47 = arith.constant 0 : index
    %c0_48 = arith.constant 0 : index
    %132 = vector.load %arg11[%c0_46, %c0_47, %c0_48] : memref<1x32x128xbf16, #tpu.memory_space<vmem>>, vector<1x32x128xbf16>
    %133 = vector.shape_cast %132 : vector<1x32x128xbf16> to vector<32x128xbf16>
    %cst_49 = arith.constant dense<0.000000e+00> : vector<16x128xf32>
    %134 = tpu.matmul %131, %133, %cst_49 {dimension_numbers = #tpu.dot_dimension_numbers<[1], [0], [0], [1], [0, 0, 1, 1], [], []>} : vector<16x32xbf16>, vector<32x128xbf16>, vector<16x128xf32> -> vector<16x128xf32>
    %c0_50 = arith.constant 0 : index
    %c0_51 = arith.constant 0 : index
    %c0_52 = arith.constant 0 : index
    %135 = vector.load %arg12[%c0_50, %c0_51, %c0_52] : memref<1x1x128xf32, #tpu.memory_space<vmem>>, vector<1x1x128xf32>
    %136 = vector.shape_cast %135 : vector<1x1x128xf32> to vector<1x128xf32>
    %137 = vector.broadcast %136 : vector<1x128xf32> to vector<16x128xf32>
    %138 = arith.addf %134, %137 : vector<16x128xf32>
    %cst_53 = arith.constant 1.702000e+00 : f32
    %139 = vector.broadcast %cst_53 : f32 to vector<16x128xf32>
    %140 = arith.mulf %139, %138 : vector<16x128xf32>
    %141 = arith.negf %140 : vector<16x128xf32>
    %142 = math.exp %141 : vector<16x128xf32>
    %cst_54 = arith.constant 1.000000e+00 : f32
    %143 = vector.broadcast %cst_54 : f32 to vector<16x128xf32>
    %144 = arith.addf %143, %142 : vector<16x128xf32>
    %145 = arith.divf %143, %144 : vector<16x128xf32>
    %146 = arith.mulf %138, %145 : vector<16x128xf32>
    %147 = arith.truncf %146 : vector<16x128xf32> to vector<16x128xbf16>
    %c0_55 = arith.constant 0 : index
    %c0_56 = arith.constant 0 : index
    %c0_57 = arith.constant 0 : index
    %148 = vector.load %arg13[%c0_55, %c0_56, %c0_57] : memref<1x128x32xbf16, #tpu.memory_space<vmem>>, vector<1x128x32xbf16>
    %149 = vector.shape_cast %148 : vector<1x128x32xbf16> to vector<128x32xbf16>
    %cst_58 = arith.constant dense<0.000000e+00> : vector<16x32xf32>
    %150 = tpu.matmul %147, %149, %cst_58 {dimension_numbers = #tpu.dot_dimension_numbers<[1], [0], [0], [1], [0, 0, 1, 1], [], []>} : vector<16x128xbf16>, vector<128x32xbf16>, vector<16x32xf32> -> vector<16x32xf32>
    %c0_59 = arith.constant 0 : index
    %c0_60 = arith.constant 0 : index
    %c0_61 = arith.constant 0 : index
    %151 = vector.load %arg14[%c0_59, %c0_60, %c0_61] : memref<1x1x32xf32, #tpu.memory_space<vmem>>, vector<1x1x32xf32>
    %152 = vector.shape_cast %151 : vector<1x1x32xf32> to vector<1x32xf32>
    %153 = vector.broadcast %152 : vector<1x32xf32> to vector<16x32xf32>
    %154 = arith.addf %150, %153 : vector<16x32xf32>
    %155 = arith.addf %104, %154 : vector<16x32xf32>
    %156 = vector.shape_cast %155 : vector<16x32xf32> to vector<2x8x32xf32>
    %c0_62 = arith.constant 0 : index
    %c0_63 = arith.constant 0 : index
    %c0_64 = arith.constant 0 : index
    %157 = vector.load %arg15[%c0_62, %c0_63, %c0_64] : memref<2x8x32xf32, #tpu.memory_space<vmem>>, vector<2x8x32xf32>
    tpu.vector_store %arg15[%c0_62, %c0_63, %c0_64], %156 {strides = array<i32>} : memref<2x8x32xf32, #tpu.memory_space<vmem>>, vector<2x8x32xf32>,
    return
  }
  func.func @transform_0(%arg0: i32, %arg1: i32) -> (i32, i32, i32) {
    %c0_i32 = arith.constant 0 : i32
    %c0_i32_0 = arith.constant 0 : i32
    %c0_i32_1 = arith.constant 0 : i32
    return %arg0, %c0_i32, %c0_i32_0 : i32, i32, i32
  }
  func.func @transform_1(%arg0: i32, %arg1: i32) -> (i32, i32, i32) {
    %c0_i32 = arith.constant 0 : i32
    %c0_i32_0 = arith.constant 0 : i32
    %c0_i32_1 = arith.constant 0 : i32
    return %arg1, %c0_i32, %c0_i32_0 : i32, i32, i32
  }
  func.func @transform_2(%arg0: i32, %arg1: i32) -> (i32, i32, i32) {
    %c0_i32 = arith.constant 0 : i32
    %c0_i32_0 = arith.constant 0 : i32
    %c0_i32_1 = arith.constant 0 : i32
    return %arg1, %c0_i32, %c0_i32_0 : i32, i32, i32
  }
  func.func @transform_3(%arg0: i32, %arg1: i32) -> (i32, i32, i32) {
    %c0_i32 = arith.constant 0 : i32
    %c0_i32_0 = arith.constant 0 : i32
    %c0_i32_1 = arith.constant 0 : i32
    return %arg1, %c0_i32, %c0_i32_0 : i32, i32, i32
  }
  func.func @transform_4(%arg0: i32, %arg1: i32) -> (i32, i32, i32) {
    %c0_i32 = arith.constant 0 : i32
    %c0_i32_0 = arith.constant 0 : i32
    %c0_i32_1 = arith.constant 0 : i32
    return %arg1, %c0_i32, %c0_i32_0 : i32, i32, i32
  }
  func.func @transform_5(%arg0: i32, %arg1: i32) -> (i32, i32, i32) {
    %c0_i32 = arith.constant 0 : i32
    %c0_i32_0 = arith.constant 0 : i32
    %c0_i32_1 = arith.constant 0 : i32
    return %arg1, %c0_i32, %c0_i32_0 : i32, i32, i32
  }
  func.func @transform_6(%arg0: i32, %arg1: i32) -> (i32, i32, i32) {
    %c0_i32 = arith.constant 0 : i32
    %c0_i32_0 = arith.constant 0 : i32
    %c0_i32_1 = arith.constant 0 : i32
    return %arg1, %c0_i32, %c0_i32_0 : i32, i32, i32
  }
  func.func @transform_7(%arg0: i32, %arg1: i32) -> (i32, i32, i32) {
    %c0_i32 = arith.constant 0 : i32
    %c0_i32_0 = arith.constant 0 : i32
    %c0_i32_1 = arith.constant 0 : i32
    return %arg1, %c0_i32, %c0_i32_0 : i32, i32, i32
  }
  func.func @transform_8(%arg0: i32, %arg1: i32) -> (i32, i32, i32) {
    %c0_i32 = arith.constant 0 : i32
    %c0_i32_0 = arith.constant 0 : i32
    %c0_i32_1 = arith.constant 0 : i32
    return %arg1, %c0_i32, %c0_i32_0 : i32, i32, i32
  }
  func.func @transform_9(%arg0: i32, %arg1: i32) -> (i32, i32, i32) {
    %c0_i32 = arith.constant 0 : i32
    %c0_i32_0 = arith.constant 0 : i32
    %c0_i32_1 = arith.constant 0 : i32
    return %arg1, %c0_i32, %c0_i32_0 : i32, i32, i32
  }
  func.func @transform_10(%arg0: i32, %arg1: i32) -> (i32, i32, i32) {
    %c0_i32 = arith.constant 0 : i32
    %c0_i32_0 = arith.constant 0 : i32
    %c0_i32_1 = arith.constant 0 : i32
    return %arg1, %c0_i32, %c0_i32_0 : i32, i32, i32
  }
  func.func @transform_11(%arg0: i32, %arg1: i32) -> (i32, i32, i32) {
    %c0_i32 = arith.constant 0 : i32
    %c0_i32_0 = arith.constant 0 : i32
    %c0_i32_1 = arith.constant 0 : i32
    return %arg1, %c0_i32, %c0_i32_0 : i32, i32, i32
  }
  func.func @transform_12(%arg0: i32, %arg1: i32) -> (i32, i32, i32) {
    %c0_i32 = arith.constant 0 : i32
    %c0_i32_0 = arith.constant 0 : i32
    %c0_i32_1 = arith.constant 0 : i32
    return %arg1, %c0_i32, %c0_i32_0 : i32, i32, i32
  }
  func.func @transform_13(%arg0: i32, %arg1: i32) -> (i32, i32, i32) {
    %c0_i32 = arith.constant 0 : i32
    %c0_i32_0 = arith.constant 0 : i32
    %c0_i32_1 = arith.constant 0 : i32
    return %arg0, %c0_i32, %c0_i32_0 : i32, i32, i32
  }
}

</mosaic_0001>

<llo_original>
// kernel: transformer_forward.1
$region0: #{transformer_forward.1}
  #allocation0 [shape = 'u32[]', space=smem, size = 0x4, offset = 0x4, fixed_abs, tag = 'smem constant byte address 0x4 - core index']
  #allocation1 [shape = 'u32[144,128]{1,0:T(1,128)}', space=vmem, size = 0x12000, scoped, tag = 'internal scratch']
  %s0 = inlined_call_operand.vmem [shape: f32[2,8,32], index: 0, kind: input, shape index: {}, may-alias: {0,13}]
  %s1 = inlined_call_operand.vmem [shape: f32[2,1,32], index: 1, kind: input, shape index: {}]
  %s2 = inlined_call_operand.vmem [shape: f32[2,1,32], index: 2, kind: input, shape index: {}]
  %s3 = inlined_call_operand.vmem [shape: bf16[2,32,96], index: 3, kind: input, shape index: {}]
  %s4 = inlined_call_operand.vmem [shape: f32[2,1,96], index: 4, kind: input, shape index: {}]
  %s5 = inlined_call_operand.vmem [shape: bf16[2,32,32], index: 5, kind: input, shape index: {}]
  %s6 = inlined_call_operand.vmem [shape: f32[2,1,32], index: 6, kind: input, shape index: {}]
  %s7 = inlined_call_operand.vmem [shape: f32[2,1,32], index: 7, kind: input, shape index: {}]
  %s8 = inlined_call_operand.vmem [shape: f32[2,1,32], index: 8, kind: input, shape index: {}]
  %s9 = inlined_call_operand.vmem [shape: bf16[2,32,128], index: 9, kind: input, shape index: {}]
  %s10 = inlined_call_operand.vmem [shape: f32[2,1,128], index: 10, kind: input, shape index: {}]
  %s11 = inlined_call_operand.vmem [shape: bf16[2,128,32], index: 11, kind: input, shape index: {}]
  %s12 = inlined_call_operand.vmem [shape: f32[2,1,32], index: 12, kind: input, shape index: {}]
  %s13 = inlined_call_operand.vmem [shape: f32[2,8,32], index: 13, kind: output, shape index: {}, may-alias: {0,13}]
  %s14 = sld [smem:[#allocation0]]
  $region89: #{transformer_forward.1} parent=0
    _
  %s16 = ssub.s32 1, %s14
  %s17 = scalar_select 0, %s16, %s14
  loop: start=0, step=1, limit=4
  $region2: #{transformer_forward.1} parent=0 // loop_pre_header
    _
  $region3: #{transformer_forward.1} parent=0 // loop_header
    %s19 = sphi 0, %s23
    %p20 = scmp.ge.s32.totalorder %s19, 4
    %s26 = sphi 0, %s38
    %s27 = sphi 0, %s34
    %s28 = sphi 0, %s26
    %s29 = sphi 0, %s27
    %s30 = sphi 0, %s28
    %s31 = sphi 0, %s29
    %s41 = sphi 0, %s43
    %s44 = sphi 0, %s41
    %s45 = sphi 0, %s44
    %s61 = sphi 0, %s45
    %s67 = sphi 0, %s69
    %s70 = sphi 0, %s67
    %s71 = sphi 0, %s70
    %s87 = sphi 0, %s71
    %s93 = sphi 0, %s95
    %s96 = sphi 0, %s93
    %s97 = sphi 0, %s96
    %s113 = sphi 0, %s97
    %s119 = sphi 0, %s121
    %s122 = sphi 0, %s119
    %s123 = sphi 0, %s122
    %s139 = sphi 0, %s123
    %s145 = sphi 0, %s147
    %s148 = sphi 0, %s145
    %s149 = sphi 0, %s148
    %s165 = sphi 0, %s149
    %s171 = sphi 0, %s173
    %s174 = sphi 0, %s171
    %s175 = sphi 0, %s174
    %s191 = sphi 0, %s175
    %s197 = sphi 0, %s199
    %s200 = sphi 0, %s197
    %s201 = sphi 0, %s200
    %s217 = sphi 0, %s201
    %s223 = sphi 0, %s225
    %s226 = sphi 0, %s223
    %s227 = sphi 0, %s226
    %s243 = sphi 0, %s227
    %s249 = sphi 0, %s251
    %s252 = sphi 0, %s249
    %s253 = sphi 0, %s252
    %s269 = sphi 0, %s253
    %s275 = sphi 0, %s277
    %s278 = sphi 0, %s275
    %s279 = sphi 0, %s278
    %s295 = sphi 0, %s279
    %s301 = sphi 0, %s303
    %s304 = sphi 0, %s301
    %s305 = sphi 0, %s304
    %s321 = sphi 0, %s305
    %s327 = sphi 0, %s329
    %s330 = sphi 0, %s327
    %s331 = sphi 0, %s330
    %s347 = sphi 0, %s331
    %s353 = sphi 0, %s355
    %s356 = sphi 0, %s353
    %s357 = sphi 0, %s356
    %s373 = sphi 0, %s357
    %s379 = sphi 0, %s381
    %s382 = sphi 0, %s379
    %s383 = sphi 0, %s382
    %s399 = sphi 0, %s383
  $region4: #{transformer_forward.1} parent=0 // loop_header_branch
    %22 = sbr.rel (%p20) target = $region8
  $region5: #{transformer_forward.1} parent=0 // loop_body
    %s24 = ssub.s32 %s19, 1
    %s25 = ssub.s32 %s19, 2
    %s32 = sadd.s32 1, %s27
    %p33 = scmp.ge.s32.totalorder %s32, 2
    %s34 = scalar_select %p33, 0, %s32
    %s35 = sadd.s32 1, %s26
    %s36 = scalar_select %p33, %s35, %s26
    %p37 = scmp.ge.s32.totalorder %s36, 1
    %s38 = scalar_select %p37, 0, %s36
    %s39 = ssub.s32 %s26, %s38
    %p40 = scmp.eq.s32.totalorder %s39, 0
    %s42 = sadd.s32 %s41, 1
    %s43 = scalar_select %p40, %s41, %s42
    %p46 = pneg %p40
    %p47 = scmp.eq.s32.totalorder %s19, 1
    %p48 = por %p46, %p47
    %p49 = scmp.ne.s32.totalorder %s41, %s44
    %p50 = scmp.eq.s32.totalorder %s19, 0
    %p51 = por %p49, %p50
    %p52 = scmp.ne.s32.totalorder %s41, %s44
    %p53 = scmp.eq.s32.totalorder %s24, 1
    %p54 = por %p52, %p53
    %p55 = scmp.ne.s32.totalorder %s44, %s45
    %p56 = scmp.eq.s32.totalorder %s24, 0
    %p57 = por %p55, %p56
    %p58 = scmp.ne.s32.totalorder %s44, %s45
    %p59 = scmp.eq.s32.totalorder %s25, 1
    %p60 = por %p58, %p59
    %p62 = scmp.ne.s32.totalorder %s45, %s61
    %p63 = scmp.eq.s32.totalorder %s25, 0
    %p64 = por %p62, %p63
    %s65 = ssub.s32 %s27, %s34
    %p66 = scmp.eq.s32.totalorder %s65, 0
    %s68 = sadd.s32 %s67, 1
    %s69 = scalar_select %p66, %s67, %s68
    %p72 = pneg %p66
    %p73 = scmp.eq.s32.totalorder %s19, 1
    %p74 = por %p72, %p73
    %p75 = scmp.ne.s32.totalorder %s67, %s70
    %p76 = scmp.eq.s32.totalorder %s19, 0
    %p77 = por %p75, %p76
    %p78 = scmp.ne.s32.totalorder %s67, %s70
    %p79 = scmp.eq.s32.totalorder %s24, 1
    %p80 = por %p78, %p79
    %p81 = scmp.ne.s32.totalorder %s70, %s71
    %p82 = scmp.eq.s32.totalorder %s24, 0
    %p83 = por %p81, %p82
    %p84 = scmp.ne.s32.totalorder %s70, %s71
    %p85 = scmp.eq.s32.totalorder %s25, 1
    %p86 = por %p84, %p85
    %p88 = scmp.ne.s32.totalorder %s71, %s87
    %p89 = scmp.eq.s32.totalorder %s25, 0
    %p90 = por %p88, %p89
    %s91 = ssub.s32 %s27, %s34
    %p92 = scmp.eq.s32.totalorder %s91, 0
    %s94 = sadd.s32 %s93, 1
    %s95 = scalar_select %p92, %s93, %s94
    %p98 = pneg %p92
    %p99 = scmp.eq.s32.totalorder %s19, 1
    %p100 = por %p98, %p99
    %p101 = scmp.ne.s32.totalorder %s93, %s96
    %p102 = scmp.eq.s32.totalorder %s19, 0
    %p103 = por %p101, %p102
    %p104 = scmp.ne.s32.totalorder %s93, %s96
    %p105 = scmp.eq.s32.totalorder %s24, 1
    %p106 = por %p104, %p105
    %p107 = scmp.ne.s32.totalorder %s96, %s97
    %p108 = scmp.eq.s32.totalorder %s24, 0
    %p109 = por %p107, %p108
    %p110 = scmp.ne.s32.totalorder %s96, %s97
    %p111 = scmp.eq.s32.totalorder %s25, 1
    %p112 = por %p110, %p111
    %p114 = scmp.ne.s32.totalorder %s97, %s113
    %p115 = scmp.eq.s32.totalorder %s25, 0
    %p116 = por %p114, %p115
    %s117 = ssub.s32 %s27, %s34
    %p118 = scmp.eq.s32.totalorder %s117, 0
    %s120 = sadd.s32 %s119, 1
    %s121 = scalar_select %p118, %s119, %s120
    %p124 = pneg %p118
    %p125 = scmp.eq.s32.totalorder %s19, 1
    %p126 = por %p124, %p125
    %p127 = scmp.ne.s32.totalorder %s119, %s122
    %p128 = scmp.eq.s32.totalorder %s19, 0
    %p129 = por %p127, %p128
    %p130 = scmp.ne.s32.totalorder %s119, %s122
    %p131 = scmp.eq.s32.totalorder %s24, 1
    %p132 = por %p130, %p131
    %p133 = scmp.ne.s32.totalorder %s122, %s123
    %p134 = scmp.eq.s32.totalorder %s24, 0
    %p135 = por %p133, %p134
    %p136 = scmp.ne.s32.totalorder %s122, %s123
    %p137 = scmp.eq.s32.totalorder %s25, 1
    %p138 = por %p136, %p137
    %p140 = scmp.ne.s32.totalorder %s123, %s139
    %p141 = scmp.eq.s32.totalorder %s25, 0
    %p142 = por %p140, %p141
    %s143 = ssub.s32 %s27, %s34
    %p144 = scmp.eq.s32.totalorder %s143, 0
    %s146 = sadd.s32 %s145, 1
    %s147 = scalar_select %p144, %s145, %s146
    %p150 = pneg %p144
    %p151 = scmp.eq.s32.totalorder %s19, 1
    %p152 = por %p150, %p151
    %p153 = scmp.ne.s32.totalorder %s145, %s148
    %p154 = scmp.eq.s32.totalorder %s19, 0
    %p155 = por %p153, %p154
    %p156 = scmp.ne.s32.totalorder %s145, %s148
    %p157 = scmp.eq.s32.totalorder %s24, 1
    %p158 = por %p156, %p157
    %p159 = scmp.ne.s32.totalorder %s148, %s149
    %p160 = scmp.eq.s32.totalorder %s24, 0
    %p161 = por %p159, %p160
    %p162 = scmp.ne.s32.totalorder %s148, %s149
    %p163 = scmp.eq.s32.totalorder %s25, 1
    %p164 = por %p162, %p163
    %p166 = scmp.ne.s32.totalorder %s149, %s165
    %p167 = scmp.eq.s32.totalorder %s25, 0
    %p168 = por %p166, %p167
    %s169 = ssub.s32 %s27, %s34
    %p170 = scmp.eq.s32.totalorder %s169, 0
    %s172 = sadd.s32 %s171, 1
    %s173 = scalar_select %p170, %s171, %s172
    %p176 = pneg %p170
    %p177 = scmp.eq.s32.totalorder %s19, 1
    %p178 = por %p176, %p177
    %p179 = scmp.ne.s32.totalorder %s171, %s174
    %p180 = scmp.eq.s32.totalorder %s19, 0
    %p181 = por %p179, %p180
    %p182 = scmp.ne.s32.totalorder %s171, %s174
    %p183 = scmp.eq.s32.totalorder %s24, 1
    %p184 = por %p182, %p183
    %p185 = scmp.ne.s32.totalorder %s174, %s175
    %p186 = scmp.eq.s32.totalorder %s24, 0
    %p187 = por %p185, %p186
    %p188 = scmp.ne.s32.totalorder %s174, %s175
    %p189 = scmp.eq.s32.totalorder %s25, 1
    %p190 = por %p188, %p189
    %p192 = scmp.ne.s32.totalorder %s175, %s191
    %p193 = scmp.eq.s32.totalorder %s25, 0
    %p194 = por %p192, %p193
    %s195 = ssub.s32 %s27, %s34
    %p196 = scmp.eq.s32.totalorder %s195, 0
    %s198 = sadd.s32 %s197, 1
    %s199 = scalar_select %p196, %s197, %s198
    %p202 = pneg %p196
    %p203 = scmp.eq.s32.totalorder %s19, 1
    %p204 = por %p202, %p203
    %p205 = scmp.ne.s32.totalorder %s197, %s200
    %p206 = scmp.eq.s32.totalorder %s19, 0
    %p207 = por %p205, %p206
    %p208 = scmp.ne.s32.totalorder %s197, %s200
    %p209 = scmp.eq.s32.totalorder %s24, 1
    %p210 = por %p208, %p209
    %p211 = scmp.ne.s32.totalorder %s200, %s201
    %p212 = scmp.eq.s32.totalorder %s24, 0
    %p213 = por %p211, %p212
    %p214 = scmp.ne.s32.totalorder %s200, %s201
    %p215 = scmp.eq.s32.totalorder %s25, 1
    %p216 = por %p214, %p215
    %p218 = scmp.ne.s32.totalorder %s201, %s217
    %p219 = scmp.eq.s32.totalorder %s25, 0
    %p220 = por %p218, %p219
    %s221 = ssub.s32 %s27, %s34
    %p222 = scmp.eq.s32.totalorder %s221, 0
    %s224 = sadd.s32 %s223, 1
    %s225 = scalar_select %p222, %s223, %s224
    %p228 = pneg %p222
    %p229 = scmp.eq.s32.totalorder %s19, 1
    %p230 = por %p228, %p229
    %p231 = scmp.ne.s32.totalorder %s223, %s226
    %p232 = scmp.eq.s32.totalorder %s19, 0
    %p233 = por %p231, %p232
    %p234 = scmp.ne.s32.totalorder %s223, %s226
    %p235 = scmp.eq.s32.totalorder %s24, 1
    %p236 = por %p234, %p235
    %p237 = scmp.ne.s32.totalorder %s226, %s227
    %p238 = scmp.eq.s32.totalorder %s24, 0
    %p239 = por %p237, %p238
    %p240 = scmp.ne.s32.totalorder %s226, %s227
    %p241 = scmp.eq.s32.totalorder %s25, 1
    %p242 = por %p240, %p241
    %p244 = scmp.ne.s32.totalorder %s227, %s243
    %p245 = scmp.eq.s32.totalorder %s25, 0
    %p246 = por %p244, %p245
    %s247 = ssub.s32 %s27, %s34
    %p248 = scmp.eq.s32.totalorder %s247, 0
    %s250 = sadd.s32 %s249, 1
    %s251 = scalar_select %p248, %s249, %s250
    %p254 = pneg %p248
    %p255 = scmp.eq.s32.totalorder %s19, 1
    %p256 = por %p254, %p255
    %p257 = scmp.ne.s32.totalorder %s249, %s252
    %p258 = scmp.eq.s32.totalorder %s19, 0
    %p259 = por %p257, %p258
    %p260 = scmp.ne.s32.totalorder %s249, %s252
    %p261 = scmp.eq.s32.totalorder %s24, 1
    %p262 = por %p260, %p261
    %p263 = scmp.ne.s32.totalorder %s252, %s253
    %p264 = scmp.eq.s32.totalorder %s24, 0
    %p265 = por %p263, %p264
    %p266 = scmp.ne.s32.totalorder %s252, %s253
    %p267 = scmp.eq.s32.totalorder %s25, 1
    %p268 = por %p266, %p267
    %p270 = scmp.ne.s32.totalorder %s253, %s269
    %p271 = scmp.eq.s32.totalorder %s25, 0
    %p272 = por %p270, %p271
    %s273 = ssub.s32 %s27, %s34
    %p274 = scmp.eq.s32.totalorder %s273, 0
    %s276 = sadd.s32 %s275, 1
    %s277 = scalar_select %p274, %s275, %s276
    %p280 = pneg %p274
    %p281 = scmp.eq.s32.totalorder %s19, 1
    %p282 = por %p280, %p281
    %p283 = scmp.ne.s32.totalorder %s275, %s278
    %p284 = scmp.eq.s32.totalorder %s19, 0
    %p285 = por %p283, %p284
    %p286 = scmp.ne.s32.totalorder %s275, %s278
    %p287 = scmp.eq.s32.totalorder %s24, 1
    %p288 = por %p286, %p287
    %p289 = scmp.ne.s32.totalorder %s278, %s279
    %p290 = scmp.eq.s32.totalorder %s24, 0
    %p291 = por %p289, %p290
    %p292 = scmp.ne.s32.totalorder %s278, %s279
    %p293 = scmp.eq.s32.totalorder %s25, 1
    %p294 = por %p292, %p293
    %p296 = scmp.ne.s32.totalorder %s279, %s295
    %p297 = scmp.eq.s32.totalorder %s25, 0
    %p298 = por %p296, %p297
    %s299 = ssub.s32 %s27, %s34
    %p300 = scmp.eq.s32.totalorder %s299, 0
    %s302 = sadd.s32 %s301, 1
    %s303 = scalar_select %p300, %s301, %s302
    %p306 = pneg %p300
    %p307 = scmp.eq.s32.totalorder %s19, 1
    %p308 = por %p306, %p307
    %p309 = scmp.ne.s32.totalorder %s301, %s304
    %p310 = scmp.eq.s32.totalorder %s19, 0
    %p311 = por %p309, %p310
    %p312 = scmp.ne.s32.totalorder %s301, %s304
    %p313 = scmp.eq.s32.totalorder %s24, 1
    %p314 = por %p312, %p313
    %p315 = scmp.ne.s32.totalorder %s304, %s305
    %p316 = scmp.eq.s32.totalorder %s24, 0
    %p317 = por %p315, %p316
    %p318 = scmp.ne.s32.totalorder %s304, %s305
    %p319 = scmp.eq.s32.totalorder %s25, 1
    %p320 = por %p318, %p319
    %p322 = scmp.ne.s32.totalorder %s305, %s321
    %p323 = scmp.eq.s32.totalorder %s25, 0
    %p324 = por %p322, %p323
    %s325 = ssub.s32 %s27, %s34
    %p326 = scmp.eq.s32.totalorder %s325, 0
    %s328 = sadd.s32 %s327, 1
    %s329 = scalar_select %p326, %s327, %s328
    %p332 = pneg %p326
    %p333 = scmp.eq.s32.totalorder %s19, 1
    %p334 = por %p332, %p333
    %p335 = scmp.ne.s32.totalorder %s327, %s330
    %p336 = scmp.eq.s32.totalorder %s19, 0
    %p337 = por %p335, %p336
    %p338 = scmp.ne.s32.totalorder %s327, %s330
    %p339 = scmp.eq.s32.totalorder %s24, 1
    %p340 = por %p338, %p339
    %p341 = scmp.ne.s32.totalorder %s330, %s331
    %p342 = scmp.eq.s32.totalorder %s24, 0
    %p343 = por %p341, %p342
    %p344 = scmp.ne.s32.totalorder %s330, %s331
    %p345 = scmp.eq.s32.totalorder %s25, 1
    %p346 = por %p344, %p345
    %p348 = scmp.ne.s32.totalorder %s331, %s347
    %p349 = scmp.eq.s32.totalorder %s25, 0
    %p350 = por %p348, %p349
    %s351 = ssub.s32 %s27, %s34
    %p352 = scmp.eq.s32.totalorder %s351, 0
    %s354 = sadd.s32 %s353, 1
    %s355 = scalar_select %p352, %s353, %s354
    %p358 = pneg %p352
    %p359 = scmp.eq.s32.totalorder %s19, 1
    %p360 = por %p358, %p359
    %p361 = scmp.ne.s32.totalorder %s353, %s356
    %p362 = scmp.eq.s32.totalorder %s19, 0
    %p363 = por %p361, %p362
    %p364 = scmp.ne.s32.totalorder %s353, %s356
    %p365 = scmp.eq.s32.totalorder %s24, 1
    %p366 = por %p364, %p365
    %p367 = scmp.ne.s32.totalorder %s356, %s357
    %p368 = scmp.eq.s32.totalorder %s24, 0
    %p369 = por %p367, %p368
    %p370 = scmp.ne.s32.totalorder %s356, %s357
    %p371 = scmp.eq.s32.totalorder %s25, 1
    %p372 = por %p370, %p371
    %p374 = scmp.ne.s32.totalorder %s357, %s373
    %p375 = scmp.eq.s32.totalorder %s25, 0
    %p376 = por %p374, %p375
    %s377 = ssub.s32 %s26, %s38
    %p378 = scmp.eq.s32.totalorder %s377, 0
    %s380 = sadd.s32 %s379, 1
    %s381 = scalar_select %p378, %s379, %s380
    %p384 = pneg %p378
    %p385 = scmp.eq.s32.totalorder %s19, 1
    %p386 = por %p384, %p385
    %p387 = scmp.ne.s32.totalorder %s379, %s382
    %p388 = scmp.eq.s32.totalorder %s19, 0
    %p389 = por %p387, %p388
    %p390 = scmp.ne.s32.totalorder %s379, %s382
    %p391 = scmp.eq.s32.totalorder %s24, 1
    %p392 = por %p390, %p391
    %p393 = scmp.ne.s32.totalorder %s382, %s383
    %p394 = scmp.eq.s32.totalorder %s24, 0
    %p395 = por %p393, %p394
    %p396 = scmp.ne.s32.totalorder %s382, %s383
    %p397 = scmp.eq.s32.totalorder %s25, 1
    %p398 = por %p396, %p397
    %p400 = scmp.ne.s32.totalorder %s383, %s399
    %p401 = scmp.eq.s32.totalorder %s25, 0
    %p402 = por %p400, %p401
    %p403 = scmp.le.s32.totalorder 1, %s19
    %p404 = scmp.lt.s32.totalorder %s19, 3
    %p405 = pnand %p403, %p404
    %p406 = pneg %p405
    // Predicated region
    $region9: #{transformer_forward.1} parent=5 // pred_check
      _
    $region10: #{transformer_forward.1} parent=5 // pred_check_branch
      %408 = sbr.rel (%p405) target = $region12
    $region11: #{transformer_forward.1} parent=5 // pred_region
      %s409 = ssub.s32 %s19, 1
      // Predicated region
      $region13: #{transformer_forward.1} parent=11 // pred_check
        %p410 = pneg %p57
      $region14: #{transformer_forward.1} parent=11 // pred_check_branch
        %412 = sbr.rel (%p410) target = $region16
      $region15: #{transformer_forward.1} parent=11 // pred_region
        %s413 = smul.u32 2, %s28
        %p414 = scmp.lt.s32.totalorder %s413, 1
        %s415 = scalar_select %p414, %s413, 1
        %s416 = smul.addr %s415, 8
        %s417 = scalar_lea.vmem %s0, %s416
        %s418 = smul.u32 2, %s28
      $region16: #{transformer_forward.1} parent=11 // pred_fallthru
        _
    $region12: #{transformer_forward.1} parent=5 // pred_fallthru
      _
    %p419 = scmp.lt.s32.totalorder %s19, 2
    // Predicated region
    $region17: #{transformer_forward.1} parent=5 // pred_check
      %p420 = pneg %p419
    $region18: #{transformer_forward.1} parent=5 // pred_check_branch
      %422 = sbr.rel (%p420) target = $region20
    $region19: #{transformer_forward.1} parent=5 // pred_region
      // Predicated region
      $region21: #{transformer_forward.1} parent=19 // pred_check
        %p423 = pneg %p77
      $region22: #{transformer_forward.1} parent=19 // pred_check_branch
        %425 = sbr.rel (%p423) target = $region24
      $region23: #{transformer_forward.1} parent=19 // pred_region
        %p426 = scmp.lt.s32.totalorder %s27, 1
        %s427 = scalar_select %p426, %s27, 1
        %s428 = scalar_lea.vmem %s1, %s427
      $region24: #{transformer_forward.1} parent=19 // pred_fallthru
        _
      // Predicated region
      $region25: #{transformer_forward.1} parent=19 // pred_check
        %p429 = pneg %p103
      $region26: #{transformer_forward.1} parent=19 // pred_check_branch
        %431 = sbr.rel (%p429) target = $region28
      $region27: #{transformer_forward.1} parent=19 // pred_region
        %p432 = scmp.lt.s32.totalorder %s27, 1
        %s433 = scalar_select %p432, %s27, 1
        %s434 = scalar_lea.vmem %s2, %s433
      $region28: #{transformer_forward.1} parent=19 // pred_fallthru
        _
      // Predicated region
      $region29: #{transformer_forward.1} parent=19 // pred_check
        %p435 = pneg %p129
      $region30: #{transformer_forward.1} parent=19 // pred_check_branch
        %437 = sbr.rel (%p435) target = $region32
      $region31: #{transformer_forward.1} parent=19 // pred_region
        %p438 = scmp.lt.s32.totalorder %s27, 1
        %s439 = scalar_select %p438, %s27, 1
        %s440 = smul.addr %s439, 4
        %s441 = smul.addr %s440, 4
        %s442 = scalar_lea.vmem %s3, %s441
      $region32: #{transformer_forward.1} parent=19 // pred_fallthru
        _
      // Predicated region
      $region33: #{transformer_forward.1} parent=19 // pred_check
        %p443 = pneg %p155
      $region34: #{transformer_forward.1} parent=19 // pred_check_branch
        %445 = sbr.rel (%p443) target = $region36
      $region35: #{transformer_forward.1} parent=19 // pred_region
        %p446 = scmp.lt.s32.totalorder %s27, 1
        %s447 = scalar_select %p446, %s27, 1
        %s448 = scalar_lea.vmem %s4, %s447
      $region36: #{transformer_forward.1} parent=19 // pred_fallthru
        _
      // Predicated region
      $region37: #{transformer_forward.1} parent=19 // pred_check
        %p449 = pneg %p181
      $region38: #{transformer_forward.1} parent=19 // pred_check_branch
        %451 = sbr.rel (%p449) target = $region40
      $region39: #{transformer_forward.1} parent=19 // pred_region
        %p452 = scmp.lt.s32.totalorder %s27, 1
        %s453 = scalar_select %p452, %s27, 1
        %s454 = smul.addr %s453, 4
        %s455 = smul.addr %s454, 4
        %s456 = scalar_lea.vmem %s5, %s455
      $region40: #{transformer_forward.1} parent=19 // pred_fallthru
        _
      // Predicated region
      $region41: #{transformer_forward.1} parent=19 // pred_check
        %p457 = pneg %p207
      $region42: #{transformer_forward.1} parent=19 // pred_check_branch
        %459 = sbr.rel (%p457) target = $region44
      $region43: #{transformer_forward.1} parent=19 // pred_region
        %p460 = scmp.lt.s32.totalorder %s27, 1
        %s461 = scalar_select %p460, %s27, 1
        %s462 = scalar_lea.vmem %s6, %s461
      $region44: #{transformer_forward.1} parent=19 // pred_fallthru
        _
      // Predicated region
      $region45: #{transformer_forward.1} parent=19 // pred_check
        %p463 = pneg %p233
      $region46: #{transformer_forward.1} parent=19 // pred_check_branch
        %465 = sbr.rel (%p463) target = $region48
      $region47: #{transformer_forward.1} parent=19 // pred_region
        %p466 = scmp.lt.s32.totalorder %s27, 1
        %s467 = scalar_select %p466, %s27, 1
        %s468 = scalar_lea.vmem %s7, %s467
      $region48: #{transformer_forward.1} parent=19 // pred_fallthru
        _
      // Predicated region
      $region49: #{transformer_forward.1} parent=19 // pred_check
        %p469 = pneg %p259
      $region50: #{transformer_forward.1} parent=19 // pred_check_branch
        %471 = sbr.rel (%p469) target = $region52
      $region51: #{transformer_forward.1} parent=19 // pred_region
        %p472 = scmp.lt.s32.totalorder %s27, 1
        %s473 = scalar_select %p472, %s27, 1
        %s474 = scalar_lea.vmem %s8, %s473
      $region52: #{transformer_forward.1} parent=19 // pred_fallthru
        _
      // Predicated region
      $region53: #{transformer_forward.1} parent=19 // pred_check
        %p475 = pneg %p285
      $region54: #{transformer_forward.1} parent=19 // pred_check_branch
        %477 = sbr.rel (%p475) target = $region56
      $region55: #{transformer_forward.1} parent=19 // pred_region
        %p478 = scmp.lt.s32.totalorder %s27, 1
        %s479 = scalar_select %p478, %s27, 1
        %s480 = smul.addr %s479, 4
        %s481 = smul.addr %s480, 4
        %s482 = scalar_lea.vmem %s9, %s481
      $region56: #{transformer_forward.1} parent=19 // pred_fallthru
        _
      // Predicated region
      $region57: #{transformer_forward.1} parent=19 // pred_check
        %p483 = pneg %p311
      $region58: #{transformer_forward.1} parent=19 // pred_check_branch
        %485 = sbr.rel (%p483) target = $region60
      $region59: #{transformer_forward.1} parent=19 // pred_region
        %p486 = scmp.lt.s32.totalorder %s27, 1
        %s487 = scalar_select %p486, %s27, 1
        %s488 = scalar_lea.vmem %s10, %s487
      $region60: #{transformer_forward.1} parent=19 // pred_fallthru
        _
      // Predicated region
      $region61: #{transformer_forward.1} parent=19 // pred_check
        %p489 = pneg %p337
      $region62: #{transformer_forward.1} parent=19 // pred_check_branch
        %491 = sbr.rel (%p489) target = $region64
      $region63: #{transformer_forward.1} parent=19 // pred_region
        %p492 = scmp.lt.s32.totalorder %s27, 1
        %s493 = scalar_select %p492, %s27, 1
        %s494 = smul.addr %s493, 16
        %s495 = smul.addr %s494, 4
        %s496 = scalar_lea.vmem %s11, %s495
      $region64: #{transformer_forward.1} parent=19 // pred_fallthru
        _
      // Predicated region
      $region65: #{transformer_forward.1} parent=19 // pred_check
        %p497 = pneg %p363
      $region66: #{transformer_forward.1} parent=19 // pred_check_branch
        %499 = sbr.rel (%p497) target = $region68
      $region67: #{transformer_forward.1} parent=19 // pred_region
        %p500 = scmp.lt.s32.totalorder %s27, 1
        %s501 = scalar_select %p500, %s27, 1
        %s502 = scalar_lea.vmem %s12, %s501
      $region68: #{transformer_forward.1} parent=19 // pred_fallthru
        _
    $region20: #{transformer_forward.1} parent=5 // pred_fallthru
      _
    %p503 = scmp.le.s32.totalorder 1, %s19
    %p504 = scmp.lt.s32.totalorder %s19, 3
    %p505 = pnand %p503, %p504
    %p506 = pneg %p505
    // Predicated region
    $region69: #{transformer_forward.1} parent=5 // pred_check
      _
    $region70: #{transformer_forward.1} parent=5 // pred_check_branch
      %508 = sbr.rel (%p505) target = $region72
    $region71: #{transformer_forward.1} parent=5 // pred_region
      %s509 = ssub.s32 %s19, 1
      %s510 = smul.u32 2, %s28
      %p511 = scmp.lt.s32.totalorder %s510, 1
      %s512 = scalar_select %p511, %s510, 1
      %s513 = smul.addr %s512, 8
      %s514 = scalar_lea.vmem %s0, %s513
      %p515 = pneg %p57
      %p516 = pneg %p54
      %p517 = scmp.lt.s32.totalorder %s29, 1
      %s518 = scalar_select %p517, %s29, 1
      %s519 = scalar_lea.vmem %s1, %s518
      %p520 = pneg %p83
      %p521 = pneg %p80
      %p522 = scmp.lt.s32.totalorder %s29, 1
      %s523 = scalar_select %p522, %s29, 1
      %s524 = scalar_lea.vmem %s2, %s523
      %p525 = pneg %p109
      %p526 = pneg %p106
      %p527 = scmp.lt.s32.totalorder %s29, 1
      %s528 = scalar_select %p527, %s29, 1
      %s529 = smul.addr %s528, 4
      %s530 = smul.addr %s529, 4
      %s531 = scalar_lea.vmem %s3, %s530
      %p532 = pneg %p135
      %p533 = pneg %p132
      %p534 = scmp.lt.s32.totalorder %s29, 1
      %s535 = scalar_select %p534, %s29, 1
      %s536 = scalar_lea.vmem %s4, %s535
      %p537 = pneg %p161
      %p538 = pneg %p158
      %p539 = scmp.lt.s32.totalorder %s29, 1
      %s540 = scalar_select %p539, %s29, 1
      %s541 = smul.addr %s540, 4
      %s542 = smul.addr %s541, 4
      %s543 = scalar_lea.vmem %s5, %s542
      %p544 = pneg %p187
      %p545 = pneg %p184
      %p546 = scmp.lt.s32.totalorder %s29, 1
      %s547 = scalar_select %p546, %s29, 1
      %s548 = scalar_lea.vmem %s6, %s547
      %p549 = pneg %p213
      %p550 = pneg %p210
      %p551 = scmp.lt.s32.totalorder %s29, 1
      %s552 = scalar_select %p551, %s29, 1
      %s553 = scalar_lea.vmem %s7, %s552
      %p554 = pneg %p239
      %p555 = pneg %p236
      %p556 = scmp.lt.s32.totalorder %s29, 1
      %s557 = scalar_select %p556, %s29, 1
      %s558 = scalar_lea.vmem %s8, %s557
      %p559 = pneg %p265
      %p560 = pneg %p262
      %p561 = scmp.lt.s32.totalorder %s29, 1
      %s562 = scalar_select %p561, %s29, 1
      %s563 = smul.addr %s562, 4
      %s564 = smul.addr %s563, 4
      %s565 = scalar_lea.vmem %s9, %s564
      %p566 = pneg %p291
      %p567 = pneg %p288
      %p568 = scmp.lt.s32.totalorder %s29, 1
      %s569 = scalar_select %p568, %s29, 1
      %s570 = scalar_lea.vmem %s10, %s569
      %p571 = pneg %p317
      %p572 = pneg %p314
      %p573 = scmp.lt.s32.totalorder %s29, 1
      %s574 = scalar_select %p573, %s29, 1
      %s575 = smul.addr %s574, 16
      %s576 = smul.addr %s575, 4
      %s577 = scalar_lea.vmem %s11, %s576
      %p578 = pneg %p343
      %p579 = pneg %p340
      %p580 = scmp.lt.s32.totalorder %s29, 1
      %s581 = scalar_select %p580, %s29, 1
      %s582 = scalar_lea.vmem %s12, %s581
      %p583 = pneg %p369
      %p584 = pneg %p366
      %p585 = pneg %p395
      %p586 = pneg %p392
      %s587 = smul.u32 2, %s28
      %p588 = scmp.lt.s32.totalorder %s587, 1
      %s589 = scalar_select %p588, %s587, 1
      %s590 = smul.addr %s589, 8
      %s591 = scalar_lea.vmem %s13, %s590
      %s592 = smul.u32 2, %s28
      %p593 = scmp.lt.s32.totalorder %s592, 1
      %s594 = scalar_select %p593, %s592, 1
      %s595 = smul.addr %s594, 8
      %s596 = scalar_lea.vmem %s0, %s595
      %s597 = smul.u32 2, %s28
      %p598 = scmp.lt.s32.totalorder %s29, 1
      %s599 = scalar_select %p598, %s29, 1
      %s600 = scalar_lea.vmem %s1, %s599
      %p601 = scmp.lt.s32.totalorder %s29, 1
      %s602 = scalar_select %p601, %s29, 1
      %s603 = scalar_lea.vmem %s2, %s602
      %p604 = scmp.lt.s32.totalorder %s29, 1
      %s605 = scalar_select %p604, %s29, 1
      %s606 = smul.addr %s605, 4
      %s607 = smul.addr %s606, 4
      %s608 = scalar_lea.vmem %s3, %s607
      %p609 = scmp.lt.s32.totalorder %s29, 1
      %s610 = scalar_select %p609, %s29, 1
      %s611 = scalar_lea.vmem %s4, %s610
      %p612 = scmp.lt.s32.totalorder %s29, 1
      %s613 = scalar_select %p612, %s29, 1
      %s614 = smul.addr %s613, 4
      %s615 = smul.addr %s614, 4
      %s616 = scalar_lea.vmem %s5, %s615
      %p617 = scmp.lt.s32.totalorder %s29, 1
      %s618 = scalar_select %p617, %s29, 1
      %s619 = scalar_lea.vmem %s6, %s618
      %p620 = scmp.lt.s32.totalorder %s29, 1
      %s621 = scalar_select %p620, %s29, 1
      %s622 = scalar_lea.vmem %s7, %s621
      %p623 = scmp.lt.s32.totalorder %s29, 1
      %s624 = scalar_select %p623, %s29, 1
      %s625 = scalar_lea.vmem %s8, %s624
      %p626 = scmp.lt.s32.totalorder %s29, 1
      %s627 = scalar_select %p626, %s29, 1
      %s628 = smul.addr %s627, 4
      %s629 = smul.addr %s628, 4
      %s630 = scalar_lea.vmem %s9, %s629
      %p631 = scmp.lt.s32.totalorder %s29, 1
      %s632 = scalar_select %p631, %s29, 1
      %s633 = scalar_lea.vmem %s10, %s632
      %p634 = scmp.lt.s32.totalorder %s29, 1
      %s635 = scalar_select %p634, %s29, 1
      %s636 = smul.addr %s635, 16
      %s637 = smul.addr %s636, 4
      %s638 = scalar_lea.vmem %s11, %s637
      %p639 = scmp.lt.s32.totalorder %s29, 1
      %s640 = scalar_select %p639, %s29, 1
      %s641 = scalar_lea.vmem %s12, %s640
      %s642 = smul.u32 2, %s28
      %p643 = scmp.lt.s32.totalorder %s642, 1
      %s644 = scalar_select %p643, %s642, 1
      %s645 = smul.addr %s644, 8
      %s646 = scalar_lea.vmem %s13, %s645
      %s647 = smul.u32 2, %s28
      %p649 = scmp.eq.s32.totalorder %s29, 0
      // Predicated region
      $region73: #{transformer_forward.1} parent=71 // pred_check
        %p650 = pneg %p649
      $region74: #{transformer_forward.1} parent=71 // pred_check_branch
        %652 = sbr.rel (%p650) target = $region76
      $region75: #{transformer_forward.1} parent=71 // pred_region
        %v653 = vld [vmem:[%s596] sm:$0xff]
        %v654 = vld [vmem:[%s596 + $0x8] sm:$0xff]
        %vm655 = vcmask 261120
        %656 = vst.msk [vmem:[%s646] sm:$0xff] %vm655, %v653
        %657 = vst.msk [vmem:[%s646 + $0x8] sm:$0xff] %vm655, %v654
      $region76: #{transformer_forward.1} parent=71 // pred_fallthru
        _
      %v658 = vld [vmem:[%s646] sm:$0xff]
      %v659 = vld [vmem:[%s646 + $0x8] sm:$0xff]
      %v660 = vld [vmem:[%s600] sm:$0x1]
      %v661 = vld [vmem:[%s603] sm:$0x1]
      %vm662 = vcmask 261120
      %v663 = vsel %vm662, %v658, 0.0
      %664 = vadd.xlane.f32.xlu0 %v663
      %v665 = vpop.xlane.xlu0 %664
      %v666 = vsel %vm662, %v659, 0.0
      %667 = vadd.xlane.f32.xlu0 %v666
      %v668 = vpop.xlane.xlu0 %667
      %v669 = vrcp.pop 32.0
      %v670 = vmul.f32 %v665, %v669
      %v671 = vmul.f32 %v668, %v669
      %v672 = vsub.f32 %v658, %v670
      %v673 = vsub.f32 %v659, %v671
      %v674 = vmul.f32 %v672, %v672
      %v675 = vmul.f32 %v673, %v673
      %v676 = vsel %vm662, %v674, 0.0
      %677 = vadd.xlane.f32.xlu0 %v676
      %v678 = vpop.xlane.xlu0 %677
      %v679 = vsel %vm662, %v675, 0.0
      %680 = vadd.xlane.f32.xlu0 %v679
      %v681 = vpop.xlane.xlu0 %680
      %v682 = vmul.f32 %v678, %v669
      %v683 = vmul.f32 %v681, %v669
      %v684 = vadd.f32 %v682, 1e-05
      %v685 = vadd.f32 %v683, 1e-05
      %v686 = vrsqrt.pop %v684
      %v687 = vrsqrt.pop %v685
      %v688 = vmul.f32 %v672, %v686
      %v689 = vmul.f32 %v673, %v687
      %v691 = vlaneseq
      %v692 = vshrl.u32 %v691, 7
      %v693 = vsub.s32 0, %v692
      %v694 = vrot.slane %v660, %v693
      %v696 = vmul.f32 %v688, %v694
      %v697 = vmul.f32 %v689, %v694
      %v699 = vlaneseq
      %v700 = vshrl.u32 %v699, 7
      %v701 = vsub.s32 0, %v700
      %v702 = vrot.slane %v661, %v701
      %v704 = vadd.f32 %v696, %v702
      %v705 = vadd.f32 %v697, %v702
      %v706 = vpack.c.bf16 %v705, %v704
      %v707 = vld [vmem:[%s608] sm:$0xf]
      %v708 = vld [vmem:[%s608 + $0x4] sm:$0xf]
      %v709 = vld [vmem:[%s608 + $0x8] sm:$0xf]
      %v710 = vld [vmem:[%s608 + $0xc] sm:$0xf]
      %v711 = vld [vmem:[%s611] sm:$0x1]
      %v713 = vlaneseq
      %v714 = vshrl.u32 %v713, 7
      %v715 = vsub.s32 0, %v714
      %v716 = vrot.slane %v711, %v715
      %v722 = vunpack.c.l.b16 %v707
      %v723 = vunpack.c.l.b16 %v708
      %v724 = vunpack.c.l.b16 %v709
      %v725 = vunpack.c.l.b16 %v710
      %v726 = vpack.c.b16 %v723, %v722
      %v727 = vpack.c.b16 %v725, %v724
      %v731 = vsel %vm662, %v706, 0
      %733 = vmatprep.subr.bf16.mxu0 0
      %734 = vmatpush1.bf16.msra.mxu0 %v726
      %735 = vmatprep.subr.bf16.mxu0 0
      %736 = vmatpush1.bf16.msra.mxu0 %v727
      %737 = vmatprep.subr.bf16.mxu0 0
      %738 = vmatpush1.bf16.msra.mxu0 0
      %739 = vmatprep.subr.bf16.mxu0 0
      %740 = vmatpush1.bf16.msra.mxu0 0
      %741 = vmatprep.subr.bf16.mxu0 0
      %742 = vmatpush1.bf16.msra.mxu0 0
      %743 = vmatprep.subr.bf16.mxu0 0
      %744 = vmatpush1.bf16.msra.mxu0 0
      %745 = vmatprep.subr.bf16.mxu0 0
      %746 = vmatpush1.bf16.msra.mxu0 0
      %747 = vmatprep.subr.bf16.mxu0 0
      %748 = vmatpush1.bf16.msra.mxu0 0
      %749 = vmatprep.subr.bf16.mxu0 0
      %750 = vmatpush1.bf16.msra.mxu0 0
      %751 = vmatprep.subr.bf16.mxu0 0
      %752 = vmatpush1.bf16.msra.mxu0 0
      %753 = vmatprep.subr.bf16.mxu0 0
      %754 = vmatpush1.bf16.msra.mxu0 0
      %755 = vmatprep.subr.bf16.mxu0 0
      %756 = vmatpush1.bf16.msra.mxu0 0
      %757 = vmatprep.subr.bf16.mxu0 0
      %758 = vmatpush1.bf16.msra.mxu0 0
      %759 = vmatprep.subr.bf16.mxu0 0
      %760 = vmatpush1.bf16.msra.mxu0 0
      %761 = vmatprep.subr.bf16.mxu0 0
      %762 = vmatpush1.bf16.msra.mxu0 0
      %763 = vmatprep.subr.bf16.mxu0 0
      %764 = vmatpush1.bf16.msra.mxu0 0
      %765 = vmatprep.mubr.bf16.mxu0 0
      %766 = vmatmul.mubr.bf16.gmra.mrb[0].mxu0 %v731
      %v767 = vpop.f32.mrb[0].mxu0
      %v768 = vadd.f32 %v716, %v767
      %v769 = vpop.f32.mrb[0].mxu0
      %v770 = vpop.f32.mrb[0].mxu0
      %v771 = vadd.f32 %v716, %v770
      %v772 = vpop.f32.mrb[0].mxu0
      %773 = vdwg.mxu0
      %775 = vrot.lane.b32.xlu0 %v768, 120
      %v776 = vpop.permute.xlu0 %775
      %778 = vrot.lane.b32.xlu0 %v768, 112
      %v779 = vpop.permute.xlu0 %778
      %781 = vrot.lane.b32.xlu0 %v768, 104
      %v782 = vpop.permute.xlu0 %781
      %v784 = vcombine.low %v768, %v779
      %v785 = vcombine.high %v768, %v779
      %v787 = vunpack.c.l.s4 1983009808
      %v788 = vunpack.c.0.s8 %v787
      %v789 = vlaneseq
      %v790 = vshrl.u32 %v789, 7
      %v791 = vsub.s32 %v788, %v790
      %v792 = vrot.slane %v784, %v791
      %v794 = vunpack.c.l.s4 1983009808
      %v795 = vunpack.c.0.s8 %v794
      %v796 = vlaneseq
      %v797 = vshrl.u32 %v796, 7
      %v798 = vsub.s32 %v795, %v797
      %v799 = vrot.slane %v785, %v798
      %v800 = vcombine.low %v776, %v782
      %v801 = vcombine.high %v776, %v782
      %v803 = vunpack.c.l.s4 1983009808
      %v804 = vunpack.c.0.s8 %v803
      %v805 = vlaneseq
      %v806 = vshrl.u32 %v805, 7
      %v807 = vsub.s32 %v804, %v806
      %v808 = vrot.slane %v800, %v807
      %v810 = vunpack.c.l.s4 1983009808
      %v811 = vunpack.c.0.s8 %v810
      %v812 = vlaneseq
      %v813 = vshrl.u32 %v812, 7
      %v814 = vsub.s32 %v811, %v813
      %v815 = vrot.slane %v801, %v814
      %v816 = vcombine.low %v792, %v808
      %v817 = vcombine.high %v792, %v808
      %v819 = vunpack.c.l.s4 1934713408
      %v820 = vunpack.c.0.s8 %v819
      %v821 = vlaneseq
      %v822 = vshrl.u32 %v821, 7
      %v823 = vsub.s32 %v820, %v822
      %v824 = vrot.slane %v816, %v823
      %v826 = vunpack.c.l.s4 1934713408
      %v827 = vunpack.c.0.s8 %v826
      %v828 = vlaneseq
      %v829 = vshrl.u32 %v828, 7
      %v830 = vsub.s32 %v827, %v829
      %v831 = vrot.slane %v817, %v830
      %v832 = vcombine.low %v799, %v815
      %v833 = vcombine.high %v799, %v815
      %v835 = vunpack.c.l.s4 1934713408
      %v836 = vunpack.c.0.s8 %v835
      %v837 = vlaneseq
      %v838 = vshrl.u32 %v837, 7
      %v839 = vsub.s32 %v836, %v838
      %v840 = vrot.slane %v832, %v839
      %v842 = vunpack.c.l.s4 1934713408
      %v843 = vunpack.c.0.s8 %v842
      %v844 = vlaneseq
      %v845 = vshrl.u32 %v844, 7
      %v846 = vsub.s32 %v843, %v845
      %v847 = vrot.slane %v833, %v846
      %v848 = vcombine.high %v824, 0.0
      %v849 = vcombine.high %v831, 0.0
      %v850 = vcombine.high %v840, 0.0
      %v851 = vcombine.high %v847, 0.0
      %v852 = vcombine.low %v824, %v831
      %v854 = vunpack.c.l.s4 1983009808
      %v855 = vunpack.c.0.s8 %v854
      %v856 = vlaneseq
      %v857 = vshrl.u32 %v856, 7
      %v858 = vsub.s32 %v855, %v857
      %v859 = vrot.slane %v852, %v858
      %v860 = vcombine.low %v848, %v849
      %v862 = vunpack.c.l.s4 1983009808
      %v863 = vunpack.c.0.s8 %v862
      %v864 = vlaneseq
      %v865 = vshrl.u32 %v864, 7
      %v866 = vsub.s32 %v863, %v865
      %v867 = vrot.slane %v860, %v866
      %v868 = vcombine.low %v840, %v847
      %v870 = vunpack.c.l.s4 1983009808
      %v871 = vunpack.c.0.s8 %v870
      %v872 = vlaneseq
      %v873 = vshrl.u32 %v872, 7
      %v874 = vsub.s32 %v871, %v873
      %v875 = vrot.slane %v868, %v874
      %v876 = vcombine.low %v850, %v851
      %v878 = vunpack.c.l.s4 1983009808
      %v879 = vunpack.c.0.s8 %v878
      %v880 = vlaneseq
      %v881 = vshrl.u32 %v880, 7
      %v882 = vsub.s32 %v879, %v881
      %v883 = vrot.slane %v876, %v882
      %v884 = vcombine.low %v859, %v867
      %v885 = vcombine.high %v859, %v867
      %v887 = vunpack.c.l.s4 1934713408
      %v888 = vunpack.c.0.s8 %v887
      %v889 = vlaneseq
      %v890 = vshrl.u32 %v889, 7
      %v891 = vsub.s32 %v888, %v890
      %v892 = vrot.slane %v884, %v891
      %v894 = vunpack.c.l.s4 1934713408
      %v895 = vunpack.c.0.s8 %v894
      %v896 = vlaneseq
      %v897 = vshrl.u32 %v896, 7
      %v898 = vsub.s32 %v895, %v897
      %v899 = vrot.slane %v885, %v898
      %v900 = vcombine.low %v875, %v883
      %v901 = vcombine.high %v875, %v883
      %v903 = vunpack.c.l.s4 1934713408
      %v904 = vunpack.c.0.s8 %v903
      %v905 = vlaneseq
      %v906 = vshrl.u32 %v905, 7
      %v907 = vsub.s32 %v904, %v906
      %v908 = vrot.slane %v900, %v907
      %v910 = vunpack.c.l.s4 1934713408
      %v911 = vunpack.c.0.s8 %v910
      %v912 = vlaneseq
      %v913 = vshrl.u32 %v912, 7
      %v914 = vsub.s32 %v911, %v913
      %v915 = vrot.slane %v901, %v914
      %v916 = vcombine.low %v892, %v908
      %v917 = vcombine.high %v892, %v908
      %v918 = vcombine.low %v899, %v915
      %v919 = vcombine.high %v899, %v915
      %920 = vrot.lane.b32.xlu0 %v768, 96
      %v921 = vpop.permute.xlu0 %920
      %922 = vrot.lane.b32.xlu0 %v776, 96
      %v923 = vpop.permute.xlu0 %922
      %924 = vrot.lane.b32.xlu0 %v779, 96
      %v925 = vpop.permute.xlu0 %924
      %926 = vrot.lane.b32.xlu0 %v782, 96
      %v927 = vpop.permute.xlu0 %926
      %v932 = vcombine.low %v921, %v925
      %v933 = vcombine.high %v921, %v925
      %v935 = vunpack.c.l.s4 1983009808
      %v936 = vunpack.c.0.s8 %v935
      %v937 = vlaneseq
      %v938 = vshrl.u32 %v937, 7
      %v939 = vsub.s32 %v936, %v938
      %v940 = vrot.slane %v932, %v939
      %v942 = vunpack.c.l.s4 1983009808
      %v943 = vunpack.c.0.s8 %v942
      %v944 = vlaneseq
      %v945 = vshrl.u32 %v944, 7
      %v946 = vsub.s32 %v943, %v945
      %v947 = vrot.slane %v933, %v946
      %v948 = vcombine.low %v923, %v927
      %v949 = vcombine.high %v923, %v927
      %v951 = vunpack.c.l.s4 1983009808
      %v952 = vunpack.c.0.s8 %v951
      %v953 = vlaneseq
      %v954 = vshrl.u32 %v953, 7
      %v955 = vsub.s32 %v952, %v954
      %v956 = vrot.slane %v948, %v955
      %v958 = vunpack.c.l.s4 1983009808
      %v959 = vunpack.c.0.s8 %v958
      %v960 = vlaneseq
      %v961 = vshrl.u32 %v960, 7
      %v962 = vsub.s32 %v959, %v961
      %v963 = vrot.slane %v949, %v962
      %v964 = vcombine.low %v940, %v956
      %v965 = vcombine.high %v940, %v956
      %v967 = vunpack.c.l.s4 1934713408
      %v968 = vunpack.c.0.s8 %v967
      %v969 = vlaneseq
      %v970 = vshrl.u32 %v969, 7
      %v971 = vsub.s32 %v968, %v970
      %v972 = vrot.slane %v964, %v971
      %v974 = vunpack.c.l.s4 1934713408
      %v975 = vunpack.c.0.s8 %v974
      %v976 = vlaneseq
      %v977 = vshrl.u32 %v976, 7
      %v978 = vsub.s32 %v975, %v977
      %v979 = vrot.slane %v965, %v978
      %v980 = vcombine.low %v947, %v963
      %v981 = vcombine.high %v947, %v963
      %v983 = vunpack.c.l.s4 1934713408
      %v984 = vunpack.c.0.s8 %v983
      %v985 = vlaneseq
      %v986 = vshrl.u32 %v985, 7
      %v987 = vsub.s32 %v984, %v986
      %v988 = vrot.slane %v980, %v987
      %v990 = vunpack.c.l.s4 1934713408
      %v991 = vunpack.c.0.s8 %v990
      %v992 = vlaneseq
      %v993 = vshrl.u32 %v992, 7
      %v994 = vsub.s32 %v991, %v993
      %v995 = vrot.slane %v981, %v994
      %v996 = vcombine.high %v972, 0.0
      %v997 = vcombine.high %v979, 0.0
      %v998 = vcombine.high %v988, 0.0
      %v999 = vcombine.high %v995, 0.0
      %v1000 = vcombine.low %v972, %v979
      %v1002 = vunpack.c.l.s4 1983009808
      %v1003 = vunpack.c.0.s8 %v1002
      %v1004 = vlaneseq
      %v1005 = vshrl.u32 %v1004, 7
      %v1006 = vsub.s32 %v1003, %v1005
      %v1007 = vrot.slane %v1000, %v1006
      %v1008 = vcombine.low %v996, %v997
      %v1010 = vunpack.c.l.s4 1983009808
      %v1011 = vunpack.c.0.s8 %v1010
      %v1012 = vlaneseq
      %v1013 = vshrl.u32 %v1012, 7
      %v1014 = vsub.s32 %v1011, %v1013
      %v1015 = vrot.slane %v1008, %v1014
      %v1016 = vcombine.low %v988, %v995
      %v1018 = vunpack.c.l.s4 1983009808
      %v1019 = vunpack.c.0.s8 %v1018
      %v1020 = vlaneseq
      %v1021 = vshrl.u32 %v1020, 7
      %v1022 = vsub.s32 %v1019, %v1021
      %v1023 = vrot.slane %v1016, %v1022
      %v1024 = vcombine.low %v998, %v999
      %v1026 = vunpack.c.l.s4 1983009808
      %v1027 = vunpack.c.0.s8 %v1026
      %v1028 = vlaneseq
      %v1029 = vshrl.u32 %v1028, 7
      %v1030 = vsub.s32 %v1027, %v1029
      %v1031 = vrot.slane %v1024, %v1030
      %v1032 = vcombine.low %v1007, %v1015
      %v1033 = vcombine.high %v1007, %v1015
      %v1035 = vunpack.c.l.s4 1934713408
      %v1036 = vunpack.c.0.s8 %v1035
      %v1037 = vlaneseq
      %v1038 = vshrl.u32 %v1037, 7
      %v1039 = vsub.s32 %v1036, %v1038
      %v1040 = vrot.slane %v1032, %v1039
      %v1042 = vunpack.c.l.s4 1934713408
      %v1043 = vunpack.c.0.s8 %v1042
      %v1044 = vlaneseq
      %v1045 = vshrl.u32 %v1044, 7
      %v1046 = vsub.s32 %v1043, %v1045
      %v1047 = vrot.slane %v1033, %v1046
      %v1048 = vcombine.low %v1023, %v1031
      %v1049 = vcombine.high %v1023, %v1031
      %v1051 = vunpack.c.l.s4 1934713408
      %v1052 = vunpack.c.0.s8 %v1051
      %v1053 = vlaneseq
      %v1054 = vshrl.u32 %v1053, 7
      %v1055 = vsub.s32 %v1052, %v1054
      %v1056 = vrot.slane %v1048, %v1055
      %v1058 = vunpack.c.l.s4 1934713408
      %v1059 = vunpack.c.0.s8 %v1058
      %v1060 = vlaneseq
      %v1061 = vshrl.u32 %v1060, 7
      %v1062 = vsub.s32 %v1059, %v1061
      %v1063 = vrot.slane %v1049, %v1062
      %v1064 = vcombine.low %v1040, %v1056
      %v1065 = vcombine.high %v1040, %v1056
      %v1066 = vcombine.low %v1047, %v1063
      %v1067 = vcombine.high %v1047, %v1063
      %1068 = vrot.lane.b32.xlu0 %v768, 64
      %v1069 = vpop.permute.xlu0 %1068
      %1070 = vrot.lane.b32.xlu0 %v776, 64
      %v1071 = vpop.permute.xlu0 %1070
      %1072 = vrot.lane.b32.xlu0 %v779, 64
      %v1073 = vpop.permute.xlu0 %1072
      %1074 = vrot.lane.b32.xlu0 %v782, 64
      %v1075 = vpop.permute.xlu0 %1074
      %v1080 = vcombine.low %v1069, %v1073
      %v1081 = vcombine.high %v1069, %v1073
      %v1083 = vunpack.c.l.s4 1983009808
      %v1084 = vunpack.c.0.s8 %v1083
      %v1085 = vlaneseq
      %v1086 = vshrl.u32 %v1085, 7
      %v1087 = vsub.s32 %v1084, %v1086
      %v1088 = vrot.slane %v1080, %v1087
      %v1090 = vunpack.c.l.s4 1983009808
      %v1091 = vunpack.c.0.s8 %v1090
      %v1092 = vlaneseq
      %v1093 = vshrl.u32 %v1092, 7
      %v1094 = vsub.s32 %v1091, %v1093
      %v1095 = vrot.slane %v1081, %v1094
      %v1096 = vcombine.low %v1071, %v1075
      %v1097 = vcombine.high %v1071, %v1075
      %v1099 = vunpack.c.l.s4 1983009808
      %v1100 = vunpack.c.0.s8 %v1099
      %v1101 = vlaneseq
      %v1102 = vshrl.u32 %v1101, 7
      %v1103 = vsub.s32 %v1100, %v1102
      %v1104 = vrot.slane %v1096, %v1103
      %v1106 = vunpack.c.l.s4 1983009808
      %v1107 = vunpack.c.0.s8 %v1106
      %v1108 = vlaneseq
      %v1109 = vshrl.u32 %v1108, 7
      %v1110 = vsub.s32 %v1107, %v1109
      %v1111 = vrot.slane %v1097, %v1110
      %v1112 = vcombine.low %v1088, %v1104
      %v1113 = vcombine.high %v1088, %v1104
      %v1115 = vunpack.c.l.s4 1934713408
      %v1116 = vunpack.c.0.s8 %v1115
      %v1117 = vlaneseq
      %v1118 = vshrl.u32 %v1117, 7
      %v1119 = vsub.s32 %v1116, %v1118
      %v1120 = vrot.slane %v1112, %v1119
      %v1122 = vunpack.c.l.s4 1934713408
      %v1123 = vunpack.c.0.s8 %v1122
      %v1124 = vlaneseq
      %v1125 = vshrl.u32 %v1124, 7
      %v1126 = vsub.s32 %v1123, %v1125
      %v1127 = vrot.slane %v1113, %v1126
      %v1128 = vcombine.low %v1095, %v1111
      %v1129 = vcombine.high %v1095, %v1111
      %v1131 = vunpack.c.l.s4 1934713408
      %v1132 = vunpack.c.0.s8 %v1131
      %v1133 = vlaneseq
      %v1134 = vshrl.u32 %v1133, 7
      %v1135 = vsub.s32 %v1132, %v1134
      %v1136 = vrot.slane %v1128, %v1135
      %v1138 = vunpack.c.l.s4 1934713408
      %v1139 = vunpack.c.0.s8 %v1138
      %v1140 = vlaneseq
      %v1141 = vshrl.u32 %v1140, 7
      %v1142 = vsub.s32 %v1139, %v1141
      %v1143 = vrot.slane %v1129, %v1142
      %v1144 = vcombine.high %v1120, 0.0
      %v1145 = vcombine.high %v1127, 0.0
      %v1146 = vcombine.high %v1136, 0.0
      %v1147 = vcombine.high %v1143, 0.0
      %v1148 = vcombine.low %v1120, %v1127
      %v1150 = vunpack.c.l.s4 1983009808
      %v1151 = vunpack.c.0.s8 %v1150
      %v1152 = vlaneseq
      %v1153 = vshrl.u32 %v1152, 7
      %v1154 = vsub.s32 %v1151, %v1153
      %v1155 = vrot.slane %v1148, %v1154
      %v1156 = vcombine.low %v1144, %v1145
      %v1158 = vunpack.c.l.s4 1983009808
      %v1159 = vunpack.c.0.s8 %v1158
      %v1160 = vlaneseq
      %v1161 = vshrl.u32 %v1160, 7
      %v1162 = vsub.s32 %v1159, %v1161
      %v1163 = vrot.slane %v1156, %v1162
      %v1164 = vcombine.low %v1136, %v1143
      %v1166 = vunpack.c.l.s4 1983009808
      %v1167 = vunpack.c.0.s8 %v1166
      %v1168 = vlaneseq
      %v1169 = vshrl.u32 %v1168, 7
      %v1170 = vsub.s32 %v1167, %v1169
      %v1171 = vrot.slane %v1164, %v1170
      %v1172 = vcombine.low %v1146, %v1147
      %v1174 = vunpack.c.l.s4 1983009808
      %v1175 = vunpack.c.0.s8 %v1174
      %v1176 = vlaneseq
      %v1177 = vshrl.u32 %v1176, 7
      %v1178 = vsub.s32 %v1175, %v1177
      %v1179 = vrot.slane %v1172, %v1178
      %v1180 = vcombine.low %v1155, %v1163
      %v1181 = vcombine.high %v1155, %v1163
      %v1183 = vunpack.c.l.s4 1934713408
      %v1184 = vunpack.c.0.s8 %v1183
      %v1185 = vlaneseq
      %v1186 = vshrl.u32 %v1185, 7
      %v1187 = vsub.s32 %v1184, %v1186
      %v1188 = vrot.slane %v1180, %v1187
      %v1190 = vunpack.c.l.s4 1934713408
      %v1191 = vunpack.c.0.s8 %v1190
      %v1192 = vlaneseq
      %v1193 = vshrl.u32 %v1192, 7
      %v1194 = vsub.s32 %v1191, %v1193
      %v1195 = vrot.slane %v1181, %v1194
      %v1196 = vcombine.low %v1171, %v1179
      %v1197 = vcombine.high %v1171, %v1179
      %v1199 = vunpack.c.l.s4 1934713408
      %v1200 = vunpack.c.0.s8 %v1199
      %v1201 = vlaneseq
      %v1202 = vshrl.u32 %v1201, 7
      %v1203 = vsub.s32 %v1200, %v1202
      %v1204 = vrot.slane %v1196, %v1203
      %v1206 = vunpack.c.l.s4 1934713408
      %v1207 = vunpack.c.0.s8 %v1206
      %v1208 = vlaneseq
      %v1209 = vshrl.u32 %v1208, 7
      %v1210 = vsub.s32 %v1207, %v1209
      %v1211 = vrot.slane %v1197, %v1210
      %v1212 = vcombine.low %v1188, %v1204
      %v1213 = vcombine.high %v1188, %v1204
      %v1214 = vcombine.low %v1195, %v1211
      %v1215 = vcombine.high %v1195, %v1211
      %v1216 = vpack.c.bf16 %v916, %v916
      %v1217 = vpack.c.bf16 %v917, %v917
      %v1218 = vpack.c.bf16 %v918, %v918
      %v1219 = vpack.c.bf16 %v919, %v919
      %v1220 = vpack.c.bf16 %v1064, %v1064
      %v1221 = vpack.c.bf16 %v1065, %v1065
      %v1222 = vpack.c.bf16 %v1066, %v1066
      %v1223 = vpack.c.bf16 %v1067, %v1067
      %vm1224 = vcmask 64512
      %v1226 = vsel %vm1224, %v1216, 0
      %v1229 = vsel %vm1224, %v1220, 0
      %1231 = vmatprep.subr.bf16.mxu0 0
      %1232 = vmatpush1.bf16.xpose.msra.mxu0 %v1229
      %1233 = vmatprep.subr.bf16.mxu0 0
      %1234 = vmatpush1.bf16.xpose.msra.mxu0 0
      %1235 = vmatprep.subr.bf16.mxu0 0
      %1236 = vmatpush1.bf16.xpose.msra.mxu0 0
      %1237 = vmatprep.subr.bf16.mxu0 0
      %1238 = vmatpush1.bf16.xpose.msra.mxu0 0
      %1239 = vmatprep.subr.bf16.mxu0 0
      %1240 = vmatpush1.bf16.xpose.msra.mxu0 0
      %1241 = vmatprep.subr.bf16.mxu0 0
      %1242 = vmatpush1.bf16.xpose.msra.mxu0 0
      %1243 = vmatprep.subr.bf16.mxu0 0
      %1244 = vmatpush1.bf16.xpose.msra.mxu0 0
      %1245 = vmatprep.subr.bf16.mxu0 0
      %1246 = vmatpush1.bf16.xpose.msra.mxu0 0
      %1247 = vmatprep.subr.bf16.mxu0 0
      %1248 = vmatpush1.bf16.xpose.msra.mxu0 0
      %1249 = vmatprep.subr.bf16.mxu0 0
      %1250 = vmatpush1.bf16.xpose.msra.mxu0 0
      %1251 = vmatprep.subr.bf16.mxu0 0
      %1252 = vmatpush1.bf16.xpose.msra.mxu0 0
      %1253 = vmatprep.subr.bf16.mxu0 0
      %1254 = vmatpush1.bf16.xpose.msra.mxu0 0
      %1255 = vmatprep.subr.bf16.mxu0 0
      %1256 = vmatpush1.bf16.xpose.msra.mxu0 0
      %1257 = vmatprep.subr.bf16.mxu0 0
      %1258 = vmatpush1.bf16.xpose.msra.mxu0 0
      %1259 = vmatprep.subr.bf16.mxu0 0
      %1260 = vmatpush1.bf16.xpose.msra.mxu0 0
      %1261 = vmatprep.subr.bf16.mxu0 0
      %1262 = vmatpush1.bf16.xpose.msra.mxu0 0
      %1263 = vmatprep.mubr.bf16.mxu0 0
      %1264 = vmatmul.mubr.bf16.gmra.mrb[0].mxu0 %v1226
      %v1265 = vpop.f32.mrb[0].mxu0
      %v1266 = vadd.f32 0.0, %v1265
      %v1267 = vpop.f32.mrb[0].mxu0
      %v1268 = vpop.f32.mrb[0].mxu0
      %v1269 = vpop.f32.mrb[0].mxu0
      %1270 = vdwg.mxu0
      %v1272 = vsel %vm1224, %v1217, 0
      %v1275 = vsel %vm1224, %v1221, 0
      %1277 = vmatprep.subr.bf16.mxu0 0
      %1278 = vmatpush1.bf16.xpose.msra.mxu0 %v1275
      %1279 = vmatprep.subr.bf16.mxu0 0
      %1280 = vmatpush1.bf16.xpose.msra.mxu0 0
      %1281 = vmatprep.subr.bf16.mxu0 0
      %1282 = vmatpush1.bf16.xpose.msra.mxu0 0
      %1283 = vmatprep.subr.bf16.mxu0 0
      %1284 = vmatpush1.bf16.xpose.msra.mxu0 0
      %1285 = vmatprep.subr.bf16.mxu0 0
      %1286 = vmatpush1.bf16.xpose.msra.mxu0 0
      %1287 = vmatprep.subr.bf16.mxu0 0
      %1288 = vmatpush1.bf16.xpose.msra.mxu0 0
      %1289 = vmatprep.subr.bf16.mxu0 0
      %1290 = vmatpush1.bf16.xpose.msra.mxu0 0
      %1291 = vmatprep.subr.bf16.mxu0 0
      %1292 = vmatpush1.bf16.xpose.msra.mxu0 0
      %1293 = vmatprep.subr.bf16.mxu0 0
      %1294 = vmatpush1.bf16.xpose.msra.mxu0 0
      %1295 = vmatprep.subr.bf16.mxu0 0
      %1296 = vmatpush1.bf16.xpose.msra.mxu0 0
      %1297 = vmatprep.subr.bf16.mxu0 0
      %1298 = vmatpush1.bf16.xpose.msra.mxu0 0
      %1299 = vmatprep.subr.bf16.mxu0 0
      %1300 = vmatpush1.bf16.xpose.msra.mxu0 0
      %1301 = vmatprep.subr.bf16.mxu0 0
      %1302 = vmatpush1.bf16.xpose.msra.mxu0 0
      %1303 = vmatprep.subr.bf16.mxu0 0
      %1304 = vmatpush1.bf16.xpose.msra.mxu0 0
      %1305 = vmatprep.subr.bf16.mxu0 0
      %1306 = vmatpush1.bf16.xpose.msra.mxu0 0
      %1307 = vmatprep.subr.bf16.mxu0 0
      %1308 = vmatpush1.bf16.xpose.msra.mxu0 0
      %1309 = vmatprep.mubr.bf16.mxu0 0
      %1310 = vmatmul.mubr.bf16.gmra.mrb[0].mxu0 %v1272
      %v1311 = vpop.f32.mrb[0].mxu0
      %v1312 = vadd.f32 0.0, %v1311
      %v1313 = vpop.f32.mrb[0].mxu0
      %v1314 = vpop.f32.mrb[0].mxu0
      %v1315 = vpop.f32.mrb[0].mxu0
      %1316 = vdwg.mxu0
      %v1318 = vsel %vm1224, %v1218, 0
      %v1321 = vsel %vm1224, %v1222, 0
      %1323 = vmatprep.subr.bf16.mxu0 0
      %1324 = vmatpush1.bf16.xpose.msra.mxu0 %v1321
      %1325 = vmatprep.subr.bf16.mxu0 0
      %1326 = vmatpush1.bf16.xpose.msra.mxu0 0
      %1327 = vmatprep.subr.bf16.mxu0 0
      %1328 = vmatpush1.bf16.xpose.msra.mxu0 0
      %1329 = vmatprep.subr.bf16.mxu0 0
      %1330 = vmatpush1.bf16.xpose.msra.mxu0 0
      %1331 = vmatprep.subr.bf16.mxu0 0
      %1332 = vmatpush1.bf16.xpose.msra.mxu0 0
      %1333 = vmatprep.subr.bf16.mxu0 0
      %1334 = vmatpush1.bf16.xpose.msra.mxu0 0
      %1335 = vmatprep.subr.bf16.mxu0 0
      %1336 = vmatpush1.bf16.xpose.msra.mxu0 0
      %1337 = vmatprep.subr.bf16.mxu0 0
      %1338 = vmatpush1.bf16.xpose.msra.mxu0 0
      %1339 = vmatprep.subr.bf16.mxu0 0
      %1340 = vmatpush1.bf16.xpose.msra.mxu0 0
      %1341 = vmatprep.subr.bf16.mxu0 0
      %1342 = vmatpush1.bf16.xpose.msra.mxu0 0
      %1343 = vmatprep.subr.bf16.mxu0 0
      %1344 = vmatpush1.bf16.xpose.msra.mxu0 0
      %1345 = vmatprep.subr.bf16.mxu0 0
      %1346 = vmatpush1.bf16.xpose.msra.mxu0 0
      %1347 = vmatprep.subr.bf16.mxu0 0
      %1348 = vmatpush1.bf16.xpose.msra.mxu0 0
      %1349 = vmatprep.subr.bf16.mxu0 0
      %1350 = vmatpush1.bf16.xpose.msra.mxu0 0
      %1351 = vmatprep.subr.bf16.mxu0 0
      %1352 = vmatpush1.bf16.xpose.msra.mxu0 0
      %1353 = vmatprep.subr.bf16.mxu0 0
      %1354 = vmatpush1.bf16.xpose.msra.mxu0 0
      %1355 = vmatprep.mubr.bf16.mxu0 0
      %1356 = vmatmul.mubr.bf16.gmra.mrb[0].mxu0 %v1318
      %v1357 = vpop.f32.mrb[0].mxu0
      %v1358 = vadd.f32 0.0, %v1357
      %v1359 = vpop.f32.mrb[0].mxu0
      %v1360 = vpop.f32.mrb[0].mxu0
      %v1361 = vpop.f32.mrb[0].mxu0
      %1362 = vdwg.mxu0
      %v1364 = vsel %vm1224, %v1219, 0
      %v1367 = vsel %vm1224, %v1223, 0
      %1369 = vmatprep.subr.bf16.mxu0 0
      %1370 = vmatpush1.bf16.xpose.msra.mxu0 %v1367
      %1371 = vmatprep.subr.bf16.mxu0 0
      %1372 = vmatpush1.bf16.xpose.msra.mxu0 0
      %1373 = vmatprep.subr.bf16.mxu0 0
      %1374 = vmatpush1.bf16.xpose.msra.mxu0 0
      %1375 = vmatprep.subr.bf16.mxu0 0
      %1376 = vmatpush1.bf16.xpose.msra.mxu0 0
      %1377 = vmatprep.subr.bf16.mxu0 0
      %1378 = vmatpush1.bf16.xpose.msra.mxu0 0
      %1379 = vmatprep.subr.bf16.mxu0 0
      %1380 = vmatpush1.bf16.xpose.msra.mxu0 0
      %1381 = vmatprep.subr.bf16.mxu0 0
      %1382 = vmatpush1.bf16.xpose.msra.mxu0 0
      %1383 = vmatprep.subr.bf16.mxu0 0
      %1384 = vmatpush1.bf16.xpose.msra.mxu0 0
      %1385 = vmatprep.subr.bf16.mxu0 0
      %1386 = vmatpush1.bf16.xpose.msra.mxu0 0
      %1387 = vmatprep.subr.bf16.mxu0 0
      %1388 = vmatpush1.bf16.xpose.msra.mxu0 0
      %1389 = vmatprep.subr.bf16.mxu0 0
      %1390 = vmatpush1.bf16.xpose.msra.mxu0 0
      %1391 = vmatprep.subr.bf16.mxu0 0
      %1392 = vmatpush1.bf16.xpose.msra.mxu0 0
      %1393 = vmatprep.subr.bf16.mxu0 0
      %1394 = vmatpush1.bf16.xpose.msra.mxu0 0
      %1395 = vmatprep.subr.bf16.mxu0 0
      %1396 = vmatpush1.bf16.xpose.msra.mxu0 0
      %1397 = vmatprep.subr.bf16.mxu0 0
      %1398 = vmatpush1.bf16.xpose.msra.mxu0 0
      %1399 = vmatprep.subr.bf16.mxu0 0
      %1400 = vmatpush1.bf16.xpose.msra.mxu0 0
      %1401 = vmatprep.mubr.bf16.mxu0 0
      %1402 = vmatmul.mubr.bf16.gmra.mrb[0].mxu0 %v1364
      %v1403 = vpop.f32.mrb[0].mxu0
      %v1404 = vadd.f32 0.0, %v1403
      %v1405 = vpop.f32.mrb[0].mxu0
      %v1406 = vpop.f32.mrb[0].mxu0
      %v1407 = vpop.f32.mrb[0].mxu0
      %1408 = vdwg.mxu0
      %v1409 = vsel %vm1224, %v1266, -inf
      %1410 = vmax.xlane.f32.xlu0 %v1409
      %v1411 = vpop.xlane.xlu0 %1410
      %v1412 = vsel %vm1224, %v1312, -inf
      %1413 = vmax.xlane.f32.xlu0 %v1412
      %v1414 = vpop.xlane.xlu0 %1413
      %v1415 = vsel %vm1224, %v1358, -inf
      %1416 = vmax.xlane.f32.xlu0 %v1415
      %v1417 = vpop.xlane.xlu0 %1416
      %v1418 = vsel %vm1224, %v1404, -inf
      %1419 = vmax.xlane.f32.xlu0 %v1418
      %v1420 = vpop.xlane.xlu0 %1419
      %v1421 = vsub.f32 %v1266, %v1411
      %v1422 = vsub.f32 %v1312, %v1414
      %v1423 = vsub.f32 %v1358, %v1417
      %v1424 = vsub.f32 %v1404, %v1420
      %v1425 = vmul.f32 %v1421, 1.442695
      %v1426 = vpow.pop %v1425
      %v1427 = vmul.f32 %v1422, 1.442695
      %v1428 = vpow.pop %v1427
      %v1429 = vmul.f32 %v1423, 1.442695
      %v1430 = vpow.pop %v1429
      %v1431 = vmul.f32 %v1424, 1.442695
      %v1432 = vpow.pop %v1431
      %v1433 = vsel %vm1224, %v1426, 0.0
      %1434 = vadd.xlane.f32.xlu0 %v1433
      %v1435 = vpop.xlane.xlu0 %1434
      %v1436 = vsel %vm1224, %v1428, 0.0
      %1437 = vadd.xlane.f32.xlu0 %v1436
      %v1438 = vpop.xlane.xlu0 %1437
      %v1439 = vsel %vm1224, %v1430, 0.0
      %1440 = vadd.xlane.f32.xlu0 %v1439
      %v1441 = vpop.xlane.xlu0 %1440
      %v1442 = vsel %vm1224, %v1432, 0.0
      %1443 = vadd.xlane.f32.xlu0 %v1442
      %v1444 = vpop.xlane.xlu0 %1443
      %v1445 = vrcp.pop %v1435
      %v1446 = vrcp.pop %v1438
      %v1447 = vrcp.pop %v1441
      %v1448 = vrcp.pop %v1444
      %v1449 = vmul.f32 %v1426, %v1445
      %v1450 = vmul.f32 %v1428, %v1446
      %v1451 = vmul.f32 %v1430, %v1447
      %v1452 = vmul.f32 %v1432, %v1448
      %v1453 = vpack.c.bf16 %v1449, %v1449
      %v1454 = vpack.c.bf16 %v1450, %v1450
      %v1455 = vpack.c.bf16 %v1451, %v1451
      %v1456 = vpack.c.bf16 %v1452, %v1452
      %v1457 = vpack.c.bf16 %v1212, %v1212
      %v1458 = vpack.c.bf16 %v1213, %v1213
      %v1459 = vpack.c.bf16 %v1214, %v1214
      %v1460 = vpack.c.bf16 %v1215, %v1215
      %v1462 = vsel %vm1224, %v1453, 0
      %vm1464 = vcmask 1043456
      %v1466 = vsel %vm1464, %v1457, 0
      %1468 = vmatprep.subr.bf16.mxu0 0
      %1469 = vmatpush1.bf16.msra.mxu0 %v1466
      %1470 = vmatprep.subr.bf16.mxu0 0
      %1471 = vmatpush1.bf16.msra.mxu0 0
      %1472 = vmatprep.subr.bf16.mxu0 0
      %1473 = vmatpush1.bf16.msra.mxu0 0
      %1474 = vmatprep.subr.bf16.mxu0 0
      %1475 = vmatpush1.bf16.msra.mxu0 0
      %1476 = vmatprep.subr.bf16.mxu0 0
      %1477 = vmatpush1.bf16.msra.mxu0 0
      %1478 = vmatprep.subr.bf16.mxu0 0
      %1479 = vmatpush1.bf16.msra.mxu0 0
      %1480 = vmatprep.subr.bf16.mxu0 0
      %1481 = vmatpush1.bf16.msra.mxu0 0
      %1482 = vmatprep.subr.bf16.mxu0 0
      %1483 = vmatpush1.bf16.msra.mxu0 0
      %1484 = vmatprep.subr.bf16.mxu0 0
      %1485 = vmatpush1.bf16.msra.mxu0 0
      %1486 = vmatprep.subr.bf16.mxu0 0
      %1487 = vmatpush1.bf16.msra.mxu0 0
      %1488 = vmatprep.subr.bf16.mxu0 0
      %1489 = vmatpush1.bf16.msra.mxu0 0
      %1490 = vmatprep.subr.bf16.mxu0 0
      %1491 = vmatpush1.bf16.msra.mxu0 0
      %1492 = vmatprep.subr.bf16.mxu0 0
      %1493 = vmatpush1.bf16.msra.mxu0 0
      %1494 = vmatprep.subr.bf16.mxu0 0
      %1495 = vmatpush1.bf16.msra.mxu0 0
      %1496 = vmatprep.subr.bf16.mxu0 0
      %1497 = vmatpush1.bf16.msra.mxu0 0
      %1498 = vmatprep.subr.bf16.mxu0 0
      %1499 = vmatpush1.bf16.msra.mxu0 0
      %1500 = vmatprep.mubr.bf16.mxu0 0
      %1501 = vmatmul.mubr.bf16.gmra.mrb[0].mxu0 %v1462
      %v1502 = vpop.f32.mrb[0].mxu0
      %v1503 = vadd.f32 0.0, %v1502
      %v1504 = vpop.f32.mrb[0].mxu0
      %v1505 = vpop.f32.mrb[0].mxu0
      %v1506 = vpop.f32.mrb[0].mxu0
      %1507 = vdwg.mxu0
      %v1509 = vsel %vm1224, %v1454, 0
      %v1512 = vsel %vm1464, %v1458, 0
      %1514 = vmatprep.subr.bf16.mxu0 0
      %1515 = vmatpush1.bf16.msra.mxu0 %v1512
      %1516 = vmatprep.subr.bf16.mxu0 0
      %1517 = vmatpush1.bf16.msra.mxu0 0
      %1518 = vmatprep.subr.bf16.mxu0 0
      %1519 = vmatpush1.bf16.msra.mxu0 0
      %1520 = vmatprep.subr.bf16.mxu0 0
      %1521 = vmatpush1.bf16.msra.mxu0 0
      %1522 = vmatprep.subr.bf16.mxu0 0
      %1523 = vmatpush1.bf16.msra.mxu0 0
      %1524 = vmatprep.subr.bf16.mxu0 0
      %1525 = vmatpush1.bf16.msra.mxu0 0
      %1526 = vmatprep.subr.bf16.mxu0 0
      %1527 = vmatpush1.bf16.msra.mxu0 0
      %1528 = vmatprep.subr.bf16.mxu0 0
      %1529 = vmatpush1.bf16.msra.mxu0 0
      %1530 = vmatprep.subr.bf16.mxu0 0
      %1531 = vmatpush1.bf16.msra.mxu0 0
      %1532 = vmatprep.subr.bf16.mxu0 0
      %1533 = vmatpush1.bf16.msra.mxu0 0
      %1534 = vmatprep.subr.bf16.mxu0 0
      %1535 = vmatpush1.bf16.msra.mxu0 0
      %1536 = vmatprep.subr.bf16.mxu0 0
      %1537 = vmatpush1.bf16.msra.mxu0 0
      %1538 = vmatprep.subr.bf16.mxu0 0
      %1539 = vmatpush1.bf16.msra.mxu0 0
      %1540 = vmatprep.subr.bf16.mxu0 0
      %1541 = vmatpush1.bf16.msra.mxu0 0
      %1542 = vmatprep.subr.bf16.mxu0 0
      %1543 = vmatpush1.bf16.msra.mxu0 0
      %1544 = vmatprep.subr.bf16.mxu0 0
      %1545 = vmatpush1.bf16.msra.mxu0 0
      %1546 = vmatprep.mubr.bf16.mxu0 0
      %1547 = vmatmul.mubr.bf16.gmra.mrb[0].mxu0 %v1509
      %v1548 = vpop.f32.mrb[0].mxu0
      %v1549 = vadd.f32 0.0, %v1548
      %v1550 = vpop.f32.mrb[0].mxu0
      %v1551 = vpop.f32.mrb[0].mxu0
      %v1552 = vpop.f32.mrb[0].mxu0
      %1553 = vdwg.mxu0
      %v1555 = vsel %vm1224, %v1455, 0
      %v1558 = vsel %vm1464, %v1459, 0
      %1560 = vmatprep.subr.bf16.mxu0 0
      %1561 = vmatpush1.bf16.msra.mxu0 %v1558
      %1562 = vmatprep.subr.bf16.mxu0 0
      %1563 = vmatpush1.bf16.msra.mxu0 0
      %1564 = vmatprep.subr.bf16.mxu0 0
      %1565 = vmatpush1.bf16.msra.mxu0 0
      %1566 = vmatprep.subr.bf16.mxu0 0
      %1567 = vmatpush1.bf16.msra.mxu0 0
      %1568 = vmatprep.subr.bf16.mxu0 0
      %1569 = vmatpush1.bf16.msra.mxu0 0
      %1570 = vmatprep.subr.bf16.mxu0 0
      %1571 = vmatpush1.bf16.msra.mxu0 0
      %1572 = vmatprep.subr.bf16.mxu0 0
      %1573 = vmatpush1.bf16.msra.mxu0 0
      %1574 = vmatprep.subr.bf16.mxu0 0
      %1575 = vmatpush1.bf16.msra.mxu0 0
      %1576 = vmatprep.subr.bf16.mxu0 0
      %1577 = vmatpush1.bf16.msra.mxu0 0
      %1578 = vmatprep.subr.bf16.mxu0 0
      %1579 = vmatpush1.bf16.msra.mxu0 0
      %1580 = vmatprep.subr.bf16.mxu0 0
      %1581 = vmatpush1.bf16.msra.mxu0 0
      %1582 = vmatprep.subr.bf16.mxu0 0
      %1583 = vmatpush1.bf16.msra.mxu0 0
      %1584 = vmatprep.subr.bf16.mxu0 0
      %1585 = vmatpush1.bf16.msra.mxu0 0
      %1586 = vmatprep.subr.bf16.mxu0 0
      %1587 = vmatpush1.bf16.msra.mxu0 0
      %1588 = vmatprep.subr.bf16.mxu0 0
      %1589 = vmatpush1.bf16.msra.mxu0 0
      %1590 = vmatprep.subr.bf16.mxu0 0
      %1591 = vmatpush1.bf16.msra.mxu0 0
      %1592 = vmatprep.mubr.bf16.mxu0 0
      %1593 = vmatmul.mubr.bf16.gmra.mrb[0].mxu0 %v1555
      %v1594 = vpop.f32.mrb[0].mxu0
      %v1595 = vadd.f32 0.0, %v1594
      %v1596 = vpop.f32.mrb[0].mxu0
      %v1597 = vpop.f32.mrb[0].mxu0
      %v1598 = vpop.f32.mrb[0].mxu0
      %1599 = vdwg.mxu0
      %v1601 = vsel %vm1224, %v1456, 0
      %v1604 = vsel %vm1464, %v1460, 0
      %1606 = vmatprep.subr.bf16.mxu0 0
      %1607 = vmatpush1.bf16.msra.mxu0 %v1604
      %1608 = vmatprep.subr.bf16.mxu0 0
      %1609 = vmatpush1.bf16.msra.mxu0 0
      %1610 = vmatprep.subr.bf16.mxu0 0
      %1611 = vmatpush1.bf16.msra.mxu0 0
      %1612 = vmatprep.subr.bf16.mxu0 0
      %1613 = vmatpush1.bf16.msra.mxu0 0
      %1614 = vmatprep.subr.bf16.mxu0 0
      %1615 = vmatpush1.bf16.msra.mxu0 0
      %1616 = vmatprep.subr.bf16.mxu0 0
      %1617 = vmatpush1.bf16.msra.mxu0 0
      %1618 = vmatprep.subr.bf16.mxu0 0
      %1619 = vmatpush1.bf16.msra.mxu0 0
      %1620 = vmatprep.subr.bf16.mxu0 0
      %1621 = vmatpush1.bf16.msra.mxu0 0
      %1622 = vmatprep.subr.bf16.mxu0 0
      %1623 = vmatpush1.bf16.msra.mxu0 0
      %1624 = vmatprep.subr.bf16.mxu0 0
      %1625 = vmatpush1.bf16.msra.mxu0 0
      %1626 = vmatprep.subr.bf16.mxu0 0
      %1627 = vmatpush1.bf16.msra.mxu0 0
      %1628 = vmatprep.subr.bf16.mxu0 0
      %1629 = vmatpush1.bf16.msra.mxu0 0
      %1630 = vmatprep.subr.bf16.mxu0 0
      %1631 = vmatpush1.bf16.msra.mxu0 0
      %1632 = vmatprep.subr.bf16.mxu0 0
      %1633 = vmatpush1.bf16.msra.mxu0 0
      %1634 = vmatprep.subr.bf16.mxu0 0
      %1635 = vmatpush1.bf16.msra.mxu0 0
      %1636 = vmatprep.subr.bf16.mxu0 0
      %1637 = vmatpush1.bf16.msra.mxu0 0
      %1638 = vmatprep.mubr.bf16.mxu0 0
      %1639 = vmatmul.mubr.bf16.gmra.mrb[0].mxu0 %v1601
      %v1640 = vpop.f32.mrb[0].mxu0
      %v1641 = vadd.f32 0.0, %v1640
      %v1642 = vpop.f32.mrb[0].mxu0
      %v1643 = vpop.f32.mrb[0].mxu0
      %v1644 = vpop.f32.mrb[0].mxu0
      %1645 = vdwg.mxu0
      %v1646 = vcombine.low %v1503, %v1595
      %v1647 = vcombine.high %v1503, %v1595
      %v1649 = vunpack.c.l.s4 1983009808
      %v1650 = vunpack.c.0.s8 %v1649
      %v1651 = vlaneseq
      %v1652 = vshrl.u32 %v1651, 7
      %v1653 = vsub.s32 %v1650, %v1652
      %v1654 = vrot.slane %v1646, %v1653
      %v1656 = vunpack.c.l.s4 1983009808
      %v1657 = vunpack.c.0.s8 %v1656
      %v1658 = vlaneseq
      %v1659 = vshrl.u32 %v1658, 7
      %v1660 = vsub.s32 %v1657, %v1659
      %v1661 = vrot.slane %v1647, %v1660
      %v1662 = vcombine.low %v1549, %v1641
      %v1663 = vcombine.high %v1549, %v1641
      %v1665 = vunpack.c.l.s4 1983009808
      %v1666 = vunpack.c.0.s8 %v1665
      %v1667 = vlaneseq
      %v1668 = vshrl.u32 %v1667, 7
      %v1669 = vsub.s32 %v1666, %v1668
      %v1670 = vrot.slane %v1662, %v1669
      %v1672 = vunpack.c.l.s4 1983009808
      %v1673 = vunpack.c.0.s8 %v1672
      %v1674 = vlaneseq
      %v1675 = vshrl.u32 %v1674, 7
      %v1676 = vsub.s32 %v1673, %v1675
      %v1677 = vrot.slane %v1663, %v1676
      %v1678 = vcombine.low %v1654, %v1670
      %v1679 = vcombine.high %v1654, %v1670
      %v1681 = vunpack.c.l.s4 1934713408
      %v1682 = vunpack.c.0.s8 %v1681
      %v1683 = vlaneseq
      %v1684 = vshrl.u32 %v1683, 7
      %v1685 = vsub.s32 %v1682, %v1684
      %v1686 = vrot.slane %v1678, %v1685
      %v1688 = vunpack.c.l.s4 1934713408
      %v1689 = vunpack.c.0.s8 %v1688
      %v1690 = vlaneseq
      %v1691 = vshrl.u32 %v1690, 7
      %v1692 = vsub.s32 %v1689, %v1691
      %v1693 = vrot.slane %v1679, %v1692
      %v1694 = vcombine.low %v1661, %v1677
      %v1695 = vcombine.high %v1661, %v1677
      %v1697 = vunpack.c.l.s4 1934713408
      %v1698 = vunpack.c.0.s8 %v1697
      %v1699 = vlaneseq
      %v1700 = vshrl.u32 %v1699, 7
      %v1701 = vsub.s32 %v1698, %v1700
      %v1702 = vrot.slane %v1694, %v1701
      %v1704 = vunpack.c.l.s4 1934713408
      %v1705 = vunpack.c.0.s8 %v1704
      %v1706 = vlaneseq
      %v1707 = vshrl.u32 %v1706, 7
      %v1708 = vsub.s32 %v1705, %v1707
      %v1709 = vrot.slane %v1695, %v1708
      %v1710 = vcombine.high %v1686, 0.0
      %v1711 = vcombine.high %v1693, 0.0
      %v1712 = vcombine.high %v1702, 0.0
      %v1713 = vcombine.high %v1709, 0.0
      %v1714 = vcombine.low %v1686, %v1693
      %v1716 = vunpack.c.l.s4 1983009808
      %v1717 = vunpack.c.0.s8 %v1716
      %v1718 = vlaneseq
      %v1719 = vshrl.u32 %v1718, 7
      %v1720 = vsub.s32 %v1717, %v1719
      %v1721 = vrot.slane %v1714, %v1720
      %v1722 = vcombine.low %v1710, %v1711
      %v1724 = vunpack.c.l.s4 1983009808
      %v1725 = vunpack.c.0.s8 %v1724
      %v1726 = vlaneseq
      %v1727 = vshrl.u32 %v1726, 7
      %v1728 = vsub.s32 %v1725, %v1727
      %v1729 = vrot.slane %v1722, %v1728
      %v1730 = vcombine.low %v1702, %v1709
      %v1732 = vunpack.c.l.s4 1983009808
      %v1733 = vunpack.c.0.s8 %v1732
      %v1734 = vlaneseq
      %v1735 = vshrl.u32 %v1734, 7
      %v1736 = vsub.s32 %v1733, %v1735
      %v1737 = vrot.slane %v1730, %v1736
      %v1738 = vcombine.low %v1712, %v1713
      %v1740 = vunpack.c.l.s4 1983009808
      %v1741 = vunpack.c.0.s8 %v1740
      %v1742 = vlaneseq
      %v1743 = vshrl.u32 %v1742, 7
      %v1744 = vsub.s32 %v1741, %v1743
      %v1745 = vrot.slane %v1738, %v1744
      %v1746 = vcombine.low %v1721, %v1729
      %v1747 = vcombine.high %v1721, %v1729
      %v1749 = vunpack.c.l.s4 1934713408
      %v1750 = vunpack.c.0.s8 %v1749
      %v1751 = vlaneseq
      %v1752 = vshrl.u32 %v1751, 7
      %v1753 = vsub.s32 %v1750, %v1752
      %v1754 = vrot.slane %v1746, %v1753
      %v1756 = vunpack.c.l.s4 1934713408
      %v1757 = vunpack.c.0.s8 %v1756
      %v1758 = vlaneseq
      %v1759 = vshrl.u32 %v1758, 7
      %v1760 = vsub.s32 %v1757, %v1759
      %v1761 = vrot.slane %v1747, %v1760
      %v1762 = vcombine.low %v1737, %v1745
      %v1763 = vcombine.high %v1737, %v1745
      %v1765 = vunpack.c.l.s4 1934713408
      %v1766 = vunpack.c.0.s8 %v1765
      %v1767 = vlaneseq
      %v1768 = vshrl.u32 %v1767, 7
      %v1769 = vsub.s32 %v1766, %v1768
      %v1770 = vrot.slane %v1762, %v1769
      %v1772 = vunpack.c.l.s4 1934713408
      %v1773 = vunpack.c.0.s8 %v1772
      %v1774 = vlaneseq
      %v1775 = vshrl.u32 %v1774, 7
      %v1776 = vsub.s32 %v1773, %v1775
      %v1777 = vrot.slane %v1763, %v1776
      %v1778 = vcombine.low %v1754, %v1770
      %v1779 = vcombine.high %v1754, %v1770
      %v1780 = vcombine.low %v1761, %v1777
      %v1781 = vcombine.high %v1761, %v1777
      %1783 = vrot.lane.b32.xlu0 %v1779, 8
      %v1784 = vpop.permute.xlu0 %1783
      %1787 = vrot.lane.b32.xlu0 %v1780, 16
      %v1788 = vpop.permute.xlu0 %1787
      %1791 = vrot.lane.b32.xlu0 %v1781, 24
      %v1792 = vpop.permute.xlu0 %1791
      %v1794 = vsel %vm1224, %v1778, %v1784
      %vm1795 = vcmask 130048
      %v1796 = vsel %vm1795, %v1794, %v1788
      %vm1797 = vcmask 195584
      %v1798 = vsel %vm1797, %v1796, %v1792
      %1800 = vrot.lane.b32.xlu0 %v771, 120
      %v1801 = vpop.permute.xlu0 %1800
      %1803 = vrot.lane.b32.xlu0 %v771, 112
      %v1804 = vpop.permute.xlu0 %1803
      %1806 = vrot.lane.b32.xlu0 %v771, 104
      %v1807 = vpop.permute.xlu0 %1806
      %v1809 = vcombine.low %v771, %v1804
      %v1810 = vcombine.high %v771, %v1804
      %v1812 = vunpack.c.l.s4 1983009808
      %v1813 = vunpack.c.0.s8 %v1812
      %v1814 = vlaneseq
      %v1815 = vshrl.u32 %v1814, 7
      %v1816 = vsub.s32 %v1813, %v1815
      %v1817 = vrot.slane %v1809, %v1816
      %v1819 = vunpack.c.l.s4 1983009808
      %v1820 = vunpack.c.0.s8 %v1819
      %v1821 = vlaneseq
      %v1822 = vshrl.u32 %v1821, 7
      %v1823 = vsub.s32 %v1820, %v1822
      %v1824 = vrot.slane %v1810, %v1823
      %v1825 = vcombine.low %v1801, %v1807
      %v1826 = vcombine.high %v1801, %v1807
      %v1828 = vunpack.c.l.s4 1983009808
      %v1829 = vunpack.c.0.s8 %v1828
      %v1830 = vlaneseq
      %v1831 = vshrl.u32 %v1830, 7
      %v1832 = vsub.s32 %v1829, %v1831
      %v1833 = vrot.slane %v1825, %v1832
      %v1835 = vunpack.c.l.s4 1983009808
      %v1836 = vunpack.c.0.s8 %v1835
      %v1837 = vlaneseq
      %v1838 = vshrl.u32 %v1837, 7
      %v1839 = vsub.s32 %v1836, %v1838
      %v1840 = vrot.slane %v1826, %v1839
      %v1841 = vcombine.low %v1817, %v1833
      %v1842 = vcombine.high %v1817, %v1833
      %v1844 = vunpack.c.l.s4 1934713408
      %v1845 = vunpack.c.0.s8 %v1844
      %v1846 = vlaneseq
      %v1847 = vshrl.u32 %v1846, 7
      %v1848 = vsub.s32 %v1845, %v1847
      %v1849 = vrot.slane %v1841, %v1848
      %v1851 = vunpack.c.l.s4 1934713408
      %v1852 = vunpack.c.0.s8 %v1851
      %v1853 = vlaneseq
      %v1854 = vshrl.u32 %v1853, 7
      %v1855 = vsub.s32 %v1852, %v1854
      %v1856 = vrot.slane %v1842, %v1855
      %v1857 = vcombine.low %v1824, %v1840
      %v1858 = vcombine.high %v1824, %v1840
      %v1860 = vunpack.c.l.s4 1934713408
      %v1861 = vunpack.c.0.s8 %v1860
      %v1862 = vlaneseq
      %v1863 = vshrl.u32 %v1862, 7
      %v1864 = vsub.s32 %v1861, %v1863
      %v1865 = vrot.slane %v1857, %v1864
      %v1867 = vunpack.c.l.s4 1934713408
      %v1868 = vunpack.c.0.s8 %v1867
      %v1869 = vlaneseq
      %v1870 = vshrl.u32 %v1869, 7
      %v1871 = vsub.s32 %v1868, %v1870
      %v1872 = vrot.slane %v1858, %v1871
      %v1873 = vcombine.high %v1849, 0.0
      %v1874 = vcombine.high %v1856, 0.0
      %v1875 = vcombine.high %v1865, 0.0
      %v1876 = vcombine.high %v1872, 0.0
      %v1877 = vcombine.low %v1849, %v1856
      %v1879 = vunpack.c.l.s4 1983009808
      %v1880 = vunpack.c.0.s8 %v1879
      %v1881 = vlaneseq
      %v1882 = vshrl.u32 %v1881, 7
      %v1883 = vsub.s32 %v1880, %v1882
      %v1884 = vrot.slane %v1877, %v1883
      %v1885 = vcombine.low %v1873, %v1874
      %v1887 = vunpack.c.l.s4 1983009808
      %v1888 = vunpack.c.0.s8 %v1887
      %v1889 = vlaneseq
      %v1890 = vshrl.u32 %v1889, 7
      %v1891 = vsub.s32 %v1888, %v1890
      %v1892 = vrot.slane %v1885, %v1891
      %v1893 = vcombine.low %v1865, %v1872
      %v1895 = vunpack.c.l.s4 1983009808
      %v1896 = vunpack.c.0.s8 %v1895
      %v1897 = vlaneseq
      %v1898 = vshrl.u32 %v1897, 7
      %v1899 = vsub.s32 %v1896, %v1898
      %v1900 = vrot.slane %v1893, %v1899
      %v1901 = vcombine.low %v1875, %v1876
      %v1903 = vunpack.c.l.s4 1983009808
      %v1904 = vunpack.c.0.s8 %v1903
      %v1905 = vlaneseq
      %v1906 = vshrl.u32 %v1905, 7
      %v1907 = vsub.s32 %v1904, %v1906
      %v1908 = vrot.slane %v1901, %v1907
      %v1909 = vcombine.low %v1884, %v1892
      %v1910 = vcombine.high %v1884, %v1892
      %v1912 = vunpack.c.l.s4 1934713408
      %v1913 = vunpack.c.0.s8 %v1912
      %v1914 = vlaneseq
      %v1915 = vshrl.u32 %v1914, 7
      %v1916 = vsub.s32 %v1913, %v1915
      %v1917 = vrot.slane %v1909, %v1916
      %v1919 = vunpack.c.l.s4 1934713408
      %v1920 = vunpack.c.0.s8 %v1919
      %v1921 = vlaneseq
      %v1922 = vshrl.u32 %v1921, 7
      %v1923 = vsub.s32 %v1920, %v1922
      %v1924 = vrot.slane %v1910, %v1923
      %v1925 = vcombine.low %v1900, %v1908
      %v1926 = vcombine.high %v1900, %v1908
      %v1928 = vunpack.c.l.s4 1934713408
      %v1929 = vunpack.c.0.s8 %v1928
      %v1930 = vlaneseq
      %v1931 = vshrl.u32 %v1930, 7
      %v1932 = vsub.s32 %v1929, %v1931
      %v1933 = vrot.slane %v1925, %v1932
      %v1935 = vunpack.c.l.s4 1934713408
      %v1936 = vunpack.c.0.s8 %v1935
      %v1937 = vlaneseq
      %v1938 = vshrl.u32 %v1937, 7
      %v1939 = vsub.s32 %v1936, %v1938
      %v1940 = vrot.slane %v1926, %v1939
      %v1941 = vcombine.low %v1917, %v1933
      %v1942 = vcombine.high %v1917, %v1933
      %v1943 = vcombine.low %v1924, %v1940
      %v1944 = vcombine.high %v1924, %v1940
      %1945 = vrot.lane.b32.xlu0 %v771, 96
      %v1946 = vpop.permute.xlu0 %1945
      %1947 = vrot.lane.b32.xlu0 %v1801, 96
      %v1948 = vpop.permute.xlu0 %1947
      %1949 = vrot.lane.b32.xlu0 %v1804, 96
      %v1950 = vpop.permute.xlu0 %1949
      %1951 = vrot.lane.b32.xlu0 %v1807, 96
      %v1952 = vpop.permute.xlu0 %1951
      %v1957 = vcombine.low %v1946, %v1950
      %v1958 = vcombine.high %v1946, %v1950
      %v1960 = vunpack.c.l.s4 1983009808
      %v1961 = vunpack.c.0.s8 %v1960
      %v1962 = vlaneseq
      %v1963 = vshrl.u32 %v1962, 7
      %v1964 = vsub.s32 %v1961, %v1963
      %v1965 = vrot.slane %v1957, %v1964
      %v1967 = vunpack.c.l.s4 1983009808
      %v1968 = vunpack.c.0.s8 %v1967
      %v1969 = vlaneseq
      %v1970 = vshrl.u32 %v1969, 7
      %v1971 = vsub.s32 %v1968, %v1970
      %v1972 = vrot.slane %v1958, %v1971
      %v1973 = vcombine.low %v1948, %v1952
      %v1974 = vcombine.high %v1948, %v1952
      %v1976 = vunpack.c.l.s4 1983009808
      %v1977 = vunpack.c.0.s8 %v1976
      %v1978 = vlaneseq
      %v1979 = vshrl.u32 %v1978, 7
      %v1980 = vsub.s32 %v1977, %v1979
      %v1981 = vrot.slane %v1973, %v1980
      %v1983 = vunpack.c.l.s4 1983009808
      %v1984 = vunpack.c.0.s8 %v1983
      %v1985 = vlaneseq
      %v1986 = vshrl.u32 %v1985, 7
      %v1987 = vsub.s32 %v1984, %v1986
      %v1988 = vrot.slane %v1974, %v1987
      %v1989 = vcombine.low %v1965, %v1981
      %v1990 = vcombine.high %v1965, %v1981
      %v1992 = vunpack.c.l.s4 1934713408
      %v1993 = vunpack.c.0.s8 %v1992
      %v1994 = vlaneseq
      %v1995 = vshrl.u32 %v1994, 7
      %v1996 = vsub.s32 %v1993, %v1995
      %v1997 = vrot.slane %v1989, %v1996
      %v1999 = vunpack.c.l.s4 1934713408
      %v2000 = vunpack.c.0.s8 %v1999
      %v2001 = vlaneseq
      %v2002 = vshrl.u32 %v2001, 7
      %v2003 = vsub.s32 %v2000, %v2002
      %v2004 = vrot.slane %v1990, %v2003
      %v2005 = vcombine.low %v1972, %v1988
      %v2006 = vcombine.high %v1972, %v1988
      %v2008 = vunpack.c.l.s4 1934713408
      %v2009 = vunpack.c.0.s8 %v2008
      %v2010 = vlaneseq
      %v2011 = vshrl.u32 %v2010, 7
      %v2012 = vsub.s32 %v2009, %v2011
      %v2013 = vrot.slane %v2005, %v2012
      %v2015 = vunpack.c.l.s4 1934713408
      %v2016 = vunpack.c.0.s8 %v2015
      %v2017 = vlaneseq
      %v2018 = vshrl.u32 %v2017, 7
      %v2019 = vsub.s32 %v2016, %v2018
      %v2020 = vrot.slane %v2006, %v2019
      %v2021 = vcombine.high %v1997, 0.0
      %v2022 = vcombine.high %v2004, 0.0
      %v2023 = vcombine.high %v2013, 0.0
      %v2024 = vcombine.high %v2020, 0.0
      %v2025 = vcombine.low %v1997, %v2004
      %v2027 = vunpack.c.l.s4 1983009808
      %v2028 = vunpack.c.0.s8 %v2027
      %v2029 = vlaneseq
      %v2030 = vshrl.u32 %v2029, 7
      %v2031 = vsub.s32 %v2028, %v2030
      %v2032 = vrot.slane %v2025, %v2031
      %v2033 = vcombine.low %v2021, %v2022
      %v2035 = vunpack.c.l.s4 1983009808
      %v2036 = vunpack.c.0.s8 %v2035
      %v2037 = vlaneseq
      %v2038 = vshrl.u32 %v2037, 7
      %v2039 = vsub.s32 %v2036, %v2038
      %v2040 = vrot.slane %v2033, %v2039
      %v2041 = vcombine.low %v2013, %v2020
      %v2043 = vunpack.c.l.s4 1983009808
      %v2044 = vunpack.c.0.s8 %v2043
      %v2045 = vlaneseq
      %v2046 = vshrl.u32 %v2045, 7
      %v2047 = vsub.s32 %v2044, %v2046
      %v2048 = vrot.slane %v2041, %v2047
      %v2049 = vcombine.low %v2023, %v2024
      %v2051 = vunpack.c.l.s4 1983009808
      %v2052 = vunpack.c.0.s8 %v2051
      %v2053 = vlaneseq
      %v2054 = vshrl.u32 %v2053, 7
      %v2055 = vsub.s32 %v2052, %v2054
      %v2056 = vrot.slane %v2049, %v2055
      %v2057 = vcombine.low %v2032, %v2040
      %v2058 = vcombine.high %v2032, %v2040
      %v2060 = vunpack.c.l.s4 1934713408
      %v2061 = vunpack.c.0.s8 %v2060
      %v2062 = vlaneseq
      %v2063 = vshrl.u32 %v2062, 7
      %v2064 = vsub.s32 %v2061, %v2063
      %v2065 = vrot.slane %v2057, %v2064
      %v2067 = vunpack.c.l.s4 1934713408
      %v2068 = vunpack.c.0.s8 %v2067
      %v2069 = vlaneseq
      %v2070 = vshrl.u32 %v2069, 7
      %v2071 = vsub.s32 %v2068, %v2070
      %v2072 = vrot.slane %v2058, %v2071
      %v2073 = vcombine.low %v2048, %v2056
      %v2074 = vcombine.high %v2048, %v2056
      %v2076 = vunpack.c.l.s4 1934713408
      %v2077 = vunpack.c.0.s8 %v2076
      %v2078 = vlaneseq
      %v2079 = vshrl.u32 %v2078, 7
      %v2080 = vsub.s32 %v2077, %v2079
      %v2081 = vrot.slane %v2073, %v2080
      %v2083 = vunpack.c.l.s4 1934713408
      %v2084 = vunpack.c.0.s8 %v2083
      %v2085 = vlaneseq
      %v2086 = vshrl.u32 %v2085, 7
      %v2087 = vsub.s32 %v2084, %v2086
      %v2088 = vrot.slane %v2074, %v2087
      %v2089 = vcombine.low %v2065, %v2081
      %v2090 = vcombine.high %v2065, %v2081
      %v2091 = vcombine.low %v2072, %v2088
      %v2092 = vcombine.high %v2072, %v2088
      %2093 = vrot.lane.b32.xlu0 %v771, 64
      %v2094 = vpop.permute.xlu0 %2093
      %2095 = vrot.lane.b32.xlu0 %v1801, 64
      %v2096 = vpop.permute.xlu0 %2095
      %2097 = vrot.lane.b32.xlu0 %v1804, 64
      %v2098 = vpop.permute.xlu0 %2097
      %2099 = vrot.lane.b32.xlu0 %v1807, 64
      %v2100 = vpop.permute.xlu0 %2099
      %v2105 = vcombine.low %v2094, %v2098
      %v2106 = vcombine.high %v2094, %v2098
      %v2108 = vunpack.c.l.s4 1983009808
      %v2109 = vunpack.c.0.s8 %v2108
      %v2110 = vlaneseq
      %v2111 = vshrl.u32 %v2110, 7
      %v2112 = vsub.s32 %v2109, %v2111
      %v2113 = vrot.slane %v2105, %v2112
      %v2115 = vunpack.c.l.s4 1983009808
      %v2116 = vunpack.c.0.s8 %v2115
      %v2117 = vlaneseq
      %v2118 = vshrl.u32 %v2117, 7
      %v2119 = vsub.s32 %v2116, %v2118
      %v2120 = vrot.slane %v2106, %v2119
      %v2121 = vcombine.low %v2096, %v2100
      %v2122 = vcombine.high %v2096, %v2100
      %v2124 = vunpack.c.l.s4 1983009808
      %v2125 = vunpack.c.0.s8 %v2124
      %v2126 = vlaneseq
      %v2127 = vshrl.u32 %v2126, 7
      %v2128 = vsub.s32 %v2125, %v2127
      %v2129 = vrot.slane %v2121, %v2128
      %v2131 = vunpack.c.l.s4 1983009808
      %v2132 = vunpack.c.0.s8 %v2131
      %v2133 = vlaneseq
      %v2134 = vshrl.u32 %v2133, 7
      %v2135 = vsub.s32 %v2132, %v2134
      %v2136 = vrot.slane %v2122, %v2135
      %v2137 = vcombine.low %v2113, %v2129
      %v2138 = vcombine.high %v2113, %v2129
      %v2140 = vunpack.c.l.s4 1934713408
      %v2141 = vunpack.c.0.s8 %v2140
      %v2142 = vlaneseq
      %v2143 = vshrl.u32 %v2142, 7
      %v2144 = vsub.s32 %v2141, %v2143
      %v2145 = vrot.slane %v2137, %v2144
      %v2147 = vunpack.c.l.s4 1934713408
      %v2148 = vunpack.c.0.s8 %v2147
      %v2149 = vlaneseq
      %v2150 = vshrl.u32 %v2149, 7
      %v2151 = vsub.s32 %v2148, %v2150
      %v2152 = vrot.slane %v2138, %v2151
      %v2153 = vcombine.low %v2120, %v2136
      %v2154 = vcombine.high %v2120, %v2136
      %v2156 = vunpack.c.l.s4 1934713408
      %v2157 = vunpack.c.0.s8 %v2156
      %v2158 = vlaneseq
      %v2159 = vshrl.u32 %v2158, 7
      %v2160 = vsub.s32 %v2157, %v2159
      %v2161 = vrot.slane %v2153, %v2160
      %v2163 = vunpack.c.l.s4 1934713408
      %v2164 = vunpack.c.0.s8 %v2163
      %v2165 = vlaneseq
      %v2166 = vshrl.u32 %v2165, 7
      %v2167 = vsub.s32 %v2164, %v2166
      %v2168 = vrot.slane %v2154, %v2167
      %v2169 = vcombine.high %v2145, 0.0
      %v2170 = vcombine.high %v2152, 0.0
      %v2171 = vcombine.high %v2161, 0.0
      %v2172 = vcombine.high %v2168, 0.0
      %v2173 = vcombine.low %v2145, %v2152
      %v2175 = vunpack.c.l.s4 1983009808
      %v2176 = vunpack.c.0.s8 %v2175
      %v2177 = vlaneseq
      %v2178 = vshrl.u32 %v2177, 7
      %v2179 = vsub.s32 %v2176, %v2178
      %v2180 = vrot.slane %v2173, %v2179
      %v2181 = vcombine.low %v2169, %v2170
      %v2183 = vunpack.c.l.s4 1983009808
      %v2184 = vunpack.c.0.s8 %v2183
      %v2185 = vlaneseq
      %v2186 = vshrl.u32 %v2185, 7
      %v2187 = vsub.s32 %v2184, %v2186
      %v2188 = vrot.slane %v2181, %v2187
      %v2189 = vcombine.low %v2161, %v2168
      %v2191 = vunpack.c.l.s4 1983009808
      %v2192 = vunpack.c.0.s8 %v2191
      %v2193 = vlaneseq
      %v2194 = vshrl.u32 %v2193, 7
      %v2195 = vsub.s32 %v2192, %v2194
      %v2196 = vrot.slane %v2189, %v2195
      %v2197 = vcombine.low %v2171, %v2172
      %v2199 = vunpack.c.l.s4 1983009808
      %v2200 = vunpack.c.0.s8 %v2199
      %v2201 = vlaneseq
      %v2202 = vshrl.u32 %v2201, 7
      %v2203 = vsub.s32 %v2200, %v2202
      %v2204 = vrot.slane %v2197, %v2203
      %v2205 = vcombine.low %v2180, %v2188
      %v2206 = vcombine.high %v2180, %v2188
      %v2208 = vunpack.c.l.s4 1934713408
      %v2209 = vunpack.c.0.s8 %v2208
      %v2210 = vlaneseq
      %v2211 = vshrl.u32 %v2210, 7
      %v2212 = vsub.s32 %v2209, %v2211
      %v2213 = vrot.slane %v2205, %v2212
      %v2215 = vunpack.c.l.s4 1934713408
      %v2216 = vunpack.c.0.s8 %v2215
      %v2217 = vlaneseq
      %v2218 = vshrl.u32 %v2217, 7
      %v2219 = vsub.s32 %v2216, %v2218
      %v2220 = vrot.slane %v2206, %v2219
      %v2221 = vcombine.low %v2196, %v2204
      %v2222 = vcombine.high %v2196, %v2204
      %v2224 = vunpack.c.l.s4 1934713408
      %v2225 = vunpack.c.0.s8 %v2224
      %v2226 = vlaneseq
      %v2227 = vshrl.u32 %v2226, 7
      %v2228 = vsub.s32 %v2225, %v2227
      %v2229 = vrot.slane %v2221, %v2228
      %v2231 = vunpack.c.l.s4 1934713408
      %v2232 = vunpack.c.0.s8 %v2231
      %v2233 = vlaneseq
      %v2234 = vshrl.u32 %v2233, 7
      %v2235 = vsub.s32 %v2232, %v2234
      %v2236 = vrot.slane %v2222, %v2235
      %v2237 = vcombine.low %v2213, %v2229
      %v2238 = vcombine.high %v2213, %v2229
      %v2239 = vcombine.low %v2220, %v2236
      %v2240 = vcombine.high %v2220, %v2236
      %v2241 = vpack.c.bf16 %v1941, %v1941
      %v2242 = vpack.c.bf16 %v1942, %v1942
      %v2243 = vpack.c.bf16 %v1943, %v1943
      %v2244 = vpack.c.bf16 %v1944, %v1944
      %v2245 = vpack.c.bf16 %v2089, %v2089
      %v2246 = vpack.c.bf16 %v2090, %v2090
      %v2247 = vpack.c.bf16 %v2091, %v2091
      %v2248 = vpack.c.bf16 %v2092, %v2092
      %v2250 = vsel %vm1224, %v2241, 0
      %v2253 = vsel %vm1224, %v2245, 0
      %2255 = vmatprep.subr.bf16.mxu0 0
      %2256 = vmatpush1.bf16.xpose.msra.mxu0 %v2253
      %2257 = vmatprep.subr.bf16.mxu0 0
      %2258 = vmatpush1.bf16.xpose.msra.mxu0 0
      %2259 = vmatprep.subr.bf16.mxu0 0
      %2260 = vmatpush1.bf16.xpose.msra.mxu0 0
      %2261 = vmatprep.subr.bf16.mxu0 0
      %2262 = vmatpush1.bf16.xpose.msra.mxu0 0
      %2263 = vmatprep.subr.bf16.mxu0 0
      %2264 = vmatpush1.bf16.xpose.msra.mxu0 0
      %2265 = vmatprep.subr.bf16.mxu0 0
      %2266 = vmatpush1.bf16.xpose.msra.mxu0 0
      %2267 = vmatprep.subr.bf16.mxu0 0
      %2268 = vmatpush1.bf16.xpose.msra.mxu0 0
      %2269 = vmatprep.subr.bf16.mxu0 0
      %2270 = vmatpush1.bf16.xpose.msra.mxu0 0
      %2271 = vmatprep.subr.bf16.mxu0 0
      %2272 = vmatpush1.bf16.xpose.msra.mxu0 0
      %2273 = vmatprep.subr.bf16.mxu0 0
      %2274 = vmatpush1.bf16.xpose.msra.mxu0 0
      %2275 = vmatprep.subr.bf16.mxu0 0
      %2276 = vmatpush1.bf16.xpose.msra.mxu0 0
      %2277 = vmatprep.subr.bf16.mxu0 0
      %2278 = vmatpush1.bf16.xpose.msra.mxu0 0
      %2279 = vmatprep.subr.bf16.mxu0 0
      %2280 = vmatpush1.bf16.xpose.msra.mxu0 0
      %2281 = vmatprep.subr.bf16.mxu0 0
      %2282 = vmatpush1.bf16.xpose.msra.mxu0 0
      %2283 = vmatprep.subr.bf16.mxu0 0
      %2284 = vmatpush1.bf16.xpose.msra.mxu0 0
      %2285 = vmatprep.subr.bf16.mxu0 0
      %2286 = vmatpush1.bf16.xpose.msra.mxu0 0
      %2287 = vmatprep.mubr.bf16.mxu0 0
      %2288 = vmatmul.mubr.bf16.gmra.mrb[0].mxu0 %v2250
      %v2289 = vpop.f32.mrb[0].mxu0
      %v2290 = vadd.f32 0.0, %v2289
      %v2291 = vpop.f32.mrb[0].mxu0
      %v2292 = vpop.f32.mrb[0].mxu0
      %v2293 = vpop.f32.mrb[0].mxu0
      %2294 = vdwg.mxu0
      %v2296 = vsel %vm1224, %v2242, 0
      %v2299 = vsel %vm1224, %v2246, 0
      %2301 = vmatprep.subr.bf16.mxu0 0
      %2302 = vmatpush1.bf16.xpose.msra.mxu0 %v2299
      %2303 = vmatprep.subr.bf16.mxu0 0
      %2304 = vmatpush1.bf16.xpose.msra.mxu0 0
      %2305 = vmatprep.subr.bf16.mxu0 0
      %2306 = vmatpush1.bf16.xpose.msra.mxu0 0
      %2307 = vmatprep.subr.bf16.mxu0 0
      %2308 = vmatpush1.bf16.xpose.msra.mxu0 0
      %2309 = vmatprep.subr.bf16.mxu0 0
      %2310 = vmatpush1.bf16.xpose.msra.mxu0 0
      %2311 = vmatprep.subr.bf16.mxu0 0
      %2312 = vmatpush1.bf16.xpose.msra.mxu0 0
      %2313 = vmatprep.subr.bf16.mxu0 0
      %2314 = vmatpush1.bf16.xpose.msra.mxu0 0
      %2315 = vmatprep.subr.bf16.mxu0 0
      %2316 = vmatpush1.bf16.xpose.msra.mxu0 0
      %2317 = vmatprep.subr.bf16.mxu0 0
      %2318 = vmatpush1.bf16.xpose.msra.mxu0 0
      %2319 = vmatprep.subr.bf16.mxu0 0
      %2320 = vmatpush1.bf16.xpose.msra.mxu0 0
      %2321 = vmatprep.subr.bf16.mxu0 0
      %2322 = vmatpush1.bf16.xpose.msra.mxu0 0
      %2323 = vmatprep.subr.bf16.mxu0 0
      %2324 = vmatpush1.bf16.xpose.msra.mxu0 0
      %2325 = vmatprep.subr.bf16.mxu0 0
      %2326 = vmatpush1.bf16.xpose.msra.mxu0 0
      %2327 = vmatprep.subr.bf16.mxu0 0
      %2328 = vmatpush1.bf16.xpose.msra.mxu0 0
      %2329 = vmatprep.subr.bf16.mxu0 0
      %2330 = vmatpush1.bf16.xpose.msra.mxu0 0
      %2331 = vmatprep.subr.bf16.mxu0 0
      %2332 = vmatpush1.bf16.xpose.msra.mxu0 0
      %2333 = vmatprep.mubr.bf16.mxu0 0
      %2334 = vmatmul.mubr.bf16.gmra.mrb[0].mxu0 %v2296
      %v2335 = vpop.f32.mrb[0].mxu0
      %v2336 = vadd.f32 0.0, %v2335
      %v2337 = vpop.f32.mrb[0].mxu0
      %v2338 = vpop.f32.mrb[0].mxu0
      %v2339 = vpop.f32.mrb[0].mxu0
      %2340 = vdwg.mxu0
      %v2342 = vsel %vm1224, %v2243, 0
      %v2345 = vsel %vm1224, %v2247, 0
      %2347 = vmatprep.subr.bf16.mxu0 0
      %2348 = vmatpush1.bf16.xpose.msra.mxu0 %v2345
      %2349 = vmatprep.subr.bf16.mxu0 0
      %2350 = vmatpush1.bf16.xpose.msra.mxu0 0
      %2351 = vmatprep.subr.bf16.mxu0 0
      %2352 = vmatpush1.bf16.xpose.msra.mxu0 0
      %2353 = vmatprep.subr.bf16.mxu0 0
      %2354 = vmatpush1.bf16.xpose.msra.mxu0 0
      %2355 = vmatprep.subr.bf16.mxu0 0
      %2356 = vmatpush1.bf16.xpose.msra.mxu0 0
      %2357 = vmatprep.subr.bf16.mxu0 0
      %2358 = vmatpush1.bf16.xpose.msra.mxu0 0
      %2359 = vmatprep.subr.bf16.mxu0 0
      %2360 = vmatpush1.bf16.xpose.msra.mxu0 0
      %2361 = vmatprep.subr.bf16.mxu0 0
      %2362 = vmatpush1.bf16.xpose.msra.mxu0 0
      %2363 = vmatprep.subr.bf16.mxu0 0
      %2364 = vmatpush1.bf16.xpose.msra.mxu0 0
      %2365 = vmatprep.subr.bf16.mxu0 0
      %2366 = vmatpush1.bf16.xpose.msra.mxu0 0
      %2367 = vmatprep.subr.bf16.mxu0 0
      %2368 = vmatpush1.bf16.xpose.msra.mxu0 0
      %2369 = vmatprep.subr.bf16.mxu0 0
      %2370 = vmatpush1.bf16.xpose.msra.mxu0 0
      %2371 = vmatprep.subr.bf16.mxu0 0
      %2372 = vmatpush1.bf16.xpose.msra.mxu0 0
      %2373 = vmatprep.subr.bf16.mxu0 0
      %2374 = vmatpush1.bf16.xpose.msra.mxu0 0
      %2375 = vmatprep.subr.bf16.mxu0 0
      %2376 = vmatpush1.bf16.xpose.msra.mxu0 0
      %2377 = vmatprep.subr.bf16.mxu0 0
      %2378 = vmatpush1.bf16.xpose.msra.mxu0 0
      %2379 = vmatprep.mubr.bf16.mxu0 0
      %2380 = vmatmul.mubr.bf16.gmra.mrb[0].mxu0 %v2342
      %v2381 = vpop.f32.mrb[0].mxu0
      %v2382 = vadd.f32 0.0, %v2381
      %v2383 = vpop.f32.mrb[0].mxu0
      %v2384 = vpop.f32.mrb[0].mxu0
      %v2385 = vpop.f32.mrb[0].mxu0
      %2386 = vdwg.mxu0
      %v2388 = vsel %vm1224, %v2244, 0
      %v2391 = vsel %vm1224, %v2248, 0
      %2393 = vmatprep.subr.bf16.mxu0 0
      %2394 = vmatpush1.bf16.xpose.msra.mxu0 %v2391
      %2395 = vmatprep.subr.bf16.mxu0 0
      %2396 = vmatpush1.bf16.xpose.msra.mxu0 0
      %2397 = vmatprep.subr.bf16.mxu0 0
      %2398 = vmatpush1.bf16.xpose.msra.mxu0 0
      %2399 = vmatprep.subr.bf16.mxu0 0
      %2400 = vmatpush1.bf16.xpose.msra.mxu0 0
      %2401 = vmatprep.subr.bf16.mxu0 0
      %2402 = vmatpush1.bf16.xpose.msra.mxu0 0
      %2403 = vmatprep.subr.bf16.mxu0 0
      %2404 = vmatpush1.bf16.xpose.msra.mxu0 0
      %2405 = vmatprep.subr.bf16.mxu0 0
      %2406 = vmatpush1.bf16.xpose.msra.mxu0 0
      %2407 = vmatprep.subr.bf16.mxu0 0
      %2408 = vmatpush1.bf16.xpose.msra.mxu0 0
      %2409 = vmatprep.subr.bf16.mxu0 0
      %2410 = vmatpush1.bf16.xpose.msra.mxu0 0
      %2411 = vmatprep.subr.bf16.mxu0 0
      %2412 = vmatpush1.bf16.xpose.msra.mxu0 0
      %2413 = vmatprep.subr.bf16.mxu0 0
      %2414 = vmatpush1.bf16.xpose.msra.mxu0 0
      %2415 = vmatprep.subr.bf16.mxu0 0
      %2416 = vmatpush1.bf16.xpose.msra.mxu0 0
      %2417 = vmatprep.subr.bf16.mxu0 0
      %2418 = vmatpush1.bf16.xpose.msra.mxu0 0
      %2419 = vmatprep.subr.bf16.mxu0 0
      %2420 = vmatpush1.bf16.xpose.msra.mxu0 0
      %2421 = vmatprep.subr.bf16.mxu0 0
      %2422 = vmatpush1.bf16.xpose.msra.mxu0 0
      %2423 = vmatprep.subr.bf16.mxu0 0
      %2424 = vmatpush1.bf16.xpose.msra.mxu0 0
      %2425 = vmatprep.mubr.bf16.mxu0 0
      %2426 = vmatmul.mubr.bf16.gmra.mrb[0].mxu0 %v2388
      %v2427 = vpop.f32.mrb[0].mxu0
      %v2428 = vadd.f32 0.0, %v2427
      %v2429 = vpop.f32.mrb[0].mxu0
      %v2430 = vpop.f32.mrb[0].mxu0
      %v2431 = vpop.f32.mrb[0].mxu0
      %2432 = vdwg.mxu0
      %v2433 = vsel %vm1224, %v2290, -inf
      %2434 = vmax.xlane.f32.xlu0 %v2433
      %v2435 = vpop.xlane.xlu0 %2434
      %v2436 = vsel %vm1224, %v2336, -inf
      %2437 = vmax.xlane.f32.xlu0 %v2436
      %v2438 = vpop.xlane.xlu0 %2437
      %v2439 = vsel %vm1224, %v2382, -inf
      %2440 = vmax.xlane.f32.xlu0 %v2439
      %v2441 = vpop.xlane.xlu0 %2440
      %v2442 = vsel %vm1224, %v2428, -inf
      %2443 = vmax.xlane.f32.xlu0 %v2442
      %v2444 = vpop.xlane.xlu0 %2443
      %v2445 = vsub.f32 %v2290, %v2435
      %v2446 = vsub.f32 %v2336, %v2438
      %v2447 = vsub.f32 %v2382, %v2441
      %v2448 = vsub.f32 %v2428, %v2444
      %v2449 = vmul.f32 %v2445, 1.442695
      %v2450 = vpow.pop %v2449
      %v2451 = vmul.f32 %v2446, 1.442695
      %v2452 = vpow.pop %v2451
      %v2453 = vmul.f32 %v2447, 1.442695
      %v2454 = vpow.pop %v2453
      %v2455 = vmul.f32 %v2448, 1.442695
      %v2456 = vpow.pop %v2455
      %v2457 = vsel %vm1224, %v2450, 0.0
      %2458 = vadd.xlane.f32.xlu0 %v2457
      %v2459 = vpop.xlane.xlu0 %2458
      %v2460 = vsel %vm1224, %v2452, 0.0
      %2461 = vadd.xlane.f32.xlu0 %v2460
      %v2462 = vpop.xlane.xlu0 %2461
      %v2463 = vsel %vm1224, %v2454, 0.0
      %2464 = vadd.xlane.f32.xlu0 %v2463
      %v2465 = vpop.xlane.xlu0 %2464
      %v2466 = vsel %vm1224, %v2456, 0.0
      %2467 = vadd.xlane.f32.xlu0 %v2466
      %v2468 = vpop.xlane.xlu0 %2467
      %v2469 = vrcp.pop %v2459
      %v2470 = vrcp.pop %v2462
      %v2471 = vrcp.pop %v2465
      %v2472 = vrcp.pop %v2468
      %v2473 = vmul.f32 %v2450, %v2469
      %v2474 = vmul.f32 %v2452, %v2470
      %v2475 = vmul.f32 %v2454, %v2471
      %v2476 = vmul.f32 %v2456, %v2472
      %v2477 = vpack.c.bf16 %v2473, %v2473
      %v2478 = vpack.c.bf16 %v2474, %v2474
      %v2479 = vpack.c.bf16 %v2475, %v2475
      %v2480 = vpack.c.bf16 %v2476, %v2476
      %v2481 = vpack.c.bf16 %v2237, %v2237
      %v2482 = vpack.c.bf16 %v2238, %v2238
      %v2483 = vpack.c.bf16 %v2239, %v2239
      %v2484 = vpack.c.bf16 %v2240, %v2240
      %v2486 = vsel %vm1224, %v2477, 0
      %v2489 = vsel %vm1464, %v2481, 0
      %2491 = vmatprep.subr.bf16.mxu0 0
      %2492 = vmatpush1.bf16.msra.mxu0 %v2489
      %2493 = vmatprep.subr.bf16.mxu0 0
      %2494 = vmatpush1.bf16.msra.mxu0 0
      %2495 = vmatprep.subr.bf16.mxu0 0
      %2496 = vmatpush1.bf16.msra.mxu0 0
      %2497 = vmatprep.subr.bf16.mxu0 0
      %2498 = vmatpush1.bf16.msra.mxu0 0
      %2499 = vmatprep.subr.bf16.mxu0 0
      %2500 = vmatpush1.bf16.msra.mxu0 0
      %2501 = vmatprep.subr.bf16.mxu0 0
      %2502 = vmatpush1.bf16.msra.mxu0 0
      %2503 = vmatprep.subr.bf16.mxu0 0
      %2504 = vmatpush1.bf16.msra.mxu0 0
      %2505 = vmatprep.subr.bf16.mxu0 0
      %2506 = vmatpush1.bf16.msra.mxu0 0
      %2507 = vmatprep.subr.bf16.mxu0 0
      %2508 = vmatpush1.bf16.msra.mxu0 0
      %2509 = vmatprep.subr.bf16.mxu0 0
      %2510 = vmatpush1.bf16.msra.mxu0 0
      %2511 = vmatprep.subr.bf16.mxu0 0
      %2512 = vmatpush1.bf16.msra.mxu0 0
      %2513 = vmatprep.subr.bf16.mxu0 0
      %2514 = vmatpush1.bf16.msra.mxu0 0
      %2515 = vmatprep.subr.bf16.mxu0 0
      %2516 = vmatpush1.bf16.msra.mxu0 0
      %2517 = vmatprep.subr.bf16.mxu0 0
      %2518 = vmatpush1.bf16.msra.mxu0 0
      %2519 = vmatprep.subr.bf16.mxu0 0
      %2520 = vmatpush1.bf16.msra.mxu0 0
      %2521 = vmatprep.subr.bf16.mxu0 0
      %2522 = vmatpush1.bf16.msra.mxu0 0
      %2523 = vmatprep.mubr.bf16.mxu0 0
      %2524 = vmatmul.mubr.bf16.gmra.mrb[0].mxu0 %v2486
      %v2525 = vpop.f32.mrb[0].mxu0
      %v2526 = vadd.f32 0.0, %v2525
      %v2527 = vpop.f32.mrb[0].mxu0
      %v2528 = vpop.f32.mrb[0].mxu0
      %v2529 = vpop.f32.mrb[0].mxu0
      %2530 = vdwg.mxu0
      %v2532 = vsel %vm1224, %v2478, 0
      %v2535 = vsel %vm1464, %v2482, 0
      %2537 = vmatprep.subr.bf16.mxu0 0
      %2538 = vmatpush1.bf16.msra.mxu0 %v2535
      %2539 = vmatprep.subr.bf16.mxu0 0
      %2540 = vmatpush1.bf16.msra.mxu0 0
      %2541 = vmatprep.subr.bf16.mxu0 0
      %2542 = vmatpush1.bf16.msra.mxu0 0
      %2543 = vmatprep.subr.bf16.mxu0 0
      %2544 = vmatpush1.bf16.msra.mxu0 0
      %2545 = vmatprep.subr.bf16.mxu0 0
      %2546 = vmatpush1.bf16.msra.mxu0 0
      %2547 = vmatprep.subr.bf16.mxu0 0
      %2548 = vmatpush1.bf16.msra.mxu0 0
      %2549 = vmatprep.subr.bf16.mxu0 0
      %2550 = vmatpush1.bf16.msra.mxu0 0
      %2551 = vmatprep.subr.bf16.mxu0 0
      %2552 = vmatpush1.bf16.msra.mxu0 0
      %2553 = vmatprep.subr.bf16.mxu0 0
      %2554 = vmatpush1.bf16.msra.mxu0 0
      %2555 = vmatprep.subr.bf16.mxu0 0
      %2556 = vmatpush1.bf16.msra.mxu0 0
      %2557 = vmatprep.subr.bf16.mxu0 0
      %2558 = vmatpush1.bf16.msra.mxu0 0
      %2559 = vmatprep.subr.bf16.mxu0 0
      %2560 = vmatpush1.bf16.msra.mxu0 0
      %2561 = vmatprep.subr.bf16.mxu0 0
      %2562 = vmatpush1.bf16.msra.mxu0 0
      %2563 = vmatprep.subr.bf16.mxu0 0
      %2564 = vmatpush1.bf16.msra.mxu0 0
      %2565 = vmatprep.subr.bf16.mxu0 0
      %2566 = vmatpush1.bf16.msra.mxu0 0
      %2567 = vmatprep.subr.bf16.mxu0 0
      %2568 = vmatpush1.bf16.msra.mxu0 0
      %2569 = vmatprep.mubr.bf16.mxu0 0
      %2570 = vmatmul.mubr.bf16.gmra.mrb[0].mxu0 %v2532
      %v2571 = vpop.f32.mrb[0].mxu0
      %v2572 = vadd.f32 0.0, %v2571
      %v2573 = vpop.f32.mrb[0].mxu0
      %v2574 = vpop.f32.mrb[0].mxu0
      %v2575 = vpop.f32.mrb[0].mxu0
      %2576 = vdwg.mxu0
      %v2578 = vsel %vm1224, %v2479, 0
      %v2581 = vsel %vm1464, %v2483, 0
      %2583 = vmatprep.subr.bf16.mxu0 0
      %2584 = vmatpush1.bf16.msra.mxu0 %v2581
      %2585 = vmatprep.subr.bf16.mxu0 0
      %2586 = vmatpush1.bf16.msra.mxu0 0
      %2587 = vmatprep.subr.bf16.mxu0 0
      %2588 = vmatpush1.bf16.msra.mxu0 0
      %2589 = vmatprep.subr.bf16.mxu0 0
      %2590 = vmatpush1.bf16.msra.mxu0 0
      %2591 = vmatprep.subr.bf16.mxu0 0
      %2592 = vmatpush1.bf16.msra.mxu0 0
      %2593 = vmatprep.subr.bf16.mxu0 0
      %2594 = vmatpush1.bf16.msra.mxu0 0
      %2595 = vmatprep.subr.bf16.mxu0 0
      %2596 = vmatpush1.bf16.msra.mxu0 0
      %2597 = vmatprep.subr.bf16.mxu0 0
      %2598 = vmatpush1.bf16.msra.mxu0 0
      %2599 = vmatprep.subr.bf16.mxu0 0
      %2600 = vmatpush1.bf16.msra.mxu0 0
      %2601 = vmatprep.subr.bf16.mxu0 0
      %2602 = vmatpush1.bf16.msra.mxu0 0
      %2603 = vmatprep.subr.bf16.mxu0 0
      %2604 = vmatpush1.bf16.msra.mxu0 0
      %2605 = vmatprep.subr.bf16.mxu0 0
      %2606 = vmatpush1.bf16.msra.mxu0 0
      %2607 = vmatprep.subr.bf16.mxu0 0
      %2608 = vmatpush1.bf16.msra.mxu0 0
      %2609 = vmatprep.subr.bf16.mxu0 0
      %2610 = vmatpush1.bf16.msra.mxu0 0
      %2611 = vmatprep.subr.bf16.mxu0 0
      %2612 = vmatpush1.bf16.msra.mxu0 0
      %2613 = vmatprep.subr.bf16.mxu0 0
      %2614 = vmatpush1.bf16.msra.mxu0 0
      %2615 = vmatprep.mubr.bf16.mxu0 0
      %2616 = vmatmul.mubr.bf16.gmra.mrb[0].mxu0 %v2578
      %v2617 = vpop.f32.mrb[0].mxu0
      %v2618 = vadd.f32 0.0, %v2617
      %v2619 = vpop.f32.mrb[0].mxu0
      %v2620 = vpop.f32.mrb[0].mxu0
      %v2621 = vpop.f32.mrb[0].mxu0
      %2622 = vdwg.mxu0
      %v2624 = vsel %vm1224, %v2480, 0
      %v2627 = vsel %vm1464, %v2484, 0
      %2629 = vmatprep.subr.bf16.mxu0 0
      %2630 = vmatpush1.bf16.msra.mxu0 %v2627
      %2631 = vmatprep.subr.bf16.mxu0 0
      %2632 = vmatpush1.bf16.msra.mxu0 0
      %2633 = vmatprep.subr.bf16.mxu0 0
      %2634 = vmatpush1.bf16.msra.mxu0 0
      %2635 = vmatprep.subr.bf16.mxu0 0
      %2636 = vmatpush1.bf16.msra.mxu0 0
      %2637 = vmatprep.subr.bf16.mxu0 0
      %2638 = vmatpush1.bf16.msra.mxu0 0
      %2639 = vmatprep.subr.bf16.mxu0 0
      %2640 = vmatpush1.bf16.msra.mxu0 0
      %2641 = vmatprep.subr.bf16.mxu0 0
      %2642 = vmatpush1.bf16.msra.mxu0 0
      %2643 = vmatprep.subr.bf16.mxu0 0
      %2644 = vmatpush1.bf16.msra.mxu0 0
      %2645 = vmatprep.subr.bf16.mxu0 0
      %2646 = vmatpush1.bf16.msra.mxu0 0
      %2647 = vmatprep.subr.bf16.mxu0 0
      %2648 = vmatpush1.bf16.msra.mxu0 0
      %2649 = vmatprep.subr.bf16.mxu0 0
      %2650 = vmatpush1.bf16.msra.mxu0 0
      %2651 = vmatprep.subr.bf16.mxu0 0
      %2652 = vmatpush1.bf16.msra.mxu0 0
      %2653 = vmatprep.subr.bf16.mxu0 0
      %2654 = vmatpush1.bf16.msra.mxu0 0
      %2655 = vmatprep.subr.bf16.mxu0 0
      %2656 = vmatpush1.bf16.msra.mxu0 0
      %2657 = vmatprep.subr.bf16.mxu0 0
      %2658 = vmatpush1.bf16.msra.mxu0 0
      %2659 = vmatprep.subr.bf16.mxu0 0
      %2660 = vmatpush1.bf16.msra.mxu0 0
      %2661 = vmatprep.mubr.bf16.mxu0 0
      %2662 = vmatmul.mubr.bf16.gmra.mrb[0].mxu0 %v2624
      %v2663 = vpop.f32.mrb[0].mxu0
      %v2664 = vadd.f32 0.0, %v2663
      %v2665 = vpop.f32.mrb[0].mxu0
      %v2666 = vpop.f32.mrb[0].mxu0
      %v2667 = vpop.f32.mrb[0].mxu0
      %2668 = vdwg.mxu0
      %v2669 = vcombine.low %v2526, %v2618
      %v2670 = vcombine.high %v2526, %v2618
      %v2672 = vunpack.c.l.s4 1983009808
      %v2673 = vunpack.c.0.s8 %v2672
      %v2674 = vlaneseq
      %v2675 = vshrl.u32 %v2674, 7
      %v2676 = vsub.s32 %v2673, %v2675
      %v2677 = vrot.slane %v2669, %v2676
      %v2679 = vunpack.c.l.s4 1983009808
      %v2680 = vunpack.c.0.s8 %v2679
      %v2681 = vlaneseq
      %v2682 = vshrl.u32 %v2681, 7
      %v2683 = vsub.s32 %v2680, %v2682
      %v2684 = vrot.slane %v2670, %v2683
      %v2685 = vcombine.low %v2572, %v2664
      %v2686 = vcombine.high %v2572, %v2664
      %v2688 = vunpack.c.l.s4 1983009808
      %v2689 = vunpack.c.0.s8 %v2688
      %v2690 = vlaneseq
      %v2691 = vshrl.u32 %v2690, 7
      %v2692 = vsub.s32 %v2689, %v2691
      %v2693 = vrot.slane %v2685, %v2692
      %v2695 = vunpack.c.l.s4 1983009808
      %v2696 = vunpack.c.0.s8 %v2695
      %v2697 = vlaneseq
      %v2698 = vshrl.u32 %v2697, 7
      %v2699 = vsub.s32 %v2696, %v2698
      %v2700 = vrot.slane %v2686, %v2699
      %v2701 = vcombine.low %v2677, %v2693
      %v2702 = vcombine.high %v2677, %v2693
      %v2704 = vunpack.c.l.s4 1934713408
      %v2705 = vunpack.c.0.s8 %v2704
      %v2706 = vlaneseq
      %v2707 = vshrl.u32 %v2706, 7
      %v2708 = vsub.s32 %v2705, %v2707
      %v2709 = vrot.slane %v2701, %v2708
      %v2711 = vunpack.c.l.s4 1934713408
      %v2712 = vunpack.c.0.s8 %v2711
      %v2713 = vlaneseq
      %v2714 = vshrl.u32 %v2713, 7
      %v2715 = vsub.s32 %v2712, %v2714
      %v2716 = vrot.slane %v2702, %v2715
      %v2717 = vcombine.low %v2684, %v2700
      %v2718 = vcombine.high %v2684, %v2700
      %v2720 = vunpack.c.l.s4 1934713408
      %v2721 = vunpack.c.0.s8 %v2720
      %v2722 = vlaneseq
      %v2723 = vshrl.u32 %v2722, 7
      %v2724 = vsub.s32 %v2721, %v2723
      %v2725 = vrot.slane %v2717, %v2724
      %v2727 = vunpack.c.l.s4 1934713408
      %v2728 = vunpack.c.0.s8 %v2727
      %v2729 = vlaneseq
      %v2730 = vshrl.u32 %v2729, 7
      %v2731 = vsub.s32 %v2728, %v2730
      %v2732 = vrot.slane %v2718, %v2731
      %v2733 = vcombine.high %v2709, 0.0
      %v2734 = vcombine.high %v2716, 0.0
      %v2735 = vcombine.high %v2725, 0.0
      %v2736 = vcombine.high %v2732, 0.0
      %v2737 = vcombine.low %v2709, %v2716
      %v2739 = vunpack.c.l.s4 1983009808
      %v2740 = vunpack.c.0.s8 %v2739
      %v2741 = vlaneseq
      %v2742 = vshrl.u32 %v2741, 7
      %v2743 = vsub.s32 %v2740, %v2742
      %v2744 = vrot.slane %v2737, %v2743
      %v2745 = vcombine.low %v2733, %v2734
      %v2747 = vunpack.c.l.s4 1983009808
      %v2748 = vunpack.c.0.s8 %v2747
      %v2749 = vlaneseq
      %v2750 = vshrl.u32 %v2749, 7
      %v2751 = vsub.s32 %v2748, %v2750
      %v2752 = vrot.slane %v2745, %v2751
      %v2753 = vcombine.low %v2725, %v2732
      %v2755 = vunpack.c.l.s4 1983009808
      %v2756 = vunpack.c.0.s8 %v2755
      %v2757 = vlaneseq
      %v2758 = vshrl.u32 %v2757, 7
      %v2759 = vsub.s32 %v2756, %v2758
      %v2760 = vrot.slane %v2753, %v2759
      %v2761 = vcombine.low %v2735, %v2736
      %v2763 = vunpack.c.l.s4 1983009808
      %v2764 = vunpack.c.0.s8 %v2763
      %v2765 = vlaneseq
      %v2766 = vshrl.u32 %v2765, 7
      %v2767 = vsub.s32 %v2764, %v2766
      %v2768 = vrot.slane %v2761, %v2767
      %v2769 = vcombine.low %v2744, %v2752
      %v2770 = vcombine.high %v2744, %v2752
      %v2772 = vunpack.c.l.s4 1934713408
      %v2773 = vunpack.c.0.s8 %v2772
      %v2774 = vlaneseq
      %v2775 = vshrl.u32 %v2774, 7
      %v2776 = vsub.s32 %v2773, %v2775
      %v2777 = vrot.slane %v2769, %v2776
      %v2779 = vunpack.c.l.s4 1934713408
      %v2780 = vunpack.c.0.s8 %v2779
      %v2781 = vlaneseq
      %v2782 = vshrl.u32 %v2781, 7
      %v2783 = vsub.s32 %v2780, %v2782
      %v2784 = vrot.slane %v2770, %v2783
      %v2785 = vcombine.low %v2760, %v2768
      %v2786 = vcombine.high %v2760, %v2768
      %v2788 = vunpack.c.l.s4 1934713408
      %v2789 = vunpack.c.0.s8 %v2788
      %v2790 = vlaneseq
      %v2791 = vshrl.u32 %v2790, 7
      %v2792 = vsub.s32 %v2789, %v2791
      %v2793 = vrot.slane %v2785, %v2792
      %v2795 = vunpack.c.l.s4 1934713408
      %v2796 = vunpack.c.0.s8 %v2795
      %v2797 = vlaneseq
      %v2798 = vshrl.u32 %v2797, 7
      %v2799 = vsub.s32 %v2796, %v2798
      %v2800 = vrot.slane %v2786, %v2799
      %v2801 = vcombine.low %v2777, %v2793
      %v2802 = vcombine.high %v2777, %v2793
      %v2803 = vcombine.low %v2784, %v2800
      %v2804 = vcombine.high %v2784, %v2800
      %2806 = vrot.lane.b32.xlu0 %v2802, 8
      %v2807 = vpop.permute.xlu0 %2806
      %2810 = vrot.lane.b32.xlu0 %v2803, 16
      %v2811 = vpop.permute.xlu0 %2810
      %2814 = vrot.lane.b32.xlu0 %v2804, 24
      %v2815 = vpop.permute.xlu0 %2814
      %v2817 = vsel %vm1224, %v2801, %v2807
      %v2818 = vsel %vm1795, %v2817, %v2811
      %v2819 = vsel %vm1797, %v2818, %v2815
      %v2820 = vpack.c.bf16 %v2819, %v1798
      %v2821 = vld [vmem:[%s616] sm:$0xf]
      %v2822 = vld [vmem:[%s616 + $0x4] sm:$0xf]
      %v2823 = vld [vmem:[%s616 + $0x8] sm:$0xf]
      %v2824 = vld [vmem:[%s616 + $0xc] sm:$0xf]
      %v2825 = vld [vmem:[%s619] sm:$0x1]
      %v2827 = vlaneseq
      %v2828 = vshrl.u32 %v2827, 7
      %v2829 = vsub.s32 0, %v2828
      %v2830 = vrot.slane %v2825, %v2829
      %v2836 = vunpack.c.l.b16 %v2821
      %v2837 = vunpack.c.l.b16 %v2822
      %v2838 = vunpack.c.l.b16 %v2823
      %v2839 = vunpack.c.l.b16 %v2824
      %v2840 = vpack.c.b16 %v2837, %v2836
      %v2841 = vpack.c.b16 %v2839, %v2838
      %v2845 = vsel %vm662, %v2820, 0
      %2847 = vmatprep.subr.bf16.mxu0 0
      %2848 = vmatpush1.bf16.msra.mxu0 %v2840
      %2849 = vmatprep.subr.bf16.mxu0 0
      %2850 = vmatpush1.bf16.msra.mxu0 %v2841
      %2851 = vmatprep.subr.bf16.mxu0 0
      %2852 = vmatpush1.bf16.msra.mxu0 0
      %2853 = vmatprep.subr.bf16.mxu0 0
      %2854 = vmatpush1.bf16.msra.mxu0 0
      %2855 = vmatprep.subr.bf16.mxu0 0
      %2856 = vmatpush1.bf16.msra.mxu0 0
      %2857 = vmatprep.subr.bf16.mxu0 0
      %2858 = vmatpush1.bf16.msra.mxu0 0
      %2859 = vmatprep.subr.bf16.mxu0 0
      %2860 = vmatpush1.bf16.msra.mxu0 0
      %2861 = vmatprep.subr.bf16.mxu0 0
      %2862 = vmatpush1.bf16.msra.mxu0 0
      %2863 = vmatprep.subr.bf16.mxu0 0
      %2864 = vmatpush1.bf16.msra.mxu0 0
      %2865 = vmatprep.subr.bf16.mxu0 0
      %2866 = vmatpush1.bf16.msra.mxu0 0
      %2867 = vmatprep.subr.bf16.mxu0 0
      %2868 = vmatpush1.bf16.msra.mxu0 0
      %2869 = vmatprep.subr.bf16.mxu0 0
      %2870 = vmatpush1.bf16.msra.mxu0 0
      %2871 = vmatprep.subr.bf16.mxu0 0
      %2872 = vmatpush1.bf16.msra.mxu0 0
      %2873 = vmatprep.subr.bf16.mxu0 0
      %2874 = vmatpush1.bf16.msra.mxu0 0
      %2875 = vmatprep.subr.bf16.mxu0 0
      %2876 = vmatpush1.bf16.msra.mxu0 0
      %2877 = vmatprep.subr.bf16.mxu0 0
      %2878 = vmatpush1.bf16.msra.mxu0 0
      %2879 = vmatprep.mubr.bf16.mxu0 0
      %2880 = vmatmul.mubr.bf16.gmra.mrb[0].mxu0 %v2845
      %v2881 = vpop.f32.mrb[0].mxu0
      %v2882 = vadd.f32 %v2830, %v2881
      %v2883 = vpop.f32.mrb[0].mxu0
      %v2884 = vpop.f32.mrb[0].mxu0
      %v2885 = vadd.f32 %v2830, %v2884
      %v2886 = vpop.f32.mrb[0].mxu0
      %2887 = vdwg.mxu0
      %v2888 = vadd.f32 %v658, %v2882
      %v2889 = vadd.f32 %v659, %v2885
      %v2890 = vld [vmem:[%s622] sm:$0x1]
      %v2891 = vld [vmem:[%s625] sm:$0x1]
      %v2892 = vsel %vm662, %v2888, 0.0
      %2893 = vadd.xlane.f32.xlu0 %v2892
      %v2894 = vpop.xlane.xlu0 %2893
      %v2895 = vsel %vm662, %v2889, 0.0
      %2896 = vadd.xlane.f32.xlu0 %v2895
      %v2897 = vpop.xlane.xlu0 %2896
      %v2898 = vmul.f32 %v2894, %v669
      %v2899 = vmul.f32 %v2897, %v669
      %v2900 = vsub.f32 %v2888, %v2898
      %v2901 = vsub.f32 %v2889, %v2899
      %v2902 = vmul.f32 %v2900, %v2900
      %v2903 = vmul.f32 %v2901, %v2901
      %v2904 = vsel %vm662, %v2902, 0.0
      %2905 = vadd.xlane.f32.xlu0 %v2904
      %v2906 = vpop.xlane.xlu0 %2905
      %v2907 = vsel %vm662, %v2903, 0.0
      %2908 = vadd.xlane.f32.xlu0 %v2907
      %v2909 = vpop.xlane.xlu0 %2908
      %v2910 = vmul.f32 %v2906, %v669
      %v2911 = vmul.f32 %v2909, %v669
      %v2912 = vadd.f32 %v2910, 1e-05
      %v2913 = vadd.f32 %v2911, 1e-05
      %v2914 = vrsqrt.pop %v2912
      %v2915 = vrsqrt.pop %v2913
      %v2916 = vmul.f32 %v2900, %v2914
      %v2917 = vmul.f32 %v2901, %v2915
      %v2919 = vlaneseq
      %v2920 = vshrl.u32 %v2919, 7
      %v2921 = vsub.s32 0, %v2920
      %v2922 = vrot.slane %v2890, %v2921
      %v2924 = vmul.f32 %v2916, %v2922
      %v2925 = vmul.f32 %v2917, %v2922
      %v2927 = vlaneseq
      %v2928 = vshrl.u32 %v2927, 7
      %v2929 = vsub.s32 0, %v2928
      %v2930 = vrot.slane %v2891, %v2929
      %v2932 = vadd.f32 %v2924, %v2930
      %v2933 = vadd.f32 %v2925, %v2930
      %v2934 = vpack.c.bf16 %v2933, %v2932
      %v2935 = vld [vmem:[%s630] sm:$0xf]
      %v2936 = vld [vmem:[%s630 + $0x4] sm:$0xf]
      %v2937 = vld [vmem:[%s630 + $0x8] sm:$0xf]
      %v2938 = vld [vmem:[%s630 + $0xc] sm:$0xf]
      %v2939 = vld [vmem:[%s633] sm:$0x1]
      %v2941 = vlaneseq
      %v2942 = vshrl.u32 %v2941, 7
      %v2943 = vsub.s32 0, %v2942
      %v2944 = vrot.slane %v2939, %v2943
      %v2950 = vunpack.c.l.b16 %v2935
      %v2951 = vunpack.c.l.b16 %v2936
      %v2952 = vunpack.c.l.b16 %v2937
      %v2953 = vunpack.c.l.b16 %v2938
      %v2954 = vpack.c.b16 %v2951, %v2950
      %v2955 = vpack.c.b16 %v2953, %v2952
      %v2959 = vsel %vm662, %v2934, 0
      %2961 = vmatprep.subr.bf16.mxu0 0
      %2962 = vmatpush1.bf16.msra.mxu0 %v2954
      %2963 = vmatprep.subr.bf16.mxu0 0
      %2964 = vmatpush1.bf16.msra.mxu0 %v2955
      %2965 = vmatprep.subr.bf16.mxu0 0
      %2966 = vmatpush1.bf16.msra.mxu0 0
      %2967 = vmatprep.subr.bf16.mxu0 0
      %2968 = vmatpush1.bf16.msra.mxu0 0
      %2969 = vmatprep.subr.bf16.mxu0 0
      %2970 = vmatpush1.bf16.msra.mxu0 0
      %2971 = vmatprep.subr.bf16.mxu0 0
      %2972 = vmatpush1.bf16.msra.mxu0 0
      %2973 = vmatprep.subr.bf16.mxu0 0
      %2974 = vmatpush1.bf16.msra.mxu0 0
      %2975 = vmatprep.subr.bf16.mxu0 0
      %2976 = vmatpush1.bf16.msra.mxu0 0
      %2977 = vmatprep.subr.bf16.mxu0 0
      %2978 = vmatpush1.bf16.msra.mxu0 0
      %2979 = vmatprep.subr.bf16.mxu0 0
      %2980 = vmatpush1.bf16.msra.mxu0 0
      %2981 = vmatprep.subr.bf16.mxu0 0
      %2982 = vmatpush1.bf16.msra.mxu0 0
      %2983 = vmatprep.subr.bf16.mxu0 0
      %2984 = vmatpush1.bf16.msra.mxu0 0
      %2985 = vmatprep.subr.bf16.mxu0 0
      %2986 = vmatpush1.bf16.msra.mxu0 0
      %2987 = vmatprep.subr.bf16.mxu0 0
      %2988 = vmatpush1.bf16.msra.mxu0 0
      %2989 = vmatprep.subr.bf16.mxu0 0
      %2990 = vmatpush1.bf16.msra.mxu0 0
      %2991 = vmatprep.subr.bf16.mxu0 0
      %2992 = vmatpush1.bf16.msra.mxu0 0
      %2993 = vmatprep.mubr.bf16.mxu0 0
      %2994 = vmatmul.mubr.bf16.gmra.mrb[0].mxu0 %v2959
      %v2995 = vpop.f32.mrb[0].mxu0
      %v2996 = vadd.f32 %v2944, %v2995
      %v2997 = vpop.f32.mrb[0].mxu0
      %v2998 = vpop.f32.mrb[0].mxu0
      %v2999 = vadd.f32 %v2944, %v2998
      %v3000 = vpop.f32.mrb[0].mxu0
      %3001 = vdwg.mxu0
      %v3002 = vmul.f32 %v2996, 1.702
      %v3003 = vmul.f32 %v2999, 1.702
      %v3004 = vxor.u32 %v3002, 2147483648
      %v3005 = vxor.u32 %v3003, 2147483648
      %v3006 = vmul.f32 %v3004, 1.442695
      %v3007 = vpow.pop %v3006
      %v3008 = vmul.f32 %v3005, 1.442695
      %v3009 = vpow.pop %v3008
      %v3010 = vadd.f32 %v3007, 1.0
      %v3011 = vadd.f32 %v3009, 1.0
      %v3012 = vrcp.pop %v3010
      %v3013 = vmul.f32 1.0, %v3012
      %v3014 = vrcp.pop %v3011
      %v3015 = vmul.f32 1.0, %v3014
      %v3016 = vmul.f32 %v2996, %v3013
      %v3017 = vmul.f32 %v2999, %v3015
      %v3018 = vpack.c.bf16 %v3017, %v3016
      %v3019 = vld [vmem:[%s638] sm:$0xf]
      %v3020 = vld [vmem:[%s638 + $0x4] sm:$0xf]
      %v3021 = vld [vmem:[%s638 + $0x8] sm:$0xf]
      %v3022 = vld [vmem:[%s638 + $0xc] sm:$0xf]
      %v3023 = vld [vmem:[%s638 + $0x10] sm:$0xf]
      %v3024 = vld [vmem:[%s638 + $0x14] sm:$0xf]
      %v3025 = vld [vmem:[%s638 + $0x18] sm:$0xf]
      %v3026 = vld [vmem:[%s638 + $0x1c] sm:$0xf]
      %v3027 = vld [vmem:[%s638 + $0x20] sm:$0xf]
      %v3028 = vld [vmem:[%s638 + $0x24] sm:$0xf]
      %v3029 = vld [vmem:[%s638 + $0x28] sm:$0xf]
      %v3030 = vld [vmem:[%s638 + $0x2c] sm:$0xf]
      %v3031 = vld [vmem:[%s638 + $0x30] sm:$0xf]
      %v3032 = vld [vmem:[%s638 + $0x34] sm:$0xf]
      %v3033 = vld [vmem:[%s638 + $0x38] sm:$0xf]
      %v3034 = vld [vmem:[%s638 + $0x3c] sm:$0xf]
      %v3035 = vld [vmem:[%s641] sm:$0x1]
      %v3037 = vlaneseq
      %v3038 = vshrl.u32 %v3037, 7
      %v3039 = vsub.s32 0, %v3038
      %v3040 = vrot.slane %v3035, %v3039
      %v3058 = vunpack.c.l.b16 %v3019
      %v3059 = vunpack.c.l.b16 %v3020
      %v3060 = vunpack.c.l.b16 %v3021
      %v3061 = vunpack.c.l.b16 %v3022
      %v3062 = vunpack.c.l.b16 %v3023
      %v3063 = vunpack.c.l.b16 %v3024
      %v3064 = vunpack.c.l.b16 %v3025
      %v3065 = vunpack.c.l.b16 %v3026
      %v3066 = vunpack.c.l.b16 %v3027
      %v3067 = vunpack.c.l.b16 %v3028
      %v3068 = vunpack.c.l.b16 %v3029
      %v3069 = vunpack.c.l.b16 %v3030
      %v3070 = vunpack.c.l.b16 %v3031
      %v3071 = vunpack.c.l.b16 %v3032
      %v3072 = vunpack.c.l.b16 %v3033
      %v3073 = vunpack.c.l.b16 %v3034
      %v3074 = vpack.c.b16 %v3059, %v3058
      %v3075 = vpack.c.b16 %v3061, %v3060
      %v3076 = vpack.c.b16 %v3063, %v3062
      %v3077 = vpack.c.b16 %v3065, %v3064
      %v3078 = vpack.c.b16 %v3067, %v3066
      %v3079 = vpack.c.b16 %v3069, %v3068
      %v3080 = vpack.c.b16 %v3071, %v3070
      %v3081 = vpack.c.b16 %v3073, %v3072
      %3090 = vmatprep.subr.bf16.mxu0 0
      %3091 = vmatpush1.bf16.msra.mxu0 %v3074
      %3092 = vmatprep.subr.bf16.mxu0 0
      %3093 = vmatpush1.bf16.msra.mxu0 %v3075
      %3094 = vmatprep.subr.bf16.mxu0 0
      %3095 = vmatpush1.bf16.msra.mxu0 %v3076
      %3096 = vmatprep.subr.bf16.mxu0 0
      %3097 = vmatpush1.bf16.msra.mxu0 %v3077
      %3098 = vmatprep.subr.bf16.mxu0 0
      %3099 = vmatpush1.bf16.msra.mxu0 %v3078
      %3100 = vmatprep.subr.bf16.mxu0 0
      %3101 = vmatpush1.bf16.msra.mxu0 %v3079
      %3102 = vmatprep.subr.bf16.mxu0 0
      %3103 = vmatpush1.bf16.msra.mxu0 %v3080
      %3104 = vmatprep.subr.bf16.mxu0 0
      %3105 = vmatpush1.bf16.msra.mxu0 %v3081
      %3106 = vmatprep.subr.bf16.mxu0 0
      %3107 = vmatpush1.bf16.msra.mxu0 0
      %3108 = vmatprep.subr.bf16.mxu0 0
      %3109 = vmatpush1.bf16.msra.mxu0 0
      %3110 = vmatprep.subr.bf16.mxu0 0
      %3111 = vmatpush1.bf16.msra.mxu0 0
      %3112 = vmatprep.subr.bf16.mxu0 0
      %3113 = vmatpush1.bf16.msra.mxu0 0
      %3114 = vmatprep.subr.bf16.mxu0 0
      %3115 = vmatpush1.bf16.msra.mxu0 0
      %3116 = vmatprep.subr.bf16.mxu0 0
      %3117 = vmatpush1.bf16.msra.mxu0 0
      %3118 = vmatprep.subr.bf16.mxu0 0
      %3119 = vmatpush1.bf16.msra.mxu0 0
      %3120 = vmatprep.subr.bf16.mxu0 0
      %3121 = vmatpush1.bf16.msra.mxu0 0
      %3122 = vmatprep.mubr.bf16.mxu0 0
      %3123 = vmatmul.mubr.bf16.gmra.mrb[0].mxu0 %v3018
      %v3124 = vpop.f32.mrb[0].mxu0
      %v3125 = vadd.f32 %v3040, %v3124
      %v3126 = vpop.f32.mrb[0].mxu0
      %v3127 = vpop.f32.mrb[0].mxu0
      %v3128 = vadd.f32 %v3040, %v3127
      %v3129 = vpop.f32.mrb[0].mxu0
      %3130 = vdwg.mxu0
      %v3131 = vadd.f32 %v2888, %v3125
      %v3132 = vadd.f32 %v2889, %v3128
      %3133 = vst.msk [vmem:[%s646] sm:$0xff] %vm662, %v3131
      %3134 = vst.msk [vmem:[%s646 + $0x8] sm:$0xff] %vm662, %v3132
      %s3135 = smul.u32 2, %s28
      %p3136 = scmp.lt.s32.totalorder %s3135, 1
      %s3137 = scalar_select %p3136, %s3135, 1
      %s3138 = smul.addr %s3137, 8
      %s3139 = scalar_lea.vmem %s13, %s3138
      // Predicated region
      $region77: #{transformer_forward.1} parent=71 // pred_check
        %p3140 = pneg %p392
      $region78: #{transformer_forward.1} parent=71 // pred_check_branch
        %3142 = sbr.rel (%p3140) target = $region80
      $region79: #{transformer_forward.1} parent=71 // pred_region
        %s3143 = smul.u32 2, %s28
      $region80: #{transformer_forward.1} parent=71 // pred_fallthru
        _
      // Predicated region
      $region81: #{transformer_forward.1} parent=71 // pred_check
        %p3144 = pneg %p392
      $region82: #{transformer_forward.1} parent=71 // pred_check_branch
        %3146 = sbr.rel (%p3144) target = $region84
      $region83: #{transformer_forward.1} parent=71 // pred_region
        %s3147 = smul.u32 2, %s28
        %p3148 = scmp.lt.s32.totalorder %s3147, 1
        %s3149 = scalar_select %p3148, %s3147, 1
        %s3150 = smul.addr %s3149, 8
        %s3151 = scalar_lea.vmem %s13, %s3150
      $region84: #{transformer_forward.1} parent=71 // pred_fallthru
        _
    $region72: #{transformer_forward.1} parent=5 // pred_fallthru
      _
    %p3152 = scmp.le.s32.totalorder 2, %s19
    // Predicated region
    $region85: #{transformer_forward.1} parent=5 // pred_check
      %p3153 = pneg %p3152
    $region86: #{transformer_forward.1} parent=5 // pred_check_branch
      %3155 = sbr.rel (%p3153) target = $region88
    $region87: #{transformer_forward.1} parent=5 // pred_region
      %s3156 = ssub.s32 %s19, 2
    $region88: #{transformer_forward.1} parent=5 // pred_fallthru
      _
  $region6: #{transformer_forward.1} parent=0 // loop_footer
    %s23 = sadd.s32 1, %s19
  $region7: #{transformer_forward.1} parent=0 // loop_footer_branch
    %18 = sbr.rel target = $region3
  $region8: #{transformer_forward.1} parent=0 // loop_exit
    _

</llo_original>
